<compile_context>
chip_gen: v5e
topology: v5e:2x2
jax: 0.10.0
libtpu: 0.0.40
codegen_flags: <defaults>
</compile_context>

<pallas_src>
import functools

import jax
import jax.numpy as jnp
from jax.experimental import pallas as pl
from jax.experimental.pallas import tpu as pltpu

BN_EPS = 1e-3  # matches nn.BatchNorm2d(eps=0.001)


# ----------------------------- fused Pallas kernel -----------------------------

def _inception_res_a_kernel(
    x_ref,       # (384, Mt)  f32   packed group of images, NCHW flattened to (C, imgs*H*W)
    wstem_ref,   # (96, 384)  bf16  merged b0 / b1_0 / b2_0 1x1 weights (BN folded)
    bstem_ref,   # (96, 1)    f32
    w1_ref,      # (32, 288)  bf16  branch_1 3x3 as im2col weight (BN folded)
    b1_ref,      # (32, 1)    f32
    w21_ref,     # (48, 288)  bf16  branch_2 first 3x3
    b21_ref,     # (48, 1)    f32
    w22_ref,     # (64, 432)  bf16  branch_2 second 3x3
    b22_ref,     # (64, 1)    f32
    wall_ref,    # (384, 128) bf16  full branch_all 1x1 weight (lane-dense)
    ball_ref,    # (384, 1)   f32
    mask_ref,    # (9, 1, Mt) f32   per-tap spatial validity masks (tiled per image)
    o_ref,       # (384, Mt)  f32
    slab1_ref,   # (288, Mt)  bf16  scratch: branch_1 im2col
    slab21_ref,  # (288, Mt)  bf16  scratch: branch_2 first im2col
    slab22_ref,  # (432, Mt)  bf16  scratch: branch_2 second im2col
    cat_ref,     # (128, Mt)  bf16  scratch: concat feeding branch_all
    *, rolls, scale):
  f32 = jnp.float32
  bf16 = jnp.bfloat16

  # x = relu(x): relu'd input is both the matmul operand and the residual (stays in VMEM).
  xr = jnp.maximum(x_ref[...], 0.0)                                  # (384, Mt) f32
  xr_bf = xr.astype(bf16)

  # Merged 1x1 stems: rows 0:32 -> branch_0, 32:64 -> branch_1[0], 64:96 -> branch_2[0].
  stem = jnp.dot(wstem_ref[...], xr_bf, preferred_element_type=f32)  # (96, Mt)
  stem = jnp.maximum(stem + bstem_ref[...], 0.0)
  s0 = stem[0:32, :]
  s12 = stem[32:96, :]   # rows 0:32 -> branch_1 stem, 32:64 -> branch_2 stem

  # im2col slabs for branch_1 and branch_2's first 3x3: shared roll + mask per tap,
  # then split the 64 rows into the two slabs.  Cross-image lane wrap is zeroed by masks.
  for t in range(9):
    r = rolls[t]
    shifted = s12 if r == 0 else pltpu.roll(s12, shift=r, axis=1)    # (64, Mt) f32
    masked = (shifted * mask_ref[t]).astype(bf16)
    slab1_ref[t * 32:(t + 1) * 32, :] = masked[0:32, :]
    slab21_ref[t * 32:(t + 1) * 32, :] = masked[32:64, :]

  # branch_1 3x3 (32 -> 32) and branch_2 first 3x3 (32 -> 48): one K=288 matmul each.
  y1 = jnp.maximum(
      jnp.dot(w1_ref[...], slab1_ref[...], preferred_element_type=f32) + b1_ref[...], 0.0)
  y21 = jnp.maximum(
      jnp.dot(w21_ref[...], slab21_ref[...], preferred_element_type=f32) + b21_ref[...], 0.0)

  # branch_2 second 3x3 (48 -> 64): im2col slab + one K=432 matmul.
  for t in range(9):
    r = rolls[t]
    shifted = y21 if r == 0 else pltpu.roll(y21, shift=r, axis=1)    # (48, Mt) f32
    slab22_ref[t * 48:(t + 1) * 48, :] = (shifted * mask_ref[t]).astype(bf16)

  y22 = jnp.maximum(
      jnp.dot(w22_ref[...], slab22_ref[...], preferred_element_type=f32) + b22_ref[...], 0.0)

  # branch_all 1x1 on cat([x0, x1, x2], channel): one K=128 matmul against the full weight.
  cat_ref[0:32, :] = s0.astype(bf16)
  cat_ref[32:64, :] = y1.astype(bf16)
  cat_ref[64:128, :] = y22.astype(bf16)
  up = jnp.dot(wall_ref[...], cat_ref[...], preferred_element_type=f32)
  up = jnp.maximum(up + ball_ref[...], 0.0)

  o_ref[...] = xr + scale * up


# ----------------------------- host-side weight folding -----------------------------

def _fold_bn(p):
  s = p["gamma"] / jnp.sqrt(p["var"] + BN_EPS)
  b = p["beta"] - p["mean"] * s
  return s, b


def _folded_1x1(p):
  # conv weight (Cout, Cin, 1, 1) with BN scale folded in -> (Cout, Cin), bias (Cout,)
  s, b = _fold_bn(p)
  return p["w"][:, :, 0, 0] * s[:, None], b


def _folded_3x3_im2col(p):
  # conv weight (Cout, Cin, 3, 3) -> (Cout, 9*Cin), column block t*Cin:(t+1)*Cin is
  # tap t = (dy+1)*3 + (dx+1), matching the im2col slab row layout.
  s, b = _fold_bn(p)
  w = p["w"] * s[:, None, None, None]
  cout, cin = w.shape[0], w.shape[1]
  w = jnp.transpose(w, (0, 2, 3, 1)).reshape(cout, 9 * cin)
  return w, b


def _shift_tables(h, w, imgs):
  # Per 3x3 tap: lane-roll amount (modulo the packed lane width) and a (1, imgs*H*W)
  # validity mask (per-image mask tiled across the packed images).
  m = h * w
  mt = imgs * m
  rolls, masks = [], []
  for dy in (-1, 0, 1):
    for dx in (-1, 0, 1):
      off = dy * w + dx
      rolls.append((-off) % mt)
      masks.append([1.0 if (0 <= (i // w) + dy < h and 0 <= (i % w) + dx < w) else 0.0
                    for i in range(m)])
  masks = jnp.asarray(masks, jnp.float32)            # (9, m)
  masks = jnp.tile(masks, (1, imgs)).reshape(9, 1, mt)
  return tuple(rolls), masks


def _resident_spec(arr):
  nd = arr.ndim

  def index_map(i):
    return (0,) * nd

  return pl.BlockSpec(arr.shape, index_map)


# ----------------------------- wrapper -----------------------------

def inception_res_a(x_nchw, params, scale=1.0, imgs_per_step=2):
  n, c, h, w = x_nchw.shape
  assert c == 384, "InceptionResA expects 384 input channels"
  m = h * w
  assert m % 128 == 0, "flattened spatial dim must be lane-aligned (pad W for e.g. 35x35)"
  bf16 = jnp.bfloat16

  # Pack `g` images per grid step (widens the matmul lane dim to g*m, >=256 on v6e/v7x).
  g = max(1, min(imgs_per_step, n))
  while n % g != 0:
    g -= 1
  steps = n // g
  mt = g * m

  # Fold BN into the weights (host side, tiny).
  w0, b0 = _folded_1x1(params["b0"])
  w10, b10 = _folded_1x1(params["b1_0"])
  w20, b20 = _folded_1x1(params["b2_0"])
  wstem = jnp.concatenate([w0, w10, w20], axis=0).astype(bf16)      # (96, 384)
  bstem = jnp.concatenate([b0, b10, b20]).reshape(96, 1)

  w1, b1 = _folded_3x3_im2col(params["b1_1"])                       # (32, 288)
  w21, b21 = _folded_3x3_im2col(params["b2_1"])                     # (48, 288)
  w22, b22 = _folded_3x3_im2col(params["b2_2"])                     # (64, 432)

  wall, ball = _folded_1x1(params["all"])                           # (384, 128)

  rolls, masks = _shift_tables(h, w, g)

  weights = [
      wstem, bstem,
      w1.astype(bf16), b1.reshape(-1, 1),
      w21.astype(bf16), b21.reshape(-1, 1),
      w22.astype(bf16), b22.reshape(-1, 1),
      wall.astype(bf16), ball.reshape(-1, 1),
      masks,
  ]

  # Pack: (N, C, m) -> (steps, C, g*m), columns j*m:(j+1)*m of a step = image j of the group.
  x_packed = (x_nchw.reshape(n, c, m)
              .reshape(steps, g, c, m)
              .transpose(0, 2, 1, 3)
              .reshape(steps, c, mt))

  kern = functools.partial(_inception_res_a_kernel, rolls=rolls, scale=float(scale))
  out = pl.pallas_call(
      kern,
      out_shape=jax.ShapeDtypeStruct((steps, c, mt), jnp.float32),
      grid=(steps,),
      in_specs=[pl.BlockSpec((None, c, mt), lambda i: (i, 0, 0))]
               + [_resident_spec(a) for a in weights],
      out_specs=pl.BlockSpec((None, c, mt), lambda i: (i, 0, 0)),
      scratch_shapes=[
          pltpu.VMEM((288, mt), bf16),   # branch_1 im2col slab
          pltpu.VMEM((288, mt), bf16),   # branch_2 first im2col slab
          pltpu.VMEM((432, mt), bf16),   # branch_2 second im2col slab
          pltpu.VMEM((128, mt), bf16),   # concat feeding branch_all
      ],
      compiler_params=pltpu.CompilerParams(
          dimension_semantics=("parallel",),
          vmem_limit_bytes=32 * 1024 * 1024),
  )(x_packed, *weights)

  return (out.reshape(steps, c, g, m)
          .transpose(0, 2, 1, 3)
          .reshape(n, c, h, w))


# ----------------------------- pure-JAX reference -----------------------------

def _ref_basic_conv2d(x_nchw, p):
  pad = (p["k"] - 1) // 2
  y = jax.lax.conv_general_dilated(
      x_nchw, p["w"], window_strides=(1, 1),
      padding=((pad, pad), (pad, pad)),
      dimension_numbers=("NCHW", "OIHW", "NCHW"))
  s, b = _fold_bn(p)
  return jnp.maximum(y * s[None, :, None, None] + b[None, :, None, None], 0.0)


def _ref_forward(x_nchw, params, scale=1.0):
  xr = jnp.maximum(x_nchw, 0.0)
  x0 = _ref_basic_conv2d(xr, params["b0"])
  x1 = _ref_basic_conv2d(_ref_basic_conv2d(xr, params["b1_0"]), params["b1_1"])
  x2 = _ref_basic_conv2d(
      _ref_basic_conv2d(_ref_basic_conv2d(xr, params["b2_0"]), params["b2_1"]),
      params["b2_2"])
  hcat = jnp.concatenate([x0, x1, x2], axis=1)
  return xr + _ref_basic_conv2d(hcat, params["all"]) * scale


# ----------------------------- parameters -----------------------------

def init_basic_conv2d(key, cin, cout, ksize):
  kw, kg, kb, km, kv = jax.random.split(key, 5)
  return dict(
      w=jax.random.normal(kw, (cout, cin, ksize, ksize), jnp.float32) * 0.05,
      gamma=1.0 + 0.1 * jax.random.normal(kg, (cout,), jnp.float32),
      beta=0.1 * jax.random.normal(kb, (cout,), jnp.float32),
      mean=0.1 * jax.random.normal(km, (cout,), jnp.float32),
      var=jax.random.uniform(kv, (cout,), jnp.float32, 0.5, 1.5),
      k=ksize,
  )


def init_inception_res_a_params(key):
  ks = jax.random.split(key, 7)
  return dict(
      b0=init_basic_conv2d(ks[0], 384, 32, 1),
      b1_0=init_basic_conv2d(ks[1], 384, 32, 1),
      b1_1=init_basic_conv2d(ks[2], 32, 32, 3),
      b2_0=init_basic_conv2d(ks[3], 384, 32, 1),
      b2_1=init_basic_conv2d(ks[4], 32, 48, 3),
      b2_2=init_basic_conv2d(ks[5], 48, 64, 3),
      all=init_basic_conv2d(ks[6], 128, 384, 1),
  )


# ----------------------------- main -----------------------------

if __name__ == "__main__":
  key = jax.random.PRNGKey(0)
  kx, kp = jax.random.split(key)

  # Module requires 384 input channels.  H*W = 128 per image keeps the lane dim dense;
  # packing 2 images per grid step gives a 256-wide MXU RHS (full width on v6e/v7x),
  # and batch 8 gives a 4-step "parallel" grid (>=2 pipelined steps per v7x TensorCore).
  N, C, H, W = 8, 384, 8, 16
  x = jax.random.normal(kx, (N, C, H, W), jnp.float32)
  params = init_inception_res_a_params(kp)

  out = jax.block_until_ready(inception_res_a(x, params, scale=0.5, imgs_per_step=2))
  assert out.shape == x.shape, (out.shape, x.shape)
  assert bool(jnp.isfinite(out).all())

  ref = jax.block_until_ready(_ref_forward(x, params, scale=0.5))
  max_abs = float(jnp.max(jnp.abs(out - ref)))
  # bf16 MXU operands with f32 accumulation: expect ~1e-3..1e-2-scale absolute error.
  assert max_abs < 5e-2, f"mismatch vs reference: max abs diff = {max_abs}"

  print("KERNEL_OK")
</pallas_src>

<mosaic_0001>
module attributes {stable_mosaic.version = 11 : i64} {
  func.func @_inception_res_a_kernel(%arg0: i32, %arg1: memref<1x384x256xf32, #tpu.memory_space<vmem>>, %arg2: memref<96x384xbf16, #tpu.memory_space<vmem>>, %arg3: memref<96x1xf32, #tpu.memory_space<vmem>>, %arg4: memref<32x288xbf16, #tpu.memory_space<vmem>>, %arg5: memref<32x1xf32, #tpu.memory_space<vmem>>, %arg6: memref<48x288xbf16, #tpu.memory_space<vmem>>, %arg7: memref<48x1xf32, #tpu.memory_space<vmem>>, %arg8: memref<64x432xbf16, #tpu.memory_space<vmem>>, %arg9: memref<64x1xf32, #tpu.memory_space<vmem>>, %arg10: memref<384x128xbf16, #tpu.memory_space<vmem>>, %arg11: memref<384x1xf32, #tpu.memory_space<vmem>>, %arg12: memref<9x1x256xf32, #tpu.memory_space<vmem>>, %arg13: memref<1x384x256xf32, #tpu.memory_space<vmem>>, %arg14: memref<288x256xbf16, #tpu.memory_space<vmem>>, %arg15: memref<288x256xbf16, #tpu.memory_space<vmem>>, %arg16: memref<432x256xbf16, #tpu.memory_space<vmem>>, %arg17: memref<128x256xbf16, #tpu.memory_space<vmem>>) attributes {dimension_semantics = [#tpu.dimension_semantics<parallel>], iteration_bounds = array<i64: 4>, scalar_prefetch = 0 : i64, scratch_operands = 4 : i64, tpu.core_type = #tpu.core_type<tc>, window_params = [{transform_indices = @transform_0, window_bounds = array<i64: 1, 384, 256>}, {pipeline_mode = #tpu.pipeline_mode<synchronous>, transform_indices = @transform_1, window_bounds = array<i64: 96, 384>}, {pipeline_mode = #tpu.pipeline_mode<synchronous>, transform_indices = @transform_2, window_bounds = array<i64: 96, 1>}, {pipeline_mode = #tpu.pipeline_mode<synchronous>, transform_indices = @transform_3, window_bounds = array<i64: 32, 288>}, {pipeline_mode = #tpu.pipeline_mode<synchronous>, transform_indices = @transform_4, window_bounds = array<i64: 32, 1>}, {pipeline_mode = #tpu.pipeline_mode<synchronous>, transform_indices = @transform_5, window_bounds = array<i64: 48, 288>}, {pipeline_mode = #tpu.pipeline_mode<synchronous>, transform_indices = @transform_6, window_bounds = array<i64: 48, 1>}, {pipeline_mode = #tpu.pipeline_mode<synchronous>, transform_indices = @transform_7, window_bounds = array<i64: 64, 432>}, {pipeline_mode = #tpu.pipeline_mode<synchronous>, transform_indices = @transform_8, window_bounds = array<i64: 64, 1>}, {pipeline_mode = #tpu.pipeline_mode<synchronous>, transform_indices = @transform_9, window_bounds = array<i64: 384, 128>}, {pipeline_mode = #tpu.pipeline_mode<synchronous>, transform_indices = @transform_10, window_bounds = array<i64: 384, 1>}, {pipeline_mode = #tpu.pipeline_mode<synchronous>, transform_indices = @transform_11, window_bounds = array<i64: 9, 1, 256>}, {transform_indices = @transform_12, window_bounds = array<i64: 1, 384, 256>}]} {
    %c0 = arith.constant 0 : index
    %c0_0 = arith.constant 0 : index
    %c0_1 = arith.constant 0 : index
    %0 = vector.load %arg1[%c0, %c0_0, %c0_1] : memref<1x384x256xf32, #tpu.memory_space<vmem>>, vector<1x384x256xf32>
    %1 = vector.shape_cast %0 : vector<1x384x256xf32> to vector<384x256xf32>
    %cst = arith.constant 0.000000e+00 : f32
    %2 = vector.broadcast %cst : f32 to vector<384x256xf32>
    %3 = arith.maximumf %1, %2 : vector<384x256xf32>
    %4 = arith.truncf %3 : vector<384x256xf32> to vector<384x256xbf16>
    %c0_2 = arith.constant 0 : index
    %c0_3 = arith.constant 0 : index
    %5 = vector.load %arg2[%c0_2, %c0_3] : memref<96x384xbf16, #tpu.memory_space<vmem>>, vector<96x384xbf16>
    %cst_4 = arith.constant dense<0.000000e+00> : vector<96x256xf32>
    %6 = tpu.matmul %5, %4, %cst_4 {dimension_numbers = #tpu.dot_dimension_numbers<[1], [0], [0], [1], [0, 0, 1, 1], [], []>} : vector<96x384xbf16>, vector<384x256xbf16>, vector<96x256xf32> -> vector<96x256xf32>
    %c0_5 = arith.constant 0 : index
    %c0_6 = arith.constant 0 : index
    %7 = vector.load %arg3[%c0_5, %c0_6] : memref<96x1xf32, #tpu.memory_space<vmem>>, vector<96x1xf32>
    %8 = vector.broadcast %7 : vector<96x1xf32> to vector<96x256xf32>
    %9 = arith.addf %6, %8 : vector<96x256xf32>
    %cst_7 = arith.constant 0.000000e+00 : f32
    %10 = vector.broadcast %cst_7 : f32 to vector<96x256xf32>
    %11 = arith.maximumf %9, %10 : vector<96x256xf32>
    %12 = vector.extract_strided_slice %11 {offsets = [0, 0], sizes = [32, 256], strides = [1, 1]} : vector<96x256xf32> to vector<32x256xf32>
    %13 = vector.extract_strided_slice %11 {offsets = [32, 0], sizes = [64, 256], strides = [1, 1]} : vector<96x256xf32> to vector<64x256xf32>
    %c17_i32 = arith.constant 17 : i32
    %14 = tpu.dynamic_rotate %13 by %c17_i32 dim 1 : vector<64x256xf32>, i32 -> vector<64x256xf32>
    %c0_8 = arith.constant 0 : index
    %c0_9 = arith.constant 0 : index
    %c0_10 = arith.constant 0 : index
    %15 = vector.load %arg12[%c0_8, %c0_9, %c0_10] : memref<9x1x256xf32, #tpu.memory_space<vmem>>, vector<1x1x256xf32>
    %16 = vector.shape_cast %15 : vector<1x1x256xf32> to vector<1x256xf32>
    %17 = vector.broadcast %16 : vector<1x256xf32> to vector<64x256xf32>
    %18 = arith.mulf %14, %17 : vector<64x256xf32>
    %19 = arith.truncf %18 : vector<64x256xf32> to vector<64x256xbf16>
    %20 = vector.extract_strided_slice %19 {offsets = [0, 0], sizes = [32, 256], strides = [1, 1]} : vector<64x256xbf16> to vector<32x256xbf16>
    %c0_11 = arith.constant 0 : index
    %c0_12 = arith.constant 0 : index
    %21 = vector.load %arg14[%c0_11, %c0_12] : memref<288x256xbf16, #tpu.memory_space<vmem>>, vector<32x256xbf16>
    tpu.vector_store %arg14[%c0_11, %c0_12], %20 {strides = array<i32>} : memref<288x256xbf16, #tpu.memory_space<vmem>>, vector<32x256xbf16>,
    %22 = vector.extract_strided_slice %19 {offsets = [32, 0], sizes = [32, 256], strides = [1, 1]} : vector<64x256xbf16> to vector<32x256xbf16>
    %c0_13 = arith.constant 0 : index
    %c0_14 = arith.constant 0 : index
    %23 = vector.load %arg15[%c0_13, %c0_14] : memref<288x256xbf16, #tpu.memory_space<vmem>>, vector<32x256xbf16>
    tpu.vector_store %arg15[%c0_13, %c0_14], %22 {strides = array<i32>} : memref<288x256xbf16, #tpu.memory_space<vmem>>, vector<32x256xbf16>,
    %c16_i32 = arith.constant 16 : i32
    %24 = tpu.dynamic_rotate %13 by %c16_i32 dim 1 : vector<64x256xf32>, i32 -> vector<64x256xf32>
    %c1 = arith.constant 1 : index
    %c0_15 = arith.constant 0 : index
    %c0_16 = arith.constant 0 : index
    %25 = vector.load %arg12[%c1, %c0_15, %c0_16] : memref<9x1x256xf32, #tpu.memory_space<vmem>>, vector<1x1x256xf32>
    %26 = vector.shape_cast %25 : vector<1x1x256xf32> to vector<1x256xf32>
    %27 = vector.broadcast %26 : vector<1x256xf32> to vector<64x256xf32>
    %28 = arith.mulf %24, %27 : vector<64x256xf32>
    %29 = arith.truncf %28 : vector<64x256xf32> to vector<64x256xbf16>
    %30 = vector.extract_strided_slice %29 {offsets = [0, 0], sizes = [32, 256], strides = [1, 1]} : vector<64x256xbf16> to vector<32x256xbf16>
    %c32 = arith.constant 32 : index
    %c0_17 = arith.constant 0 : index
    %31 = vector.load %arg14[%c32, %c0_17] : memref<288x256xbf16, #tpu.memory_space<vmem>>, vector<32x256xbf16>
    tpu.vector_store %arg14[%c32, %c0_17], %30 {strides = array<i32>} : memref<288x256xbf16, #tpu.memory_space<vmem>>, vector<32x256xbf16>,
    %32 = vector.extract_strided_slice %29 {offsets = [32, 0], sizes = [32, 256], strides = [1, 1]} : vector<64x256xbf16> to vector<32x256xbf16>
    %c32_18 = arith.constant 32 : index
    %c0_19 = arith.constant 0 : index
    %33 = vector.load %arg15[%c32_18, %c0_19] : memref<288x256xbf16, #tpu.memory_space<vmem>>, vector<32x256xbf16>
    tpu.vector_store %arg15[%c32_18, %c0_19], %32 {strides = array<i32>} : memref<288x256xbf16, #tpu.memory_space<vmem>>, vector<32x256xbf16>,
    %c15_i32 = arith.constant 15 : i32
    %34 = tpu.dynamic_rotate %13 by %c15_i32 dim 1 : vector<64x256xf32>, i32 -> vector<64x256xf32>
    %c2 = arith.constant 2 : index
    %c0_20 = arith.constant 0 : index
    %c0_21 = arith.constant 0 : index
    %35 = vector.load %arg12[%c2, %c0_20, %c0_21] : memref<9x1x256xf32, #tpu.memory_space<vmem>>, vector<1x1x256xf32>
    %36 = vector.shape_cast %35 : vector<1x1x256xf32> to vector<1x256xf32>
    %37 = vector.broadcast %36 : vector<1x256xf32> to vector<64x256xf32>
    %38 = arith.mulf %34, %37 : vector<64x256xf32>
    %39 = arith.truncf %38 : vector<64x256xf32> to vector<64x256xbf16>
    %40 = vector.extract_strided_slice %39 {offsets = [0, 0], sizes = [32, 256], strides = [1, 1]} : vector<64x256xbf16> to vector<32x256xbf16>
    %c64 = arith.constant 64 : index
    %c0_22 = arith.constant 0 : index
    %41 = vector.load %arg14[%c64, %c0_22] : memref<288x256xbf16, #tpu.memory_space<vmem>>, vector<32x256xbf16>
    tpu.vector_store %arg14[%c64, %c0_22], %40 {strides = array<i32>} : memref<288x256xbf16, #tpu.memory_space<vmem>>, vector<32x256xbf16>,
    %42 = vector.extract_strided_slice %39 {offsets = [32, 0], sizes = [32, 256], strides = [1, 1]} : vector<64x256xbf16> to vector<32x256xbf16>
    %c64_23 = arith.constant 64 : index
    %c0_24 = arith.constant 0 : index
    %43 = vector.load %arg15[%c64_23, %c0_24] : memref<288x256xbf16, #tpu.memory_space<vmem>>, vector<32x256xbf16>
    tpu.vector_store %arg15[%c64_23, %c0_24], %42 {strides = array<i32>} : memref<288x256xbf16, #tpu.memory_space<vmem>>, vector<32x256xbf16>,
    %c1_i32 = arith.constant 1 : i32
    %44 = tpu.dynamic_rotate %13 by %c1_i32 dim 1 : vector<64x256xf32>, i32 -> vector<64x256xf32>
    %c3 = arith.constant 3 : index
    %c0_25 = arith.constant 0 : index
    %c0_26 = arith.constant 0 : index
    %45 = vector.load %arg12[%c3, %c0_25, %c0_26] : memref<9x1x256xf32, #tpu.memory_space<vmem>>, vector<1x1x256xf32>
    %46 = vector.shape_cast %45 : vector<1x1x256xf32> to vector<1x256xf32>
    %47 = vector.broadcast %46 : vector<1x256xf32> to vector<64x256xf32>
    %48 = arith.mulf %44, %47 : vector<64x256xf32>
    %49 = arith.truncf %48 : vector<64x256xf32> to vector<64x256xbf16>
    %50 = vector.extract_strided_slice %49 {offsets = [0, 0], sizes = [32, 256], strides = [1, 1]} : vector<64x256xbf16> to vector<32x256xbf16>
    %c96 = arith.constant 96 : index
    %c0_27 = arith.constant 0 : index
    %51 = vector.load %arg14[%c96, %c0_27] : memref<288x256xbf16, #tpu.memory_space<vmem>>, vector<32x256xbf16>
    tpu.vector_store %arg14[%c96, %c0_27], %50 {strides = array<i32>} : memref<288x256xbf16, #tpu.memory_space<vmem>>, vector<32x256xbf16>,
    %52 = vector.extract_strided_slice %49 {offsets = [32, 0], sizes = [32, 256], strides = [1, 1]} : vector<64x256xbf16> to vector<32x256xbf16>
    %c96_28 = arith.constant 96 : index
    %c0_29 = arith.constant 0 : index
    %53 = vector.load %arg15[%c96_28, %c0_29] : memref<288x256xbf16, #tpu.memory_space<vmem>>, vector<32x256xbf16>
    tpu.vector_store %arg15[%c96_28, %c0_29], %52 {strides = array<i32>} : memref<288x256xbf16, #tpu.memory_space<vmem>>, vector<32x256xbf16>,
    %c4 = arith.constant 4 : index
    %c0_30 = arith.constant 0 : index
    %c0_31 = arith.constant 0 : index
    %54 = vector.load %arg12[%c4, %c0_30, %c0_31] : memref<9x1x256xf32, #tpu.memory_space<vmem>>, vector<1x1x256xf32>
    %55 = vector.shape_cast %54 : vector<1x1x256xf32> to vector<1x256xf32>
    %56 = vector.broadcast %55 : vector<1x256xf32> to vector<64x256xf32>
    %57 = arith.mulf %13, %56 : vector<64x256xf32>
    %58 = arith.truncf %57 : vector<64x256xf32> to vector<64x256xbf16>
    %59 = vector.extract_strided_slice %58 {offsets = [0, 0], sizes = [32, 256], strides = [1, 1]} : vector<64x256xbf16> to vector<32x256xbf16>
    %c128 = arith.constant 128 : index
    %c0_32 = arith.constant 0 : index
    %60 = vector.load %arg14[%c128, %c0_32] : memref<288x256xbf16, #tpu.memory_space<vmem>>, vector<32x256xbf16>
    tpu.vector_store %arg14[%c128, %c0_32], %59 {strides = array<i32>} : memref<288x256xbf16, #tpu.memory_space<vmem>>, vector<32x256xbf16>,
    %61 = vector.extract_strided_slice %58 {offsets = [32, 0], sizes = [32, 256], strides = [1, 1]} : vector<64x256xbf16> to vector<32x256xbf16>
    %c128_33 = arith.constant 128 : index
    %c0_34 = arith.constant 0 : index
    %62 = vector.load %arg15[%c128_33, %c0_34] : memref<288x256xbf16, #tpu.memory_space<vmem>>, vector<32x256xbf16>
    tpu.vector_store %arg15[%c128_33, %c0_34], %61 {strides = array<i32>} : memref<288x256xbf16, #tpu.memory_space<vmem>>, vector<32x256xbf16>,
    %c255_i32 = arith.constant 255 : i32
    %63 = tpu.dynamic_rotate %13 by %c255_i32 dim 1 : vector<64x256xf32>, i32 -> vector<64x256xf32>
    %c5 = arith.constant 5 : index
    %c0_35 = arith.constant 0 : index
    %c0_36 = arith.constant 0 : index
    %64 = vector.load %arg12[%c5, %c0_35, %c0_36] : memref<9x1x256xf32, #tpu.memory_space<vmem>>, vector<1x1x256xf32>
    %65 = vector.shape_cast %64 : vector<1x1x256xf32> to vector<1x256xf32>
    %66 = vector.broadcast %65 : vector<1x256xf32> to vector<64x256xf32>
    %67 = arith.mulf %63, %66 : vector<64x256xf32>
    %68 = arith.truncf %67 : vector<64x256xf32> to vector<64x256xbf16>
    %69 = vector.extract_strided_slice %68 {offsets = [0, 0], sizes = [32, 256], strides = [1, 1]} : vector<64x256xbf16> to vector<32x256xbf16>
    %c160 = arith.constant 160 : index
    %c0_37 = arith.constant 0 : index
    %70 = vector.load %arg14[%c160, %c0_37] : memref<288x256xbf16, #tpu.memory_space<vmem>>, vector<32x256xbf16>
    tpu.vector_store %arg14[%c160, %c0_37], %69 {strides = array<i32>} : memref<288x256xbf16, #tpu.memory_space<vmem>>, vector<32x256xbf16>,
    %71 = vector.extract_strided_slice %68 {offsets = [32, 0], sizes = [32, 256], strides = [1, 1]} : vector<64x256xbf16> to vector<32x256xbf16>
    %c160_38 = arith.constant 160 : index
    %c0_39 = arith.constant 0 : index
    %72 = vector.load %arg15[%c160_38, %c0_39] : memref<288x256xbf16, #tpu.memory_space<vmem>>, vector<32x256xbf16>
    tpu.vector_store %arg15[%c160_38, %c0_39], %71 {strides = array<i32>} : memref<288x256xbf16, #tpu.memory_space<vmem>>, vector<32x256xbf16>,
    %c241_i32 = arith.constant 241 : i32
    %73 = tpu.dynamic_rotate %13 by %c241_i32 dim 1 : vector<64x256xf32>, i32 -> vector<64x256xf32>
    %c6 = arith.constant 6 : index
    %c0_40 = arith.constant 0 : index
    %c0_41 = arith.constant 0 : index
    %74 = vector.load %arg12[%c6, %c0_40, %c0_41] : memref<9x1x256xf32, #tpu.memory_space<vmem>>, vector<1x1x256xf32>
    %75 = vector.shape_cast %74 : vector<1x1x256xf32> to vector<1x256xf32>
    %76 = vector.broadcast %75 : vector<1x256xf32> to vector<64x256xf32>
    %77 = arith.mulf %73, %76 : vector<64x256xf32>
    %78 = arith.truncf %77 : vector<64x256xf32> to vector<64x256xbf16>
    %79 = vector.extract_strided_slice %78 {offsets = [0, 0], sizes = [32, 256], strides = [1, 1]} : vector<64x256xbf16> to vector<32x256xbf16>
    %c192 = arith.constant 192 : index
    %c0_42 = arith.constant 0 : index
    %80 = vector.load %arg14[%c192, %c0_42] : memref<288x256xbf16, #tpu.memory_space<vmem>>, vector<32x256xbf16>
    tpu.vector_store %arg14[%c192, %c0_42], %79 {strides = array<i32>} : memref<288x256xbf16, #tpu.memory_space<vmem>>, vector<32x256xbf16>,
    %81 = vector.extract_strided_slice %78 {offsets = [32, 0], sizes = [32, 256], strides = [1, 1]} : vector<64x256xbf16> to vector<32x256xbf16>
    %c192_43 = arith.constant 192 : index
    %c0_44 = arith.constant 0 : index
    %82 = vector.load %arg15[%c192_43, %c0_44] : memref<288x256xbf16, #tpu.memory_space<vmem>>, vector<32x256xbf16>
    tpu.vector_store %arg15[%c192_43, %c0_44], %81 {strides = array<i32>} : memref<288x256xbf16, #tpu.memory_space<vmem>>, vector<32x256xbf16>,
    %c240_i32 = arith.constant 240 : i32
    %83 = tpu.dynamic_rotate %13 by %c240_i32 dim 1 : vector<64x256xf32>, i32 -> vector<64x256xf32>
    %c7 = arith.constant 7 : index
    %c0_45 = arith.constant 0 : index
    %c0_46 = arith.constant 0 : index
    %84 = vector.load %arg12[%c7, %c0_45, %c0_46] : memref<9x1x256xf32, #tpu.memory_space<vmem>>, vector<1x1x256xf32>
    %85 = vector.shape_cast %84 : vector<1x1x256xf32> to vector<1x256xf32>
    %86 = vector.broadcast %85 : vector<1x256xf32> to vector<64x256xf32>
    %87 = arith.mulf %83, %86 : vector<64x256xf32>
    %88 = arith.truncf %87 : vector<64x256xf32> to vector<64x256xbf16>
    %89 = vector.extract_strided_slice %88 {offsets = [0, 0], sizes = [32, 256], strides = [1, 1]} : vector<64x256xbf16> to vector<32x256xbf16>
    %c224 = arith.constant 224 : index
    %c0_47 = arith.constant 0 : index
    %90 = vector.load %arg14[%c224, %c0_47] : memref<288x256xbf16, #tpu.memory_space<vmem>>, vector<32x256xbf16>
    tpu.vector_store %arg14[%c224, %c0_47], %89 {strides = array<i32>} : memref<288x256xbf16, #tpu.memory_space<vmem>>, vector<32x256xbf16>,
    %91 = vector.extract_strided_slice %88 {offsets = [32, 0], sizes = [32, 256], strides = [1, 1]} : vector<64x256xbf16> to vector<32x256xbf16>
    %c224_48 = arith.constant 224 : index
    %c0_49 = arith.constant 0 : index
    %92 = vector.load %arg15[%c224_48, %c0_49] : memref<288x256xbf16, #tpu.memory_space<vmem>>, vector<32x256xbf16>
    tpu.vector_store %arg15[%c224_48, %c0_49], %91 {strides = array<i32>} : memref<288x256xbf16, #tpu.memory_space<vmem>>, vector<32x256xbf16>,
    %c239_i32 = arith.constant 239 : i32
    %93 = tpu.dynamic_rotate %13 by %c239_i32 dim 1 : vector<64x256xf32>, i32 -> vector<64x256xf32>
    %c8 = arith.constant 8 : index
    %c0_50 = arith.constant 0 : index
    %c0_51 = arith.constant 0 : index
    %94 = vector.load %arg12[%c8, %c0_50, %c0_51] : memref<9x1x256xf32, #tpu.memory_space<vmem>>, vector<1x1x256xf32>
    %95 = vector.shape_cast %94 : vector<1x1x256xf32> to vector<1x256xf32>
    %96 = vector.broadcast %95 : vector<1x256xf32> to vector<64x256xf32>
    %97 = arith.mulf %93, %96 : vector<64x256xf32>
    %98 = arith.truncf %97 : vector<64x256xf32> to vector<64x256xbf16>
    %99 = vector.extract_strided_slice %98 {offsets = [0, 0], sizes = [32, 256], strides = [1, 1]} : vector<64x256xbf16> to vector<32x256xbf16>
    %c256 = arith.constant 256 : index
    %c0_52 = arith.constant 0 : index
    %100 = vector.load %arg14[%c256, %c0_52] : memref<288x256xbf16, #tpu.memory_space<vmem>>, vector<32x256xbf16>
    tpu.vector_store %arg14[%c256, %c0_52], %99 {strides = array<i32>} : memref<288x256xbf16, #tpu.memory_space<vmem>>, vector<32x256xbf16>,
    %101 = vector.extract_strided_slice %98 {offsets = [32, 0], sizes = [32, 256], strides = [1, 1]} : vector<64x256xbf16> to vector<32x256xbf16>
    %c256_53 = arith.constant 256 : index
    %c0_54 = arith.constant 0 : index
    %102 = vector.load %arg15[%c256_53, %c0_54] : memref<288x256xbf16, #tpu.memory_space<vmem>>, vector<32x256xbf16>
    tpu.vector_store %arg15[%c256_53, %c0_54], %101 {strides = array<i32>} : memref<288x256xbf16, #tpu.memory_space<vmem>>, vector<32x256xbf16>,
    %c0_55 = arith.constant 0 : index
    %c0_56 = arith.constant 0 : index
    %103 = vector.load %arg4[%c0_55, %c0_56] : memref<32x288xbf16, #tpu.memory_space<vmem>>, vector<32x288xbf16>
    %c0_57 = arith.constant 0 : index
    %c0_58 = arith.constant 0 : index
    %104 = vector.load %arg14[%c0_57, %c0_58] : memref<288x256xbf16, #tpu.memory_space<vmem>>, vector<288x256xbf16>
    %cst_59 = arith.constant dense<0.000000e+00> : vector<32x256xf32>
    %105 = tpu.matmul %103, %104, %cst_59 {dimension_numbers = #tpu.dot_dimension_numbers<[1], [0], [0], [1], [0, 0, 1, 1], [], []>} : vector<32x288xbf16>, vector<288x256xbf16>, vector<32x256xf32> -> vector<32x256xf32>
    %c0_60 = arith.constant 0 : index
    %c0_61 = arith.constant 0 : index
    %106 = vector.load %arg5[%c0_60, %c0_61] : memref<32x1xf32, #tpu.memory_space<vmem>>, vector<32x1xf32>
    %107 = vector.broadcast %106 : vector<32x1xf32> to vector<32x256xf32>
    %108 = arith.addf %105, %107 : vector<32x256xf32>
    %cst_62 = arith.constant 0.000000e+00 : f32
    %109 = vector.broadcast %cst_62 : f32 to vector<32x256xf32>
    %110 = arith.maximumf %108, %109 : vector<32x256xf32>
    %c0_63 = arith.constant 0 : index
    %c0_64 = arith.constant 0 : index
    %111 = vector.load %arg6[%c0_63, %c0_64] : memref<48x288xbf16, #tpu.memory_space<vmem>>, vector<48x288xbf16>
    %c0_65 = arith.constant 0 : index
    %c0_66 = arith.constant 0 : index
    %112 = vector.load %arg15[%c0_65, %c0_66] : memref<288x256xbf16, #tpu.memory_space<vmem>>, vector<288x256xbf16>
    %cst_67 = arith.constant dense<0.000000e+00> : vector<48x256xf32>
    %113 = tpu.matmul %111, %112, %cst_67 {dimension_numbers = #tpu.dot_dimension_numbers<[1], [0], [0], [1], [0, 0, 1, 1], [], []>} : vector<48x288xbf16>, vector<288x256xbf16>, vector<48x256xf32> -> vector<48x256xf32>
    %c0_68 = arith.constant 0 : index
    %c0_69 = arith.constant 0 : index
    %114 = vector.load %arg7[%c0_68, %c0_69] : memref<48x1xf32, #tpu.memory_space<vmem>>, vector<48x1xf32>
    %115 = vector.broadcast %114 : vector<48x1xf32> to vector<48x256xf32>
    %116 = arith.addf %113, %115 : vector<48x256xf32>
    %cst_70 = arith.constant 0.000000e+00 : f32
    %117 = vector.broadcast %cst_70 : f32 to vector<48x256xf32>
    %118 = arith.maximumf %116, %117 : vector<48x256xf32>
    %c17_i32_71 = arith.constant 17 : i32
    %119 = tpu.dynamic_rotate %118 by %c17_i32_71 dim 1 : vector<48x256xf32>, i32 -> vector<48x256xf32>
    %c0_72 = arith.constant 0 : index
    %c0_73 = arith.constant 0 : index
    %c0_74 = arith.constant 0 : index
    %120 = vector.load %arg12[%c0_72, %c0_73, %c0_74] : memref<9x1x256xf32, #tpu.memory_space<vmem>>, vector<1x1x256xf32>
    %121 = vector.shape_cast %120 : vector<1x1x256xf32> to vector<1x256xf32>
    %122 = vector.broadcast %121 : vector<1x256xf32> to vector<48x256xf32>
    %123 = arith.mulf %119, %122 : vector<48x256xf32>
    %124 = arith.truncf %123 : vector<48x256xf32> to vector<48x256xbf16>
    %c0_75 = arith.constant 0 : index
    %c0_76 = arith.constant 0 : index
    %125 = vector.load %arg16[%c0_75, %c0_76] : memref<432x256xbf16, #tpu.memory_space<vmem>>, vector<48x256xbf16>
    tpu.vector_store %arg16[%c0_75, %c0_76], %124 {strides = array<i32>} : memref<432x256xbf16, #tpu.memory_space<vmem>>, vector<48x256xbf16>,
    %c16_i32_77 = arith.constant 16 : i32
    %126 = tpu.dynamic_rotate %118 by %c16_i32_77 dim 1 : vector<48x256xf32>, i32 -> vector<48x256xf32>
    %c1_78 = arith.constant 1 : index
    %c0_79 = arith.constant 0 : index
    %c0_80 = arith.constant 0 : index
    %127 = vector.load %arg12[%c1_78, %c0_79, %c0_80] : memref<9x1x256xf32, #tpu.memory_space<vmem>>, vector<1x1x256xf32>
    %128 = vector.shape_cast %127 : vector<1x1x256xf32> to vector<1x256xf32>
    %129 = vector.broadcast %128 : vector<1x256xf32> to vector<48x256xf32>
    %130 = arith.mulf %126, %129 : vector<48x256xf32>
    %131 = arith.truncf %130 : vector<48x256xf32> to vector<48x256xbf16>
    %c48 = arith.constant 48 : index
    %c0_81 = arith.constant 0 : index
    %132 = vector.load %arg16[%c48, %c0_81] : memref<432x256xbf16, #tpu.memory_space<vmem>>, vector<48x256xbf16>
    tpu.vector_store %arg16[%c48, %c0_81], %131 {strides = array<i32>} : memref<432x256xbf16, #tpu.memory_space<vmem>>, vector<48x256xbf16>,
    %c15_i32_82 = arith.constant 15 : i32
    %133 = tpu.dynamic_rotate %118 by %c15_i32_82 dim 1 : vector<48x256xf32>, i32 -> vector<48x256xf32>
    %c2_83 = arith.constant 2 : index
    %c0_84 = arith.constant 0 : index
    %c0_85 = arith.constant 0 : index
    %134 = vector.load %arg12[%c2_83, %c0_84, %c0_85] : memref<9x1x256xf32, #tpu.memory_space<vmem>>, vector<1x1x256xf32>
    %135 = vector.shape_cast %134 : vector<1x1x256xf32> to vector<1x256xf32>
    %136 = vector.broadcast %135 : vector<1x256xf32> to vector<48x256xf32>
    %137 = arith.mulf %133, %136 : vector<48x256xf32>
    %138 = arith.truncf %137 : vector<48x256xf32> to vector<48x256xbf16>
    %c96_86 = arith.constant 96 : index
    %c0_87 = arith.constant 0 : index
    %139 = vector.load %arg16[%c96_86, %c0_87] : memref<432x256xbf16, #tpu.memory_space<vmem>>, vector<48x256xbf16>
    tpu.vector_store %arg16[%c96_86, %c0_87], %138 {strides = array<i32>} : memref<432x256xbf16, #tpu.memory_space<vmem>>, vector<48x256xbf16>,
    %c1_i32_88 = arith.constant 1 : i32
    %140 = tpu.dynamic_rotate %118 by %c1_i32_88 dim 1 : vector<48x256xf32>, i32 -> vector<48x256xf32>
    %c3_89 = arith.constant 3 : index
    %c0_90 = arith.constant 0 : index
    %c0_91 = arith.constant 0 : index
    %141 = vector.load %arg12[%c3_89, %c0_90, %c0_91] : memref<9x1x256xf32, #tpu.memory_space<vmem>>, vector<1x1x256xf32>
    %142 = vector.shape_cast %141 : vector<1x1x256xf32> to vector<1x256xf32>
    %143 = vector.broadcast %142 : vector<1x256xf32> to vector<48x256xf32>
    %144 = arith.mulf %140, %143 : vector<48x256xf32>
    %145 = arith.truncf %144 : vector<48x256xf32> to vector<48x256xbf16>
    %c144 = arith.constant 144 : index
    %c0_92 = arith.constant 0 : index
    %146 = vector.load %arg16[%c144, %c0_92] : memref<432x256xbf16, #tpu.memory_space<vmem>>, vector<48x256xbf16>
    tpu.vector_store %arg16[%c144, %c0_92], %145 {strides = array<i32>} : memref<432x256xbf16, #tpu.memory_space<vmem>>, vector<48x256xbf16>,
    %c4_93 = arith.constant 4 : index
    %c0_94 = arith.constant 0 : index
    %c0_95 = arith.constant 0 : index
    %147 = vector.load %arg12[%c4_93, %c0_94, %c0_95] : memref<9x1x256xf32, #tpu.memory_space<vmem>>, vector<1x1x256xf32>
    %148 = vector.shape_cast %147 : vector<1x1x256xf32> to vector<1x256xf32>
    %149 = vector.broadcast %148 : vector<1x256xf32> to vector<48x256xf32>
    %150 = arith.mulf %118, %149 : vector<48x256xf32>
    %151 = arith.truncf %150 : vector<48x256xf32> to vector<48x256xbf16>
    %c192_96 = arith.constant 192 : index
    %c0_97 = arith.constant 0 : index
    %152 = vector.load %arg16[%c192_96, %c0_97] : memref<432x256xbf16, #tpu.memory_space<vmem>>, vector<48x256xbf16>
    tpu.vector_store %arg16[%c192_96, %c0_97], %151 {strides = array<i32>} : memref<432x256xbf16, #tpu.memory_space<vmem>>, vector<48x256xbf16>,
    %c255_i32_98 = arith.constant 255 : i32
    %153 = tpu.dynamic_rotate %118 by %c255_i32_98 dim 1 : vector<48x256xf32>, i32 -> vector<48x256xf32>
    %c5_99 = arith.constant 5 : index
    %c0_100 = arith.constant 0 : index
    %c0_101 = arith.constant 0 : index
    %154 = vector.load %arg12[%c5_99, %c0_100, %c0_101] : memref<9x1x256xf32, #tpu.memory_space<vmem>>, vector<1x1x256xf32>
    %155 = vector.shape_cast %154 : vector<1x1x256xf32> to vector<1x256xf32>
    %156 = vector.broadcast %155 : vector<1x256xf32> to vector<48x256xf32>
    %157 = arith.mulf %153, %156 : vector<48x256xf32>
    %158 = arith.truncf %157 : vector<48x256xf32> to vector<48x256xbf16>
    %c240 = arith.constant 240 : index
    %c0_102 = arith.constant 0 : index
    %159 = vector.load %arg16[%c240, %c0_102] : memref<432x256xbf16, #tpu.memory_space<vmem>>, vector<48x256xbf16>
    tpu.vector_store %arg16[%c240, %c0_102], %158 {strides = array<i32>} : memref<432x256xbf16, #tpu.memory_space<vmem>>, vector<48x256xbf16>,
    %c241_i32_103 = arith.constant 241 : i32
    %160 = tpu.dynamic_rotate %118 by %c241_i32_103 dim 1 : vector<48x256xf32>, i32 -> vector<48x256xf32>
    %c6_104 = arith.constant 6 : index
    %c0_105 = arith.constant 0 : index
    %c0_106 = arith.constant 0 : index
    %161 = vector.load %arg12[%c6_104, %c0_105, %c0_106] : memref<9x1x256xf32, #tpu.memory_space<vmem>>, vector<1x1x256xf32>
    %162 = vector.shape_cast %161 : vector<1x1x256xf32> to vector<1x256xf32>
    %163 = vector.broadcast %162 : vector<1x256xf32> to vector<48x256xf32>
    %164 = arith.mulf %160, %163 : vector<48x256xf32>
    %165 = arith.truncf %164 : vector<48x256xf32> to vector<48x256xbf16>
    %c288 = arith.constant 288 : index
    %c0_107 = arith.constant 0 : index
    %166 = vector.load %arg16[%c288, %c0_107] : memref<432x256xbf16, #tpu.memory_space<vmem>>, vector<48x256xbf16>
    tpu.vector_store %arg16[%c288, %c0_107], %165 {strides = array<i32>} : memref<432x256xbf16, #tpu.memory_space<vmem>>, vector<48x256xbf16>,
    %c240_i32_108 = arith.constant 240 : i32
    %167 = tpu.dynamic_rotate %118 by %c240_i32_108 dim 1 : vector<48x256xf32>, i32 -> vector<48x256xf32>
    %c7_109 = arith.constant 7 : index
    %c0_110 = arith.constant 0 : index
    %c0_111 = arith.constant 0 : index
    %168 = vector.load %arg12[%c7_109, %c0_110, %c0_111] : memref<9x1x256xf32, #tpu.memory_space<vmem>>, vector<1x1x256xf32>
    %169 = vector.shape_cast %168 : vector<1x1x256xf32> to vector<1x256xf32>
    %170 = vector.broadcast %169 : vector<1x256xf32> to vector<48x256xf32>
    %171 = arith.mulf %167, %170 : vector<48x256xf32>
    %172 = arith.truncf %171 : vector<48x256xf32> to vector<48x256xbf16>
    %c336 = arith.constant 336 : index
    %c0_112 = arith.constant 0 : index
    %173 = vector.load %arg16[%c336, %c0_112] : memref<432x256xbf16, #tpu.memory_space<vmem>>, vector<48x256xbf16>
    tpu.vector_store %arg16[%c336, %c0_112], %172 {strides = array<i32>} : memref<432x256xbf16, #tpu.memory_space<vmem>>, vector<48x256xbf16>,
    %c239_i32_113 = arith.constant 239 : i32
    %174 = tpu.dynamic_rotate %118 by %c239_i32_113 dim 1 : vector<48x256xf32>, i32 -> vector<48x256xf32>
    %c8_114 = arith.constant 8 : index
    %c0_115 = arith.constant 0 : index
    %c0_116 = arith.constant 0 : index
    %175 = vector.load %arg12[%c8_114, %c0_115, %c0_116] : memref<9x1x256xf32, #tpu.memory_space<vmem>>, vector<1x1x256xf32>
    %176 = vector.shape_cast %175 : vector<1x1x256xf32> to vector<1x256xf32>
    %177 = vector.broadcast %176 : vector<1x256xf32> to vector<48x256xf32>
    %178 = arith.mulf %174, %177 : vector<48x256xf32>
    %179 = arith.truncf %178 : vector<48x256xf32> to vector<48x256xbf16>
    %c384 = arith.constant 384 : index
    %c0_117 = arith.constant 0 : index
    %180 = vector.load %arg16[%c384, %c0_117] : memref<432x256xbf16, #tpu.memory_space<vmem>>, vector<48x256xbf16>
    tpu.vector_store %arg16[%c384, %c0_117], %179 {strides = array<i32>} : memref<432x256xbf16, #tpu.memory_space<vmem>>, vector<48x256xbf16>,
    %c0_118 = arith.constant 0 : index
    %c0_119 = arith.constant 0 : index
    %181 = vector.load %arg8[%c0_118, %c0_119] : memref<64x432xbf16, #tpu.memory_space<vmem>>, vector<64x432xbf16>
    %c0_120 = arith.constant 0 : index
    %c0_121 = arith.constant 0 : index
    %182 = vector.load %arg16[%c0_120, %c0_121] : memref<432x256xbf16, #tpu.memory_space<vmem>>, vector<432x256xbf16>
    %cst_122 = arith.constant dense<0.000000e+00> : vector<64x256xf32>
    %183 = tpu.matmul %181, %182, %cst_122 {dimension_numbers = #tpu.dot_dimension_numbers<[1], [0], [0], [1], [0, 0, 1, 1], [], []>} : vector<64x432xbf16>, vector<432x256xbf16>, vector<64x256xf32> -> vector<64x256xf32>
    %c0_123 = arith.constant 0 : index
    %c0_124 = arith.constant 0 : index
    %184 = vector.load %arg9[%c0_123, %c0_124] : memref<64x1xf32, #tpu.memory_space<vmem>>, vector<64x1xf32>
    %185 = vector.broadcast %184 : vector<64x1xf32> to vector<64x256xf32>
    %186 = arith.addf %183, %185 : vector<64x256xf32>
    %cst_125 = arith.constant 0.000000e+00 : f32
    %187 = vector.broadcast %cst_125 : f32 to vector<64x256xf32>
    %188 = arith.maximumf %186, %187 : vector<64x256xf32>
    %189 = arith.truncf %12 : vector<32x256xf32> to vector<32x256xbf16>
    %c0_126 = arith.constant 0 : index
    %c0_127 = arith.constant 0 : index
    %190 = vector.load %arg17[%c0_126, %c0_127] : memref<128x256xbf16, #tpu.memory_space<vmem>>, vector<32x256xbf16>
    tpu.vector_store %arg17[%c0_126, %c0_127], %189 {strides = array<i32>} : memref<128x256xbf16, #tpu.memory_space<vmem>>, vector<32x256xbf16>,
    %191 = arith.truncf %110 : vector<32x256xf32> to vector<32x256xbf16>
    %c32_128 = arith.constant 32 : index
    %c0_129 = arith.constant 0 : index
    %192 = vector.load %arg17[%c32_128, %c0_129] : memref<128x256xbf16, #tpu.memory_space<vmem>>, vector<32x256xbf16>
    tpu.vector_store %arg17[%c32_128, %c0_129], %191 {strides = array<i32>} : memref<128x256xbf16, #tpu.memory_space<vmem>>, vector<32x256xbf16>,
    %193 = arith.truncf %188 : vector<64x256xf32> to vector<64x256xbf16>
    %c64_130 = arith.constant 64 : index
    %c0_131 = arith.constant 0 : index
    %194 = vector.load %arg17[%c64_130, %c0_131] : memref<128x256xbf16, #tpu.memory_space<vmem>>, vector<64x256xbf16>
    tpu.vector_store %arg17[%c64_130, %c0_131], %193 {strides = array<i32>} : memref<128x256xbf16, #tpu.memory_space<vmem>>, vector<64x256xbf16>,
    %c0_132 = arith.constant 0 : index
    %c0_133 = arith.constant 0 : index
    %195 = vector.load %arg10[%c0_132, %c0_133] : memref<384x128xbf16, #tpu.memory_space<vmem>>, vector<384x128xbf16>
    %c0_134 = arith.constant 0 : index
    %c0_135 = arith.constant 0 : index
    %196 = vector.load %arg17[%c0_134, %c0_135] : memref<128x256xbf16, #tpu.memory_space<vmem>>, vector<128x256xbf16>
    %cst_136 = arith.constant dense<0.000000e+00> : vector<384x256xf32>
    %197 = tpu.matmul %195, %196, %cst_136 {dimension_numbers = #tpu.dot_dimension_numbers<[1], [0], [0], [1], [0, 0, 1, 1], [], []>} : vector<384x128xbf16>, vector<128x256xbf16>, vector<384x256xf32> -> vector<384x256xf32>
    %c0_137 = arith.constant 0 : index
    %c0_138 = arith.constant 0 : index
    %198 = vector.load %arg11[%c0_137, %c0_138] : memref<384x1xf32, #tpu.memory_space<vmem>>, vector<384x1xf32>
    %199 = vector.broadcast %198 : vector<384x1xf32> to vector<384x256xf32>
    %200 = arith.addf %197, %199 : vector<384x256xf32>
    %cst_139 = arith.constant 0.000000e+00 : f32
    %201 = vector.broadcast %cst_139 : f32 to vector<384x256xf32>
    %202 = arith.maximumf %200, %201 : vector<384x256xf32>
    %cst_140 = arith.constant 5.000000e-01 : f32
    %203 = vector.broadcast %cst_140 : f32 to vector<384x256xf32>
    %204 = arith.mulf %203, %202 : vector<384x256xf32>
    %205 = arith.addf %3, %204 : vector<384x256xf32>
    %c0_141 = arith.constant 0 : index
    %c0_142 = arith.constant 0 : index
    %c0_143 = arith.constant 0 : index
    %206 = vector.load %arg13[%c0_141, %c0_142, %c0_143] : memref<1x384x256xf32, #tpu.memory_space<vmem>>, vector<1x384x256xf32>
    %207 = vector.shape_cast %206 : vector<1x384x256xf32> to vector<384x256xf32>
    %208 = vector.shape_cast %205 : vector<384x256xf32> to vector<1x384x256xf32>
    tpu.vector_store %arg13[%c0_141, %c0_142, %c0_143], %208 {strides = array<i32>} : memref<1x384x256xf32, #tpu.memory_space<vmem>>, vector<1x384x256xf32>,
    return
  }
  func.func @transform_0(%arg0: i32) -> (i32, i32, i32) {
    %c0_i32 = arith.constant 0 : i32
    %c0_i32_0 = arith.constant 0 : i32
    %c0_i32_1 = arith.constant 0 : i32
    return %arg0, %c0_i32, %c0_i32_0 : i32, i32, i32
  }
  func.func @transform_1(%arg0: i32) -> (i32, i32) {
    %c0_i32 = arith.constant 0 : i32
    %c0_i32_0 = arith.constant 0 : i32
    %c0_i32_1 = arith.constant 0 : i32
    return %c0_i32, %c0_i32_0 : i32, i32
  }
  func.func @transform_2(%arg0: i32) -> (i32, i32) {
    %c0_i32 = arith.constant 0 : i32
    %c0_i32_0 = arith.constant 0 : i32
    %c0_i32_1 = arith.constant 0 : i32
    return %c0_i32, %c0_i32_0 : i32, i32
  }
  func.func @transform_3(%arg0: i32) -> (i32, i32) {
    %c0_i32 = arith.constant 0 : i32
    %c0_i32_0 = arith.constant 0 : i32
    %c0_i32_1 = arith.constant 0 : i32
    return %c0_i32, %c0_i32_0 : i32, i32
  }
  func.func @transform_4(%arg0: i32) -> (i32, i32) {
    %c0_i32 = arith.constant 0 : i32
    %c0_i32_0 = arith.constant 0 : i32
    %c0_i32_1 = arith.constant 0 : i32
    return %c0_i32, %c0_i32_0 : i32, i32
  }
  func.func @transform_5(%arg0: i32) -> (i32, i32) {
    %c0_i32 = arith.constant 0 : i32
    %c0_i32_0 = arith.constant 0 : i32
    %c0_i32_1 = arith.constant 0 : i32
    return %c0_i32, %c0_i32_0 : i32, i32
  }
  func.func @transform_6(%arg0: i32) -> (i32, i32) {
    %c0_i32 = arith.constant 0 : i32
    %c0_i32_0 = arith.constant 0 : i32
    %c0_i32_1 = arith.constant 0 : i32
    return %c0_i32, %c0_i32_0 : i32, i32
  }
  func.func @transform_7(%arg0: i32) -> (i32, i32) {
    %c0_i32 = arith.constant 0 : i32
    %c0_i32_0 = arith.constant 0 : i32
    %c0_i32_1 = arith.constant 0 : i32
    return %c0_i32, %c0_i32_0 : i32, i32
  }
  func.func @transform_8(%arg0: i32) -> (i32, i32) {
    %c0_i32 = arith.constant 0 : i32
    %c0_i32_0 = arith.constant 0 : i32
    %c0_i32_1 = arith.constant 0 : i32
    return %c0_i32, %c0_i32_0 : i32, i32
  }
  func.func @transform_9(%arg0: i32) -> (i32, i32) {
    %c0_i32 = arith.constant 0 : i32
    %c0_i32_0 = arith.constant 0 : i32
    %c0_i32_1 = arith.constant 0 : i32
    return %c0_i32, %c0_i32_0 : i32, i32
  }
  func.func @transform_10(%arg0: i32) -> (i32, i32) {
    %c0_i32 = arith.constant 0 : i32
    %c0_i32_0 = arith.constant 0 : i32
    %c0_i32_1 = arith.constant 0 : i32
    return %c0_i32, %c0_i32_0 : i32, i32
  }
  func.func @transform_11(%arg0: i32) -> (i32, i32, i32) {
    %c0_i32 = arith.constant 0 : i32
    %c0_i32_0 = arith.constant 0 : i32
    %c0_i32_1 = arith.constant 0 : i32
    %c0_i32_2 = arith.constant 0 : i32
    return %c0_i32, %c0_i32_0, %c0_i32_1 : i32, i32, i32
  }
  func.func @transform_12(%arg0: i32) -> (i32, i32, i32) {
    %c0_i32 = arith.constant 0 : i32
    %c0_i32_0 = arith.constant 0 : i32
    %c0_i32_1 = arith.constant 0 : i32
    return %arg0, %c0_i32, %c0_i32_0 : i32, i32, i32
  }
}

</mosaic_0001>

<llo_original>
// kernel: tpu_custom_call.1
$region0: #{tpu_custom_call.1}
  #allocation0 [shape = 'u32[]', space=smem, size = 0x4, offset = 0x4, fixed_abs, tag = 'smem constant byte address 0x4 - core index']
  #allocation1 [shape = 'u32[72,128]{1,0:T(1,128)}', space=vmem, size = 0x9000, scoped, tag = 'internal scratch']
  #allocation2 [shape = 'bf16[288,256]{1,0:T(8,128)(2,1)}', space=vmem, size = 0x24000, scoped, tag = 'scratch operand']
  #allocation3 [shape = 'bf16[288,256]{1,0:T(8,128)(2,1)}', space=vmem, size = 0x24000, scoped, tag = 'scratch operand']
  #allocation4 [shape = 'bf16[432,256]{1,0:T(8,128)(2,1)}', space=vmem, size = 0x36000, scoped, tag = 'scratch operand']
  #allocation5 [shape = 'bf16[128,256]{1,0:T(8,128)(2,1)}', space=vmem, size = 0x10000, scoped, tag = 'scratch operand']
  %s0 = inlined_call_operand.hbm [shape: f32[4,384,256], index: 0, kind: input, shape index: {}]
  %s1 = inlined_call_operand.hbm [shape: bf16[96,384], index: 1, kind: input, shape index: {}]
  %s2 = inlined_call_operand.vmem [shape: f32[96,1], index: 2, kind: input, shape index: {}]
  %s3 = inlined_call_operand.hbm [shape: bf16[32,288], index: 3, kind: input, shape index: {}]
  %s4 = inlined_call_operand.vmem [shape: f32[32,1], index: 4, kind: input, shape index: {}]
  %s5 = inlined_call_operand.hbm [shape: bf16[48,288], index: 5, kind: input, shape index: {}]
  %s6 = inlined_call_operand.vmem [shape: f32[48,1], index: 6, kind: input, shape index: {}]
  %s7 = inlined_call_operand.hbm [shape: bf16[64,432], index: 7, kind: input, shape index: {}]
  %s8 = inlined_call_operand.vmem [shape: f32[64,1], index: 8, kind: input, shape index: {}]
  %s9 = inlined_call_operand.hbm [shape: bf16[384,128], index: 9, kind: input, shape index: {}]
  %s10 = inlined_call_operand.vmem [shape: f32[384,1], index: 10, kind: input, shape index: {}]
  %s11 = inlined_call_operand.hbm [shape: f32[9,1,256], index: 11, kind: input, shape index: {}]
  %s12 = inlined_call_operand.hbm [shape: f32[4,384,256], index: 12, kind: output, shape index: {}]
  %s13 = sld [smem:[#allocation0]]
  $region109: #{tpu_custom_call.1} parent=0
    _
  %s15 = ssub.s32 1, %s13
  %s16 = scalar_select 0, %s15, %s13
  $region1: #{tpu_custom_call.1} parent=0
    #allocation6 [shape = 'u8[786432]{0}', space=vmem, size = 0xc0000, scoped, tag = 'input window, operand 0']
    #allocation7 [shape = 's32[2]{0}', space=sflag, size = 0x8, scoped, tag = 'scoped memory for tpu_custom_call.1']
    #allocation8 [shape = 's32[2]{0}', space=sflag, size = 0x8, scoped, tag = 'scoped memory for tpu_custom_call.1']
    #allocation9 [shape = 'u8[73728]{0}', space=vmem, size = 0x12000, scoped, tag = 'input window, operand 1, single buffered']
    #allocation10 [shape = 's32[1]{0}', space=sflag, size = 0x4, scoped, tag = 'scoped memory for tpu_custom_call.1']
    #allocation11 [shape = 'u8[24576]{0}', space=vmem, size = 0x6000, scoped, tag = 'input window, operand 3, single buffered']
    #allocation12 [shape = 'u8[36864]{0}', space=vmem, size = 0x9000, scoped, tag = 'input window, operand 5, single buffered']
    #allocation13 [shape = 's32[1]{0}', space=sflag, size = 0x4, scoped, tag = 'scoped memory for tpu_custom_call.1']
    #allocation14 [shape = 'u8[65536]{0}', space=vmem, size = 0x10000, scoped, tag = 'input window, operand 7, single buffered']
    #allocation15 [shape = 'u8[98304]{0}', space=vmem, size = 0x18000, scoped, tag = 'input window, operand 9, single buffered']
    #allocation16 [shape = 's32[1]{0}', space=sflag, size = 0x4, scoped, tag = 'scoped memory for tpu_custom_call.1']
    #allocation17 [shape = 'u8[9216]{0}', space=vmem, size = 0x2400, scoped, tag = 'input window, operand 11, single buffered']
    #allocation18 [shape = 'u8[786432]{0}', space=vmem, size = 0xc0000, scoped, tag = 'output window, operand 0']
    %17 = vsyncpa [#allocation7], 0
    %s18 = scalar_lea.sflag [#allocation7], 1
    %19 = vsyncpa %s18, 0
    %20 = vsyncpa [#allocation10], 0
    %21 = vsyncpa [#allocation13], 0
    %22 = vsyncpa [#allocation16], 0
    %23 = vsyncpa [#allocation8], 0
    %s24 = scalar_lea.sflag [#allocation8], 1
    %25 = vsyncpa %s24, 0
    loop: start=0, step=1, limit=6
    $region2: #{tpu_custom_call.1} parent=1 // loop_pre_header
      _
    $region3: #{tpu_custom_call.1} parent=1 // loop_header
      %s27 = sphi 0, %s31
      %p28 = scmp.ge.s32.totalorder %s27, 6
      %s37 = sphi 0, %s39
      %s40 = sphi 0, %s37
      %s41 = sphi 0, %s40
      %s57 = sphi 0, %s41
      %s61 = sphi 0, %s61
      %s63 = sphi 0, %s61
      %s64 = sphi 0, %s63
      %s78 = sphi 0, %s64
      %s82 = sphi 0, %s82
      %s84 = sphi 0, %s82
      %s85 = sphi 0, %s84
      %s99 = sphi 0, %s85
      %s103 = sphi 0, %s103
      %s105 = sphi 0, %s103
      %s106 = sphi 0, %s105
      %s120 = sphi 0, %s106
      %s124 = sphi 0, %s124
      %s126 = sphi 0, %s124
      %s127 = sphi 0, %s126
      %s141 = sphi 0, %s127
      %s145 = sphi 0, %s145
      %s147 = sphi 0, %s145
      %s148 = sphi 0, %s147
      %s162 = sphi 0, %s148
      %s166 = sphi 0, %s166
      %s168 = sphi 0, %s166
      %s169 = sphi 0, %s168
      %s183 = sphi 0, %s169
      %s187 = sphi 0, %s187
      %s189 = sphi 0, %s187
      %s190 = sphi 0, %s189
      %s204 = sphi 0, %s190
      %s208 = sphi 0, %s208
      %s210 = sphi 0, %s208
      %s211 = sphi 0, %s210
      %s225 = sphi 0, %s211
      %s229 = sphi 0, %s229
      %s231 = sphi 0, %s229
      %s232 = sphi 0, %s231
      %s246 = sphi 0, %s232
      %s250 = sphi 0, %s250
      %s252 = sphi 0, %s250
      %s253 = sphi 0, %s252
      %s267 = sphi 0, %s253
      %s271 = sphi 0, %s271
      %s273 = sphi 0, %s271
      %s274 = sphi 0, %s273
      %s288 = sphi 0, %s274
      %s294 = sphi 0, %s296
      %s297 = sphi 0, %s294
      %s298 = sphi 0, %s297
      %s314 = sphi 0, %s298
    $region4: #{tpu_custom_call.1} parent=1 // loop_header_branch
      %30 = sbr.rel (%p28) target = $region8
    $region5: #{tpu_custom_call.1} parent=1 // loop_body
      %s32 = ssub.s32 %s27, 1
      %s33 = ssub.s32 %s27, 2
      %s34 = sadd.s32 %s27, 1
      %s35 = ssub.s32 %s27, %s34
      %p36 = scmp.eq.s32.totalorder %s35, 0
      %s38 = sadd.s32 %s37, 1
      %s39 = scalar_select %p36, %s37, %s38
      %p42 = pneg %p36
      %p43 = scmp.eq.s32.totalorder %s27, 3
      %p44 = por %p42, %p43
      %p45 = scmp.ne.s32.totalorder %s37, %s40
      %p46 = scmp.eq.s32.totalorder %s27, 0
      %p47 = por %p45, %p46
      %p48 = scmp.ne.s32.totalorder %s37, %s40
      %p49 = scmp.eq.s32.totalorder %s32, 3
      %p50 = por %p48, %p49
      %p51 = scmp.ne.s32.totalorder %s40, %s41
      %p52 = scmp.eq.s32.totalorder %s32, 0
      %p53 = por %p51, %p52
      %p54 = scmp.ne.s32.totalorder %s40, %s41
      %p55 = scmp.eq.s32.totalorder %s33, 3
      %p56 = por %p54, %p55
      %p58 = scmp.ne.s32.totalorder %s41, %s57
      %p59 = scmp.eq.s32.totalorder %s33, 0
      %p60 = por %p58, %p59
      %s62 = sadd.s32 %s61, 1
      %p65 = scmp.eq.s32.totalorder %s27, 3
      %p66 = scmp.ne.s32.totalorder %s61, %s63
      %p67 = scmp.eq.s32.totalorder %s27, 0
      %p68 = por %p66, %p67
      %p69 = scmp.ne.s32.totalorder %s61, %s63
      %p70 = scmp.eq.s32.totalorder %s32, 3
      %p71 = por %p69, %p70
      %p72 = scmp.ne.s32.totalorder %s63, %s64
      %p73 = scmp.eq.s32.totalorder %s32, 0
      %p74 = por %p72, %p73
      %p75 = scmp.ne.s32.totalorder %s63, %s64
      %p76 = scmp.eq.s32.totalorder %s33, 3
      %p77 = por %p75, %p76
      %p79 = scmp.ne.s32.totalorder %s64, %s78
      %p80 = scmp.eq.s32.totalorder %s33, 0
      %p81 = por %p79, %p80
      %s83 = sadd.s32 %s82, 1
      %p86 = scmp.eq.s32.totalorder %s27, 3
      %p87 = scmp.ne.s32.totalorder %s82, %s84
      %p88 = scmp.eq.s32.totalorder %s27, 0
      %p89 = por %p87, %p88
      %p90 = scmp.ne.s32.totalorder %s82, %s84
      %p91 = scmp.eq.s32.totalorder %s32, 3
      %p92 = por %p90, %p91
      %p93 = scmp.ne.s32.totalorder %s84, %s85
      %p94 = scmp.eq.s32.totalorder %s32, 0
      %p95 = por %p93, %p94
      %p96 = scmp.ne.s32.totalorder %s84, %s85
      %p97 = scmp.eq.s32.totalorder %s33, 3
      %p98 = por %p96, %p97
      %p100 = scmp.ne.s32.totalorder %s85, %s99
      %p101 = scmp.eq.s32.totalorder %s33, 0
      %p102 = por %p100, %p101
      %s104 = sadd.s32 %s103, 1
      %p107 = scmp.eq.s32.totalorder %s27, 3
      %p108 = scmp.ne.s32.totalorder %s103, %s105
      %p109 = scmp.eq.s32.totalorder %s27, 0
      %p110 = por %p108, %p109
      %p111 = scmp.ne.s32.totalorder %s103, %s105
      %p112 = scmp.eq.s32.totalorder %s32, 3
      %p113 = por %p111, %p112
      %p114 = scmp.ne.s32.totalorder %s105, %s106
      %p115 = scmp.eq.s32.totalorder %s32, 0
      %p116 = por %p114, %p115
      %p117 = scmp.ne.s32.totalorder %s105, %s106
      %p118 = scmp.eq.s32.totalorder %s33, 3
      %p119 = por %p117, %p118
      %p121 = scmp.ne.s32.totalorder %s106, %s120
      %p122 = scmp.eq.s32.totalorder %s33, 0
      %p123 = por %p121, %p122
      %s125 = sadd.s32 %s124, 1
      %p128 = scmp.eq.s32.totalorder %s27, 3
      %p129 = scmp.ne.s32.totalorder %s124, %s126
      %p130 = scmp.eq.s32.totalorder %s27, 0
      %p131 = por %p129, %p130
      %p132 = scmp.ne.s32.totalorder %s124, %s126
      %p133 = scmp.eq.s32.totalorder %s32, 3
      %p134 = por %p132, %p133
      %p135 = scmp.ne.s32.totalorder %s126, %s127
      %p136 = scmp.eq.s32.totalorder %s32, 0
      %p137 = por %p135, %p136
      %p138 = scmp.ne.s32.totalorder %s126, %s127
      %p139 = scmp.eq.s32.totalorder %s33, 3
      %p140 = por %p138, %p139
      %p142 = scmp.ne.s32.totalorder %s127, %s141
      %p143 = scmp.eq.s32.totalorder %s33, 0
      %p144 = por %p142, %p143
      %s146 = sadd.s32 %s145, 1
      %p149 = scmp.eq.s32.totalorder %s27, 3
      %p150 = scmp.ne.s32.totalorder %s145, %s147
      %p151 = scmp.eq.s32.totalorder %s27, 0
      %p152 = por %p150, %p151
      %p153 = scmp.ne.s32.totalorder %s145, %s147
      %p154 = scmp.eq.s32.totalorder %s32, 3
      %p155 = por %p153, %p154
      %p156 = scmp.ne.s32.totalorder %s147, %s148
      %p157 = scmp.eq.s32.totalorder %s32, 0
      %p158 = por %p156, %p157
      %p159 = scmp.ne.s32.totalorder %s147, %s148
      %p160 = scmp.eq.s32.totalorder %s33, 3
      %p161 = por %p159, %p160
      %p163 = scmp.ne.s32.totalorder %s148, %s162
      %p164 = scmp.eq.s32.totalorder %s33, 0
      %p165 = por %p163, %p164
      %s167 = sadd.s32 %s166, 1
      %p170 = scmp.eq.s32.totalorder %s27, 3
      %p171 = scmp.ne.s32.totalorder %s166, %s168
      %p172 = scmp.eq.s32.totalorder %s27, 0
      %p173 = por %p171, %p172
      %p174 = scmp.ne.s32.totalorder %s166, %s168
      %p175 = scmp.eq.s32.totalorder %s32, 3
      %p176 = por %p174, %p175
      %p177 = scmp.ne.s32.totalorder %s168, %s169
      %p178 = scmp.eq.s32.totalorder %s32, 0
      %p179 = por %p177, %p178
      %p180 = scmp.ne.s32.totalorder %s168, %s169
      %p181 = scmp.eq.s32.totalorder %s33, 3
      %p182 = por %p180, %p181
      %p184 = scmp.ne.s32.totalorder %s169, %s183
      %p185 = scmp.eq.s32.totalorder %s33, 0
      %p186 = por %p184, %p185
      %s188 = sadd.s32 %s187, 1
      %p191 = scmp.eq.s32.totalorder %s27, 3
      %p192 = scmp.ne.s32.totalorder %s187, %s189
      %p193 = scmp.eq.s32.totalorder %s27, 0
      %p194 = por %p192, %p193
      %p195 = scmp.ne.s32.totalorder %s187, %s189
      %p196 = scmp.eq.s32.totalorder %s32, 3
      %p197 = por %p195, %p196
      %p198 = scmp.ne.s32.totalorder %s189, %s190
      %p199 = scmp.eq.s32.totalorder %s32, 0
      %p200 = por %p198, %p199
      %p201 = scmp.ne.s32.totalorder %s189, %s190
      %p202 = scmp.eq.s32.totalorder %s33, 3
      %p203 = por %p201, %p202
      %p205 = scmp.ne.s32.totalorder %s190, %s204
      %p206 = scmp.eq.s32.totalorder %s33, 0
      %p207 = por %p205, %p206
      %s209 = sadd.s32 %s208, 1
      %p212 = scmp.eq.s32.totalorder %s27, 3
      %p213 = scmp.ne.s32.totalorder %s208, %s210
      %p214 = scmp.eq.s32.totalorder %s27, 0
      %p215 = por %p213, %p214
      %p216 = scmp.ne.s32.totalorder %s208, %s210
      %p217 = scmp.eq.s32.totalorder %s32, 3
      %p218 = por %p216, %p217
      %p219 = scmp.ne.s32.totalorder %s210, %s211
      %p220 = scmp.eq.s32.totalorder %s32, 0
      %p221 = por %p219, %p220
      %p222 = scmp.ne.s32.totalorder %s210, %s211
      %p223 = scmp.eq.s32.totalorder %s33, 3
      %p224 = por %p222, %p223
      %p226 = scmp.ne.s32.totalorder %s211, %s225
      %p227 = scmp.eq.s32.totalorder %s33, 0
      %p228 = por %p226, %p227
      %s230 = sadd.s32 %s229, 1
      %p233 = scmp.eq.s32.totalorder %s27, 3
      %p234 = scmp.ne.s32.totalorder %s229, %s231
      %p235 = scmp.eq.s32.totalorder %s27, 0
      %p236 = por %p234, %p235
      %p237 = scmp.ne.s32.totalorder %s229, %s231
      %p238 = scmp.eq.s32.totalorder %s32, 3
      %p239 = por %p237, %p238
      %p240 = scmp.ne.s32.totalorder %s231, %s232
      %p241 = scmp.eq.s32.totalorder %s32, 0
      %p242 = por %p240, %p241
      %p243 = scmp.ne.s32.totalorder %s231, %s232
      %p244 = scmp.eq.s32.totalorder %s33, 3
      %p245 = por %p243, %p244
      %p247 = scmp.ne.s32.totalorder %s232, %s246
      %p248 = scmp.eq.s32.totalorder %s33, 0
      %p249 = por %p247, %p248
      %s251 = sadd.s32 %s250, 1
      %p254 = scmp.eq.s32.totalorder %s27, 3
      %p255 = scmp.ne.s32.totalorder %s250, %s252
      %p256 = scmp.eq.s32.totalorder %s27, 0
      %p257 = por %p255, %p256
      %p258 = scmp.ne.s32.totalorder %s250, %s252
      %p259 = scmp.eq.s32.totalorder %s32, 3
      %p260 = por %p258, %p259
      %p261 = scmp.ne.s32.totalorder %s252, %s253
      %p262 = scmp.eq.s32.totalorder %s32, 0
      %p263 = por %p261, %p262
      %p264 = scmp.ne.s32.totalorder %s252, %s253
      %p265 = scmp.eq.s32.totalorder %s33, 3
      %p266 = por %p264, %p265
      %p268 = scmp.ne.s32.totalorder %s253, %s267
      %p269 = scmp.eq.s32.totalorder %s33, 0
      %p270 = por %p268, %p269
      %s272 = sadd.s32 %s271, 1
      %p275 = scmp.eq.s32.totalorder %s27, 3
      %p276 = scmp.ne.s32.totalorder %s271, %s273
      %p277 = scmp.eq.s32.totalorder %s27, 0
      %p278 = por %p276, %p277
      %p279 = scmp.ne.s32.totalorder %s271, %s273
      %p280 = scmp.eq.s32.totalorder %s32, 3
      %p281 = por %p279, %p280
      %p282 = scmp.ne.s32.totalorder %s273, %s274
      %p283 = scmp.eq.s32.totalorder %s32, 0
      %p284 = por %p282, %p283
      %p285 = scmp.ne.s32.totalorder %s273, %s274
      %p286 = scmp.eq.s32.totalorder %s33, 3
      %p287 = por %p285, %p286
      %p289 = scmp.ne.s32.totalorder %s274, %s288
      %p290 = scmp.eq.s32.totalorder %s33, 0
      %p291 = por %p289, %p290
      %s292 = ssub.s32 %s27, %s34
      %p293 = scmp.eq.s32.totalorder %s292, 0
      %s295 = sadd.s32 %s294, 1
      %s296 = scalar_select %p293, %s294, %s295
      %p299 = pneg %p293
      %p300 = scmp.eq.s32.totalorder %s27, 3
      %p301 = por %p299, %p300
      %p302 = scmp.ne.s32.totalorder %s294, %s297
      %p303 = scmp.eq.s32.totalorder %s27, 0
      %p304 = por %p302, %p303
      %p305 = scmp.ne.s32.totalorder %s294, %s297
      %p306 = scmp.eq.s32.totalorder %s32, 3
      %p307 = por %p305, %p306
      %p308 = scmp.ne.s32.totalorder %s297, %s298
      %p309 = scmp.eq.s32.totalorder %s32, 0
      %p310 = por %p308, %p309
      %p311 = scmp.ne.s32.totalorder %s297, %s298
      %p312 = scmp.eq.s32.totalorder %s33, 3
      %p313 = por %p311, %p312
      %p315 = scmp.ne.s32.totalorder %s298, %s314
      %p316 = scmp.eq.s32.totalorder %s33, 0
      %p317 = por %p315, %p316
      %p318 = scmp.le.s32.totalorder 1, %s27
      %p319 = scmp.lt.s32.totalorder %s27, 5
      %p320 = pnand %p318, %p319
      %p321 = pneg %p320
      // Predicated region
      $region9: #{tpu_custom_call.1} parent=5 // pred_check
        _
      $region10: #{tpu_custom_call.1} parent=5 // pred_check_branch
        %323 = sbr.rel (%p320) target = $region12
      $region11: #{tpu_custom_call.1} parent=5 // pred_region
        %s324 = ssub.s32 %s27, 1
        // Predicated region
        $region13: #{tpu_custom_call.1} parent=11 // pred_check
          %p325 = pneg %p74
        $region14: #{tpu_custom_call.1} parent=11 // pred_check_branch
          %327 = sbr.rel (%p325) target = $region16
        $region15: #{tpu_custom_call.1} parent=11 // pred_region
          %329 = vsyncadd [#allocation10], 0
          %s330 = sshll.u32 %s1, 4
          %s331 = int_to_ptr.hbm [resolvable:$true] %s330
          %s332 = sshll.u32 [#allocation9], 4
          %s333 = int_to_ptr.vmem [resolvable:$true] %s332
          %338 = dma.hbm_to_vmem [thread:$0]  %s331, 2304, %s333, [#allocation10], 192, 192, 12
        $region16: #{tpu_custom_call.1} parent=11 // pred_fallthru
          _
        // Predicated region
        $region17: #{tpu_custom_call.1} parent=11 // pred_check
          %p339 = pneg %p95
        $region18: #{tpu_custom_call.1} parent=11 // pred_check_branch
          %341 = sbr.rel (%p339) target = $region20
        $region19: #{tpu_custom_call.1} parent=11 // pred_region
          _
        $region20: #{tpu_custom_call.1} parent=11 // pred_fallthru
          _
        // Predicated region
        $region21: #{tpu_custom_call.1} parent=11 // pred_check
          %p342 = pneg %p116
        $region22: #{tpu_custom_call.1} parent=11 // pred_check_branch
          %344 = sbr.rel (%p342) target = $region24
        $region23: #{tpu_custom_call.1} parent=11 // pred_region
          %346 = vsyncadd [#allocation10], 0
          %s347 = sshll.u32 %s3, 4
          %s348 = int_to_ptr.hbm [resolvable:$true] %s347
          %s349 = sshll.u32 [#allocation11], 4
          %s350 = int_to_ptr.vmem [resolvable:$true] %s349
          %355 = dma.hbm_to_vmem [thread:$0]  %s348, 768, %s350, [#allocation10], 192, 192, 12
        $region24: #{tpu_custom_call.1} parent=11 // pred_fallthru
          _
        // Predicated region
        $region25: #{tpu_custom_call.1} parent=11 // pred_check
          %p356 = pneg %p137
        $region26: #{tpu_custom_call.1} parent=11 // pred_check_branch
          %358 = sbr.rel (%p356) target = $region28
        $region27: #{tpu_custom_call.1} parent=11 // pred_region
          _
        $region28: #{tpu_custom_call.1} parent=11 // pred_fallthru
          _
        // Predicated region
        $region29: #{tpu_custom_call.1} parent=11 // pred_check
          %p359 = pneg %p158
        $region30: #{tpu_custom_call.1} parent=11 // pred_check_branch
          %361 = sbr.rel (%p359) target = $region32
        $region31: #{tpu_custom_call.1} parent=11 // pred_region
          %363 = vsyncadd [#allocation13], 0
          %s364 = sshll.u32 %s5, 4
          %s365 = int_to_ptr.hbm [resolvable:$true] %s364
          %s366 = sshll.u32 [#allocation12], 4
          %s367 = int_to_ptr.vmem [resolvable:$true] %s366
          %372 = dma.hbm_to_vmem [thread:$0]  %s365, 1152, %s367, [#allocation13], 192, 192, 12
        $region32: #{tpu_custom_call.1} parent=11 // pred_fallthru
          _
        // Predicated region
        $region33: #{tpu_custom_call.1} parent=11 // pred_check
          %p373 = pneg %p179
        $region34: #{tpu_custom_call.1} parent=11 // pred_check_branch
          %375 = sbr.rel (%p373) target = $region36
        $region35: #{tpu_custom_call.1} parent=11 // pred_region
          _
        $region36: #{tpu_custom_call.1} parent=11 // pred_fallthru
          _
        // Predicated region
        $region37: #{tpu_custom_call.1} parent=11 // pred_check
          %p376 = pneg %p200
        $region38: #{tpu_custom_call.1} parent=11 // pred_check_branch
          %378 = sbr.rel (%p376) target = $region40
        $region39: #{tpu_custom_call.1} parent=11 // pred_region
          %380 = vsyncadd [#allocation13], 0
          %s381 = sshll.u32 %s7, 4
          %s382 = int_to_ptr.hbm [resolvable:$true] %s381
          %s383 = sshll.u32 [#allocation14], 4
          %s384 = int_to_ptr.vmem [resolvable:$true] %s383
          %389 = dma.hbm_to_vmem [thread:$0]  %s382, 2048, %s384, [#allocation13], 256, 256, 16
        $region40: #{tpu_custom_call.1} parent=11 // pred_fallthru
          _
        // Predicated region
        $region41: #{tpu_custom_call.1} parent=11 // pred_check
          %p390 = pneg %p221
        $region42: #{tpu_custom_call.1} parent=11 // pred_check_branch
          %392 = sbr.rel (%p390) target = $region44
        $region43: #{tpu_custom_call.1} parent=11 // pred_region
          _
        $region44: #{tpu_custom_call.1} parent=11 // pred_fallthru
          _
        // Predicated region
        $region45: #{tpu_custom_call.1} parent=11 // pred_check
          %p393 = pneg %p242
        $region46: #{tpu_custom_call.1} parent=11 // pred_check_branch
          %395 = sbr.rel (%p393) target = $region48
        $region47: #{tpu_custom_call.1} parent=11 // pred_region
          %397 = vsyncadd [#allocation16], 0
          %s398 = sshll.u32 %s9, 4
          %s399 = int_to_ptr.hbm [resolvable:$true] %s398
          %s400 = sshll.u32 [#allocation15], 4
          %s401 = int_to_ptr.vmem [resolvable:$true] %s400
          %406 = dma.hbm_to_vmem [thread:$0]  %s399, 3072, %s401, [#allocation16], 64, 64, 4
        $region48: #{tpu_custom_call.1} parent=11 // pred_fallthru
          _
        // Predicated region
        $region49: #{tpu_custom_call.1} parent=11 // pred_check
          %p407 = pneg %p263
        $region50: #{tpu_custom_call.1} parent=11 // pred_check_branch
          %409 = sbr.rel (%p407) target = $region52
        $region51: #{tpu_custom_call.1} parent=11 // pred_region
          _
        $region52: #{tpu_custom_call.1} parent=11 // pred_fallthru
          _
        // Predicated region
        $region53: #{tpu_custom_call.1} parent=11 // pred_check
          %p410 = pneg %p284
        $region54: #{tpu_custom_call.1} parent=11 // pred_check_branch
          %412 = sbr.rel (%p410) target = $region56
        $region55: #{tpu_custom_call.1} parent=11 // pred_region
          %414 = vsyncadd [#allocation16], 0
          %s415 = sshll.u32 %s11, 4
          %s416 = int_to_ptr.hbm [resolvable:$true] %s415
          %s417 = sshll.u32 [#allocation17], 4
          %s418 = int_to_ptr.vmem [resolvable:$true] %s417
          %423 = dma.hbm_to_vmem [thread:$0]  %s416, 288, %s418, [#allocation16], 32, 32, 2
        $region56: #{tpu_custom_call.1} parent=11 // pred_fallthru
          _
      $region12: #{tpu_custom_call.1} parent=5 // pred_fallthru
        _
      %p424 = scmp.lt.s32.totalorder %s27, 4
      // Predicated region
      $region57: #{tpu_custom_call.1} parent=5 // pred_check
        %p425 = pneg %p424
      $region58: #{tpu_custom_call.1} parent=5 // pred_check_branch
        %427 = sbr.rel (%p425) target = $region60
      $region59: #{tpu_custom_call.1} parent=5 // pred_region
        // Predicated region
        $region61: #{tpu_custom_call.1} parent=59 // pred_check
          %p428 = pneg %p47
        $region62: #{tpu_custom_call.1} parent=59 // pred_check_branch
          %430 = sbr.rel (%p428) target = $region64
        $region63: #{tpu_custom_call.1} parent=59 // pred_region
          %s431 = sand.u32 %s37, 1
          %s432 = scalar_lea.sflag [#allocation7], %s431
          %s433 = sand.u32 %s37, 1
          %s434 = smul.addr %s433, 768
          %s435 = scalar_lea.vmem [#allocation6], %s434
          %437 = vsyncadd %s432, 0
          %s438 = smul.addr %s27, 96
          %s439 = smul.addr %s438, 8
          %s440 = scalar_lea.hbm %s0, %s439
          %s441 = sshll.u32 %s440, 4
          %s442 = int_to_ptr.hbm [resolvable:$true] %s441
          %s443 = sshll.u32 %s435, 4
          %s444 = int_to_ptr.vmem [resolvable:$true] %s443
          %449 = dma.hbm_to_vmem [thread:$0]  %s442, 12288, %s444, %s432, 256, 256, 16
        $region64: #{tpu_custom_call.1} parent=59 // pred_fallthru
          _
      $region60: #{tpu_custom_call.1} parent=5 // pred_fallthru
        _
      %p450 = scmp.le.s32.totalorder 1, %s27
      %p451 = scmp.lt.s32.totalorder %s27, 5
      %p452 = pnand %p450, %p451
      %p453 = pneg %p452
      // Predicated region
      $region65: #{tpu_custom_call.1} parent=5 // pred_check
        _
      $region66: #{tpu_custom_call.1} parent=5 // pred_check_branch
        %455 = sbr.rel (%p452) target = $region68
      $region67: #{tpu_custom_call.1} parent=5 // pred_region
        %s456 = ssub.s32 %s27, 1
        %s457 = sand.u32 %s40, 1
        %s458 = scalar_lea.sflag [#allocation7], %s457
        %s459 = sand.u32 %s40, 1
        %s460 = smul.addr %s459, 768
        %s461 = scalar_lea.vmem [#allocation6], %s460
        // Predicated region
        $region69: #{tpu_custom_call.1} parent=67 // pred_check
          %p462 = pneg %p53
        $region70: #{tpu_custom_call.1} parent=67 // pred_check_branch
          %464 = sbr.rel (%p462) target = $region72
        $region71: #{tpu_custom_call.1} parent=67 // pred_region
          %466 = dma.done %s458, 12288
        $region72: #{tpu_custom_call.1} parent=67 // pred_fallthru
          _
        // Predicated region
        $region73: #{tpu_custom_call.1} parent=67 // pred_check
          %p467 = pneg %p74
        $region74: #{tpu_custom_call.1} parent=67 // pred_check_branch
          %469 = sbr.rel (%p467) target = $region76
        $region75: #{tpu_custom_call.1} parent=67 // pred_region
          %471 = dma.done [#allocation10], 2304
        $region76: #{tpu_custom_call.1} parent=67 // pred_fallthru
          _
        // Predicated region
        $region77: #{tpu_custom_call.1} parent=67 // pred_check
          %p472 = pneg %p116
        $region78: #{tpu_custom_call.1} parent=67 // pred_check_branch
          %474 = sbr.rel (%p472) target = $region80
        $region79: #{tpu_custom_call.1} parent=67 // pred_region
          %476 = dma.done [#allocation10], 768
        $region80: #{tpu_custom_call.1} parent=67 // pred_fallthru
          _
        // Predicated region
        $region81: #{tpu_custom_call.1} parent=67 // pred_check
          %p477 = pneg %p158
        $region82: #{tpu_custom_call.1} parent=67 // pred_check_branch
          %479 = sbr.rel (%p477) target = $region84
        $region83: #{tpu_custom_call.1} parent=67 // pred_region
          %481 = dma.done [#allocation13], 1152
        $region84: #{tpu_custom_call.1} parent=67 // pred_fallthru
          _
        // Predicated region
        $region85: #{tpu_custom_call.1} parent=67 // pred_check
          %p482 = pneg %p200
        $region86: #{tpu_custom_call.1} parent=67 // pred_check_branch
          %484 = sbr.rel (%p482) target = $region88
        $region87: #{tpu_custom_call.1} parent=67 // pred_region
          %486 = dma.done [#allocation13], 2048
        $region88: #{tpu_custom_call.1} parent=67 // pred_fallthru
          _
        // Predicated region
        $region89: #{tpu_custom_call.1} parent=67 // pred_check
          %p487 = pneg %p242
        $region90: #{tpu_custom_call.1} parent=67 // pred_check_branch
          %489 = sbr.rel (%p487) target = $region92
        $region91: #{tpu_custom_call.1} parent=67 // pred_region
          %491 = dma.done [#allocation16], 3072
        $region92: #{tpu_custom_call.1} parent=67 // pred_fallthru
          _
        // Predicated region
        $region93: #{tpu_custom_call.1} parent=67 // pred_check
          %p492 = pneg %p284
        $region94: #{tpu_custom_call.1} parent=67 // pred_check_branch
          %494 = sbr.rel (%p492) target = $region96
        $region95: #{tpu_custom_call.1} parent=67 // pred_region
          %496 = dma.done [#allocation16], 288
        $region96: #{tpu_custom_call.1} parent=67 // pred_fallthru
          _
        %s497 = sand.u32 %s40, 1
        %s498 = scalar_lea.sflag [#allocation7], %s497
        %s499 = sand.u32 %s40, 1
        %s500 = smul.addr %s499, 768
        %s501 = scalar_lea.vmem [#allocation6], %s500
        %p502 = pneg %p53
        %p503 = pneg %p50
        %p504 = pneg %p74
        %p505 = pneg %p71
        %p506 = pneg %p95
        %p507 = pneg %p92
        %p508 = pneg %p116
        %p509 = pneg %p113
        %p510 = pneg %p137
        %p511 = pneg %p134
        %p512 = pneg %p158
        %p513 = pneg %p155
        %p514 = pneg %p179
        %p515 = pneg %p176
        %p516 = pneg %p200
        %p517 = pneg %p197
        %p518 = pneg %p221
        %p519 = pneg %p218
        %p520 = pneg %p242
        %p521 = pneg %p239
        %p522 = pneg %p263
        %p523 = pneg %p260
        %p524 = pneg %p284
        %p525 = pneg %p281
        %p526 = pneg %p310
        %p527 = pneg %p307
        %s528 = sand.u32 %s297, 1
        %s529 = scalar_lea.sflag [#allocation8], %s528
        %s530 = sand.u32 %s297, 1
        %s531 = smul.addr %s530, 768
        %s532 = scalar_lea.vmem [#allocation18], %s531
        %v534 = vld [vmem:[%s461] sm:$0xff]
        %v535 = vld [vmem:[%s461 + $0x8] sm:$0xff]
        %v536 = vld [vmem:[%s461 + $0x10] sm:$0xff]
        %v537 = vld [vmem:[%s461 + $0x18] sm:$0xff]
        %v538 = vld [vmem:[%s461 + $0x20] sm:$0xff]
        %v539 = vld [vmem:[%s461 + $0x28] sm:$0xff]
        %v540 = vld [vmem:[%s461 + $0x30] sm:$0xff]
        %v541 = vld [vmem:[%s461 + $0x38] sm:$0xff]
        %v542 = vld [vmem:[%s461 + $0x40] sm:$0xff]
        %v543 = vld [vmem:[%s461 + $0x48] sm:$0xff]
        %v544 = vld [vmem:[%s461 + $0x50] sm:$0xff]
        %v545 = vld [vmem:[%s461 + $0x58] sm:$0xff]
        %v546 = vld [vmem:[%s461 + $0x60] sm:$0xff]
        %v547 = vld [vmem:[%s461 + $0x68] sm:$0xff]
        %v548 = vld [vmem:[%s461 + $0x70] sm:$0xff]
        %v549 = vld [vmem:[%s461 + $0x78] sm:$0xff]
        %v550 = vld [vmem:[%s461 + $0x80] sm:$0xff]
        %v551 = vld [vmem:[%s461 + $0x88] sm:$0xff]
        %v552 = vld [vmem:[%s461 + $0x90] sm:$0xff]
        %v553 = vld [vmem:[%s461 + $0x98] sm:$0xff]
        %v554 = vld [vmem:[%s461 + $0xa0] sm:$0xff]
        %v555 = vld [vmem:[%s461 + $0xa8] sm:$0xff]
        %v556 = vld [vmem:[%s461 + $0xb0] sm:$0xff]
        %v557 = vld [vmem:[%s461 + $0xb8] sm:$0xff]
        %v558 = vld [vmem:[%s461 + $0xc0] sm:$0xff]
        %v559 = vld [vmem:[%s461 + $0xc8] sm:$0xff]
        %v560 = vld [vmem:[%s461 + $0xd0] sm:$0xff]
        %v561 = vld [vmem:[%s461 + $0xd8] sm:$0xff]
        %v562 = vld [vmem:[%s461 + $0xe0] sm:$0xff]
        %v563 = vld [vmem:[%s461 + $0xe8] sm:$0xff]
        %v564 = vld [vmem:[%s461 + $0xf0] sm:$0xff]
        %v565 = vld [vmem:[%s461 + $0xf8] sm:$0xff]
        %v566 = vld [vmem:[%s461 + $0x100] sm:$0xff]
        %v567 = vld [vmem:[%s461 + $0x108] sm:$0xff]
        %v568 = vld [vmem:[%s461 + $0x110] sm:$0xff]
        %v569 = vld [vmem:[%s461 + $0x118] sm:$0xff]
        %v570 = vld [vmem:[%s461 + $0x120] sm:$0xff]
        %v571 = vld [vmem:[%s461 + $0x128] sm:$0xff]
        %v572 = vld [vmem:[%s461 + $0x130] sm:$0xff]
        %v573 = vld [vmem:[%s461 + $0x138] sm:$0xff]
        %v574 = vld [vmem:[%s461 + $0x140] sm:$0xff]
        %v575 = vld [vmem:[%s461 + $0x148] sm:$0xff]
        %v576 = vld [vmem:[%s461 + $0x150] sm:$0xff]
        %v577 = vld [vmem:[%s461 + $0x158] sm:$0xff]
        %v578 = vld [vmem:[%s461 + $0x160] sm:$0xff]
        %v579 = vld [vmem:[%s461 + $0x168] sm:$0xff]
        %v580 = vld [vmem:[%s461 + $0x170] sm:$0xff]
        %v581 = vld [vmem:[%s461 + $0x178] sm:$0xff]
        %v582 = vld [vmem:[%s461 + $0x180] sm:$0xff]
        %v583 = vld [vmem:[%s461 + $0x188] sm:$0xff]
        %v584 = vld [vmem:[%s461 + $0x190] sm:$0xff]
        %v585 = vld [vmem:[%s461 + $0x198] sm:$0xff]
        %v586 = vld [vmem:[%s461 + $0x1a0] sm:$0xff]
        %v587 = vld [vmem:[%s461 + $0x1a8] sm:$0xff]
        %v588 = vld [vmem:[%s461 + $0x1b0] sm:$0xff]
        %v589 = vld [vmem:[%s461 + $0x1b8] sm:$0xff]
        %v590 = vld [vmem:[%s461 + $0x1c0] sm:$0xff]
        %v591 = vld [vmem:[%s461 + $0x1c8] sm:$0xff]
        %v592 = vld [vmem:[%s461 + $0x1d0] sm:$0xff]
        %v593 = vld [vmem:[%s461 + $0x1d8] sm:$0xff]
        %v594 = vld [vmem:[%s461 + $0x1e0] sm:$0xff]
        %v595 = vld [vmem:[%s461 + $0x1e8] sm:$0xff]
        %v596 = vld [vmem:[%s461 + $0x1f0] sm:$0xff]
        %v597 = vld [vmem:[%s461 + $0x1f8] sm:$0xff]
        %v598 = vld [vmem:[%s461 + $0x200] sm:$0xff]
        %v599 = vld [vmem:[%s461 + $0x208] sm:$0xff]
        %v600 = vld [vmem:[%s461 + $0x210] sm:$0xff]
        %v601 = vld [vmem:[%s461 + $0x218] sm:$0xff]
        %v602 = vld [vmem:[%s461 + $0x220] sm:$0xff]
        %v603 = vld [vmem:[%s461 + $0x228] sm:$0xff]
        %v604 = vld [vmem:[%s461 + $0x230] sm:$0xff]
        %v605 = vld [vmem:[%s461 + $0x238] sm:$0xff]
        %v606 = vld [vmem:[%s461 + $0x240] sm:$0xff]
        %v607 = vld [vmem:[%s461 + $0x248] sm:$0xff]
        %v608 = vld [vmem:[%s461 + $0x250] sm:$0xff]
        %v609 = vld [vmem:[%s461 + $0x258] sm:$0xff]
        %v610 = vld [vmem:[%s461 + $0x260] sm:$0xff]
        %v611 = vld [vmem:[%s461 + $0x268] sm:$0xff]
        %v612 = vld [vmem:[%s461 + $0x270] sm:$0xff]
        %v613 = vld [vmem:[%s461 + $0x278] sm:$0xff]
        %v614 = vld [vmem:[%s461 + $0x280] sm:$0xff]
        %v615 = vld [vmem:[%s461 + $0x288] sm:$0xff]
        %v616 = vld [vmem:[%s461 + $0x290] sm:$0xff]
        %v617 = vld [vmem:[%s461 + $0x298] sm:$0xff]
        %v618 = vld [vmem:[%s461 + $0x2a0] sm:$0xff]
        %v619 = vld [vmem:[%s461 + $0x2a8] sm:$0xff]
        %v620 = vld [vmem:[%s461 + $0x2b0] sm:$0xff]
        %v621 = vld [vmem:[%s461 + $0x2b8] sm:$0xff]
        %v622 = vld [vmem:[%s461 + $0x2c0] sm:$0xff]
        %v623 = vld [vmem:[%s461 + $0x2c8] sm:$0xff]
        %v624 = vld [vmem:[%s461 + $0x2d0] sm:$0xff]
        %v625 = vld [vmem:[%s461 + $0x2d8] sm:$0xff]
        %v626 = vld [vmem:[%s461 + $0x2e0] sm:$0xff]
        %v627 = vld [vmem:[%s461 + $0x2e8] sm:$0xff]
        %v628 = vld [vmem:[%s461 + $0x2f0] sm:$0xff]
        %v629 = vld [vmem:[%s461 + $0x2f8] sm:$0xff]
        %v630 = vmax.f32 %v534, 0.0
        %v631 = vmax.f32 %v535, 0.0
        %v632 = vmax.f32 %v536, 0.0
        %v633 = vmax.f32 %v537, 0.0
        %v634 = vmax.f32 %v538, 0.0
        %v635 = vmax.f32 %v539, 0.0
        %v636 = vmax.f32 %v540, 0.0
        %v637 = vmax.f32 %v541, 0.0
        %v638 = vmax.f32 %v542, 0.0
        %v639 = vmax.f32 %v543, 0.0
        %v640 = vmax.f32 %v544, 0.0
        %v641 = vmax.f32 %v545, 0.0
        %v642 = vmax.f32 %v546, 0.0
        %v643 = vmax.f32 %v547, 0.0
        %v644 = vmax.f32 %v548, 0.0
        %v645 = vmax.f32 %v549, 0.0
        %v646 = vmax.f32 %v550, 0.0
        %v647 = vmax.f32 %v551, 0.0
        %v648 = vmax.f32 %v552, 0.0
        %v649 = vmax.f32 %v553, 0.0
        %v650 = vmax.f32 %v554, 0.0
        %v651 = vmax.f32 %v555, 0.0
        %v652 = vmax.f32 %v556, 0.0
        %v653 = vmax.f32 %v557, 0.0
        %v654 = vmax.f32 %v558, 0.0
        %v655 = vmax.f32 %v559, 0.0
        %v656 = vmax.f32 %v560, 0.0
        %v657 = vmax.f32 %v561, 0.0
        %v658 = vmax.f32 %v562, 0.0
        %v659 = vmax.f32 %v563, 0.0
        %v660 = vmax.f32 %v564, 0.0
        %v661 = vmax.f32 %v565, 0.0
        %v662 = vmax.f32 %v566, 0.0
        %v663 = vmax.f32 %v567, 0.0
        %v664 = vmax.f32 %v568, 0.0
        %v665 = vmax.f32 %v569, 0.0
        %v666 = vmax.f32 %v570, 0.0
        %v667 = vmax.f32 %v571, 0.0
        %v668 = vmax.f32 %v572, 0.0
        %v669 = vmax.f32 %v573, 0.0
        %v670 = vmax.f32 %v574, 0.0
        %v671 = vmax.f32 %v575, 0.0
        %v672 = vmax.f32 %v576, 0.0
        %v673 = vmax.f32 %v577, 0.0
        %v674 = vmax.f32 %v578, 0.0
        %v675 = vmax.f32 %v579, 0.0
        %v676 = vmax.f32 %v580, 0.0
        %v677 = vmax.f32 %v581, 0.0
        %v678 = vmax.f32 %v582, 0.0
        %v679 = vmax.f32 %v583, 0.0
        %v680 = vmax.f32 %v584, 0.0
        %v681 = vmax.f32 %v585, 0.0
        %v682 = vmax.f32 %v586, 0.0
        %v683 = vmax.f32 %v587, 0.0
        %v684 = vmax.f32 %v588, 0.0
        %v685 = vmax.f32 %v589, 0.0
        %v686 = vmax.f32 %v590, 0.0
        %v687 = vmax.f32 %v591, 0.0
        %v688 = vmax.f32 %v592, 0.0
        %v689 = vmax.f32 %v593, 0.0
        %v690 = vmax.f32 %v594, 0.0
        %v691 = vmax.f32 %v595, 0.0
        %v692 = vmax.f32 %v596, 0.0
        %v693 = vmax.f32 %v597, 0.0
        %v694 = vmax.f32 %v598, 0.0
        %v695 = vmax.f32 %v599, 0.0
        %v696 = vmax.f32 %v600, 0.0
        %v697 = vmax.f32 %v601, 0.0
        %v698 = vmax.f32 %v602, 0.0
        %v699 = vmax.f32 %v603, 0.0
        %v700 = vmax.f32 %v604, 0.0
        %v701 = vmax.f32 %v605, 0.0
        %v702 = vmax.f32 %v606, 0.0
        %v703 = vmax.f32 %v607, 0.0
        %v704 = vmax.f32 %v608, 0.0
        %v705 = vmax.f32 %v609, 0.0
        %v706 = vmax.f32 %v610, 0.0
        %v707 = vmax.f32 %v611, 0.0
        %v708 = vmax.f32 %v612, 0.0
        %v709 = vmax.f32 %v613, 0.0
        %v710 = vmax.f32 %v614, 0.0
        %v711 = vmax.f32 %v615, 0.0
        %v712 = vmax.f32 %v616, 0.0
        %v713 = vmax.f32 %v617, 0.0
        %v714 = vmax.f32 %v618, 0.0
        %v715 = vmax.f32 %v619, 0.0
        %v716 = vmax.f32 %v620, 0.0
        %v717 = vmax.f32 %v621, 0.0
        %v718 = vmax.f32 %v622, 0.0
        %v719 = vmax.f32 %v623, 0.0
        %v720 = vmax.f32 %v624, 0.0
        %v721 = vmax.f32 %v625, 0.0
        %v722 = vmax.f32 %v626, 0.0
        %v723 = vmax.f32 %v627, 0.0
        %v724 = vmax.f32 %v628, 0.0
        %v725 = vmax.f32 %v629, 0.0
        %v726 = vpack.c.bf16 %v632, %v630
        %v727 = vpack.c.bf16 %v633, %v631
        %v728 = vpack.c.bf16 %v636, %v634
        %v729 = vpack.c.bf16 %v637, %v635
        %v730 = vpack.c.bf16 %v640, %v638
        %v731 = vpack.c.bf16 %v641, %v639
        %v732 = vpack.c.bf16 %v644, %v642
        %v733 = vpack.c.bf16 %v645, %v643
        %v734 = vpack.c.bf16 %v648, %v646
        %v735 = vpack.c.bf16 %v649, %v647
        %v736 = vpack.c.bf16 %v652, %v650
        %v737 = vpack.c.bf16 %v653, %v651
        %v738 = vpack.c.bf16 %v656, %v654
        %v739 = vpack.c.bf16 %v657, %v655
        %v740 = vpack.c.bf16 %v660, %v658
        %v741 = vpack.c.bf16 %v661, %v659
        %v742 = vpack.c.bf16 %v664, %v662
        %v743 = vpack.c.bf16 %v665, %v663
        %v744 = vpack.c.bf16 %v668, %v666
        %v745 = vpack.c.bf16 %v669, %v667
        %v746 = vpack.c.bf16 %v672, %v670
        %v747 = vpack.c.bf16 %v673, %v671
        %v748 = vpack.c.bf16 %v676, %v674
        %v749 = vpack.c.bf16 %v677, %v675
        %v750 = vpack.c.bf16 %v680, %v678
        %v751 = vpack.c.bf16 %v681, %v679
        %v752 = vpack.c.bf16 %v684, %v682
        %v753 = vpack.c.bf16 %v685, %v683
        %v754 = vpack.c.bf16 %v688, %v686
        %v755 = vpack.c.bf16 %v689, %v687
        %v756 = vpack.c.bf16 %v692, %v690
        %v757 = vpack.c.bf16 %v693, %v691
        %v758 = vpack.c.bf16 %v696, %v694
        %v759 = vpack.c.bf16 %v697, %v695
        %v760 = vpack.c.bf16 %v700, %v698
        %v761 = vpack.c.bf16 %v701, %v699
        %v762 = vpack.c.bf16 %v704, %v702
        %v763 = vpack.c.bf16 %v705, %v703
        %v764 = vpack.c.bf16 %v708, %v706
        %v765 = vpack.c.bf16 %v709, %v707
        %v766 = vpack.c.bf16 %v712, %v710
        %v767 = vpack.c.bf16 %v713, %v711
        %v768 = vpack.c.bf16 %v716, %v714
        %v769 = vpack.c.bf16 %v717, %v715
        %v770 = vpack.c.bf16 %v720, %v718
        %v771 = vpack.c.bf16 %v721, %v719
        %v772 = vpack.c.bf16 %v724, %v722
        %v773 = vpack.c.bf16 %v725, %v723
        %v774 = vld [vmem:[#allocation9] sm:$0xff]
        %v775 = vld [vmem:[#allocation9 + $0x8] sm:$0xf]
        %v776 = vld [vmem:[#allocation9 + $0xc] sm:$0xff]
        %v777 = vld [vmem:[#allocation9 + $0x14] sm:$0xf]
        %v778 = vld [vmem:[#allocation9 + $0x18] sm:$0xff]
        %v779 = vld [vmem:[#allocation9 + $0x20] sm:$0xf]
        %v780 = vld [vmem:[#allocation9 + $0x24] sm:$0xff]
        %v781 = vld [vmem:[#allocation9 + $0x2c] sm:$0xf]
        %v782 = vld [vmem:[#allocation9 + $0x30] sm:$0xff]
        %v783 = vld [vmem:[#allocation9 + $0x38] sm:$0xf]
        %v784 = vld [vmem:[#allocation9 + $0x3c] sm:$0xff]
        %v785 = vld [vmem:[#allocation9 + $0x44] sm:$0xf]
        %v786 = vld [vmem:[#allocation9 + $0x48] sm:$0xff]
        %v787 = vld [vmem:[#allocation9 + $0x50] sm:$0xf]
        %v788 = vld [vmem:[#allocation9 + $0x54] sm:$0xff]
        %v789 = vld [vmem:[#allocation9 + $0x5c] sm:$0xf]
        %v790 = vld [vmem:[#allocation9 + $0x60] sm:$0xff]
        %v791 = vld [vmem:[#allocation9 + $0x68] sm:$0xf]
        %v792 = vld [vmem:[#allocation9 + $0x6c] sm:$0xff]
        %v793 = vld [vmem:[#allocation9 + $0x74] sm:$0xf]
        %v794 = vld [vmem:[#allocation9 + $0x78] sm:$0xff]
        %v795 = vld [vmem:[#allocation9 + $0x80] sm:$0xf]
        %v796 = vld [vmem:[#allocation9 + $0x84] sm:$0xff]
        %v797 = vld [vmem:[#allocation9 + $0x8c] sm:$0xf]
        %v798 = vld [vmem:[%s2] sm:$0xff]
        %v799 = vld [vmem:[%s2 + $0x8] sm:$0xff]
        %v800 = vld [vmem:[%s2 + $0x10] sm:$0xff]
        %v801 = vld [vmem:[%s2 + $0x18] sm:$0xff]
        %v802 = vld [vmem:[%s2 + $0x20] sm:$0xff]
        %v803 = vld [vmem:[%s2 + $0x28] sm:$0xff]
        %v804 = vld [vmem:[%s2 + $0x30] sm:$0xff]
        %v805 = vld [vmem:[%s2 + $0x38] sm:$0xff]
        %v806 = vld [vmem:[%s2 + $0x40] sm:$0xff]
        %v807 = vld [vmem:[%s2 + $0x48] sm:$0xff]
        %v808 = vld [vmem:[%s2 + $0x50] sm:$0xff]
        %v809 = vld [vmem:[%s2 + $0x58] sm:$0xff]
        %811 = vset.pattern.permute.xlu0 0
        %812 = vperm.xlu0 %811, %v798
        %v813 = vpop.permute.xlu0 %812
        %816 = vset.pattern.permute.xlu0 0
        %817 = vperm.xlu0 %816, %v799
        %v818 = vpop.permute.xlu0 %817
        %821 = vset.pattern.permute.xlu0 0
        %822 = vperm.xlu0 %821, %v800
        %v823 = vpop.permute.xlu0 %822
        %826 = vset.pattern.permute.xlu0 0
        %827 = vperm.xlu0 %826, %v801
        %v828 = vpop.permute.xlu0 %827
        %831 = vset.pattern.permute.xlu0 0
        %832 = vperm.xlu0 %831, %v802
        %v833 = vpop.permute.xlu0 %832
        %836 = vset.pattern.permute.xlu0 0
        %837 = vperm.xlu0 %836, %v803
        %v838 = vpop.permute.xlu0 %837
        %841 = vset.pattern.permute.xlu0 0
        %842 = vperm.xlu0 %841, %v804
        %v843 = vpop.permute.xlu0 %842
        %846 = vset.pattern.permute.xlu0 0
        %847 = vperm.xlu0 %846, %v805
        %v848 = vpop.permute.xlu0 %847
        %851 = vset.pattern.permute.xlu0 0
        %852 = vperm.xlu0 %851, %v806
        %v853 = vpop.permute.xlu0 %852
        %856 = vset.pattern.permute.xlu0 0
        %857 = vperm.xlu0 %856, %v807
        %v858 = vpop.permute.xlu0 %857
        %861 = vset.pattern.permute.xlu0 0
        %862 = vperm.xlu0 %861, %v808
        %v863 = vpop.permute.xlu0 %862
        %866 = vset.pattern.permute.xlu0 0
        %867 = vperm.xlu0 %866, %v809
        %v868 = vpop.permute.xlu0 %867
        %v894 = vunpack.c.l.b16 %v774
        %v895 = vunpack.c.h.b16 %v774
        %v896 = vunpack.c.l.b16 %v775
        %v897 = vunpack.c.l.b16 %v776
        %v898 = vunpack.c.h.b16 %v776
        %v899 = vunpack.c.l.b16 %v777
        %v900 = vunpack.c.l.b16 %v778
        %v901 = vunpack.c.h.b16 %v778
        %v902 = vunpack.c.l.b16 %v779
        %v903 = vunpack.c.l.b16 %v780
        %v904 = vunpack.c.h.b16 %v780
        %v905 = vunpack.c.l.b16 %v781
        %v906 = vunpack.c.l.b16 %v782
        %v907 = vunpack.c.h.b16 %v782
        %v908 = vunpack.c.l.b16 %v783
        %v909 = vunpack.c.l.b16 %v784
        %v910 = vunpack.c.h.b16 %v784
        %v911 = vunpack.c.l.b16 %v785
        %v912 = vunpack.c.l.b16 %v786
        %v913 = vunpack.c.h.b16 %v786
        %v914 = vunpack.c.l.b16 %v787
        %v915 = vunpack.c.l.b16 %v788
        %v916 = vunpack.c.h.b16 %v788
        %v917 = vunpack.c.l.b16 %v789
        %v918 = vunpack.c.l.b16 %v790
        %v919 = vunpack.c.h.b16 %v790
        %v920 = vunpack.c.l.b16 %v791
        %v921 = vunpack.c.l.b16 %v792
        %v922 = vunpack.c.h.b16 %v792
        %v923 = vunpack.c.l.b16 %v793
        %v924 = vunpack.c.l.b16 %v794
        %v925 = vunpack.c.h.b16 %v794
        %v926 = vunpack.c.l.b16 %v795
        %v927 = vunpack.c.l.b16 %v796
        %v928 = vunpack.c.h.b16 %v796
        %v929 = vunpack.c.l.b16 %v797
        %v930 = vpack.c.b16 %v897, %v894
        %v931 = vpack.c.b16 %v898, %v895
        %v932 = vpack.c.b16 %v899, %v896
        %v933 = vpack.c.b16 %v903, %v900
        %v934 = vpack.c.b16 %v904, %v901
        %v935 = vpack.c.b16 %v905, %v902
        %v936 = vpack.c.b16 %v909, %v906
        %v937 = vpack.c.b16 %v910, %v907
        %v938 = vpack.c.b16 %v911, %v908
        %v939 = vpack.c.b16 %v915, %v912
        %v940 = vpack.c.b16 %v916, %v913
        %v941 = vpack.c.b16 %v917, %v914
        %v942 = vpack.c.b16 %v921, %v918
        %v943 = vpack.c.b16 %v922, %v919
        %v944 = vpack.c.b16 %v923, %v920
        %v945 = vpack.c.b16 %v927, %v924
        %v946 = vpack.c.b16 %v928, %v925
        %v947 = vpack.c.b16 %v929, %v926
        %966 = vmatpush.bf16.msra.mxu0 %v740
        %967 = vmatpush.bf16.msra.mxu0 %v738
        %968 = vmatpush.bf16.msra.mxu0 %v736
        %969 = vmatpush.bf16.msra.mxu0 %v734
        %970 = vmatpush.bf16.msra.mxu0 %v732
        %971 = vmatpush.bf16.msra.mxu0 %v730
        %972 = vmatpush.bf16.msra.mxu0 %v728
        %973 = vmatpush.bf16.msra.mxu0 %v726
        %974 = vmatmul.bf16.gmra.mxu0 %v930
        %v975 = vpop.f32.mrf.mxu0
        %v976 = vadd.f32 %v813, %v975
        %v977 = vpop.f32.mrf.mxu0
        %v978 = vadd.f32 %v818, %v977
        %979 = vmatmul.bf16.gmra.mxu0 %v933
        %v980 = vpop.f32.mrf.mxu0
        %v981 = vadd.f32 %v823, %v980
        %v982 = vpop.f32.mrf.mxu0
        %v983 = vadd.f32 %v828, %v982
        %984 = vmatmul.bf16.gmra.mxu0 %v936
        %v985 = vpop.f32.mrf.mxu0
        %v986 = vadd.f32 %v833, %v985
        %v987 = vpop.f32.mrf.mxu0
        %v988 = vadd.f32 %v838, %v987
        %989 = vmatmul.bf16.gmra.mxu0 %v939
        %v990 = vpop.f32.mrf.mxu0
        %v991 = vadd.f32 %v843, %v990
        %v992 = vpop.f32.mrf.mxu0
        %v993 = vadd.f32 %v848, %v992
        %994 = vmatmul.bf16.gmra.mxu0 %v942
        %v995 = vpop.f32.mrf.mxu0
        %v996 = vadd.f32 %v853, %v995
        %v997 = vpop.f32.mrf.mxu0
        %v998 = vadd.f32 %v858, %v997
        %999 = vmatmul.bf16.gmra.mxu0 %v945
        %v1000 = vpop.f32.mrf.mxu0
        %v1001 = vadd.f32 %v863, %v1000
        %v1002 = vpop.f32.mrf.mxu0
        %v1003 = vadd.f32 %v868, %v1002
        %1004 = vdwg.mxu0
        %1005 = vmatpush.bf16.msra.mxu0 %v756
        %1006 = vmatpush.bf16.msra.mxu0 %v754
        %1007 = vmatpush.bf16.msra.mxu0 %v752
        %1008 = vmatpush.bf16.msra.mxu0 %v750
        %1009 = vmatpush.bf16.msra.mxu0 %v748
        %1010 = vmatpush.bf16.msra.mxu0 %v746
        %1011 = vmatpush.bf16.msra.mxu0 %v744
        %1012 = vmatpush.bf16.msra.mxu0 %v742
        %1013 = vmatmul.bf16.gmra.mxu0 %v931
        %v1014 = vpop.f32.mrf.mxu0
        %v1015 = vadd.f32 %v976, %v1014
        %v1016 = vpop.f32.mrf.mxu0
        %v1017 = vadd.f32 %v978, %v1016
        %1018 = vmatmul.bf16.gmra.mxu0 %v934
        %v1019 = vpop.f32.mrf.mxu0
        %v1020 = vadd.f32 %v981, %v1019
        %v1021 = vpop.f32.mrf.mxu0
        %v1022 = vadd.f32 %v983, %v1021
        %1023 = vmatmul.bf16.gmra.mxu0 %v937
        %v1024 = vpop.f32.mrf.mxu0
        %v1025 = vadd.f32 %v986, %v1024
        %v1026 = vpop.f32.mrf.mxu0
        %v1027 = vadd.f32 %v988, %v1026
        %1028 = vmatmul.bf16.gmra.mxu0 %v940
        %v1029 = vpop.f32.mrf.mxu0
        %v1030 = vadd.f32 %v991, %v1029
        %v1031 = vpop.f32.mrf.mxu0
        %v1032 = vadd.f32 %v993, %v1031
        %1033 = vmatmul.bf16.gmra.mxu0 %v943
        %v1034 = vpop.f32.mrf.mxu0
        %v1035 = vadd.f32 %v996, %v1034
        %v1036 = vpop.f32.mrf.mxu0
        %v1037 = vadd.f32 %v998, %v1036
        %1038 = vmatmul.bf16.gmra.mxu0 %v946
        %v1039 = vpop.f32.mrf.mxu0
        %v1040 = vadd.f32 %v1001, %v1039
        %v1041 = vpop.f32.mrf.mxu0
        %v1042 = vadd.f32 %v1003, %v1041
        %1043 = vdwg.mxu0
        %1044 = vmatpush.bf16.msra.mxu0 %v772
        %1045 = vmatpush.bf16.msra.mxu0 %v770
        %1046 = vmatpush.bf16.msra.mxu0 %v768
        %1047 = vmatpush.bf16.msra.mxu0 %v766
        %1048 = vmatpush.bf16.msra.mxu0 %v764
        %1049 = vmatpush.bf16.msra.mxu0 %v762
        %1050 = vmatpush.bf16.msra.mxu0 %v760
        %1051 = vmatpush.bf16.msra.mxu0 %v758
        %1052 = vmatmul.bf16.gmra.mxu0 %v932
        %v1053 = vpop.f32.mrf.mxu0
        %v1054 = vadd.f32 %v1015, %v1053
        %v1055 = vpop.f32.mrf.mxu0
        %v1056 = vadd.f32 %v1017, %v1055
        %1057 = vmatmul.bf16.gmra.mxu0 %v935
        %v1058 = vpop.f32.mrf.mxu0
        %v1059 = vadd.f32 %v1020, %v1058
        %v1060 = vpop.f32.mrf.mxu0
        %v1061 = vadd.f32 %v1022, %v1060
        %1062 = vmatmul.bf16.gmra.mxu0 %v938
        %v1063 = vpop.f32.mrf.mxu0
        %v1064 = vadd.f32 %v1025, %v1063
        %v1065 = vpop.f32.mrf.mxu0
        %v1066 = vadd.f32 %v1027, %v1065
        %1067 = vmatmul.bf16.gmra.mxu0 %v941
        %v1068 = vpop.f32.mrf.mxu0
        %v1069 = vadd.f32 %v1030, %v1068
        %v1070 = vpop.f32.mrf.mxu0
        %v1071 = vadd.f32 %v1032, %v1070
        %1072 = vmatmul.bf16.gmra.mxu0 %v944
        %v1073 = vpop.f32.mrf.mxu0
        %v1074 = vadd.f32 %v1035, %v1073
        %v1075 = vpop.f32.mrf.mxu0
        %v1076 = vadd.f32 %v1037, %v1075
        %1077 = vmatmul.bf16.gmra.mxu0 %v947
        %v1078 = vpop.f32.mrf.mxu0
        %v1079 = vadd.f32 %v1040, %v1078
        %v1080 = vpop.f32.mrf.mxu0
        %v1081 = vadd.f32 %v1042, %v1080
        %1082 = vdwg.mxu0
        %1083 = vmatpush.bf16.msra.mxu0 %v741
        %1084 = vmatpush.bf16.msra.mxu0 %v739
        %1085 = vmatpush.bf16.msra.mxu0 %v737
        %1086 = vmatpush.bf16.msra.mxu0 %v735
        %1087 = vmatpush.bf16.msra.mxu0 %v733
        %1088 = vmatpush.bf16.msra.mxu0 %v731
        %1089 = vmatpush.bf16.msra.mxu0 %v729
        %1090 = vmatpush.bf16.msra.mxu0 %v727
        %1091 = vmatmul.bf16.gmra.mxu0 %v930
        %v1092 = vpop.f32.mrf.mxu0
        %v1093 = vadd.f32 %v813, %v1092
        %v1094 = vpop.f32.mrf.mxu0
        %v1095 = vadd.f32 %v818, %v1094
        %1096 = vmatmul.bf16.gmra.mxu0 %v933
        %v1097 = vpop.f32.mrf.mxu0
        %v1098 = vadd.f32 %v823, %v1097
        %v1099 = vpop.f32.mrf.mxu0
        %v1100 = vadd.f32 %v828, %v1099
        %1101 = vmatmul.bf16.gmra.mxu0 %v936
        %v1102 = vpop.f32.mrf.mxu0
        %v1103 = vadd.f32 %v833, %v1102
        %v1104 = vpop.f32.mrf.mxu0
        %v1105 = vadd.f32 %v838, %v1104
        %1106 = vmatmul.bf16.gmra.mxu0 %v939
        %v1107 = vpop.f32.mrf.mxu0
        %v1108 = vadd.f32 %v843, %v1107
        %v1109 = vpop.f32.mrf.mxu0
        %v1110 = vadd.f32 %v848, %v1109
        %1111 = vmatmul.bf16.gmra.mxu0 %v942
        %v1112 = vpop.f32.mrf.mxu0
        %v1113 = vadd.f32 %v853, %v1112
        %v1114 = vpop.f32.mrf.mxu0
        %v1115 = vadd.f32 %v858, %v1114
        %1116 = vmatmul.bf16.gmra.mxu0 %v945
        %v1117 = vpop.f32.mrf.mxu0
        %v1118 = vadd.f32 %v863, %v1117
        %v1119 = vpop.f32.mrf.mxu0
        %v1120 = vadd.f32 %v868, %v1119
        %1121 = vdwg.mxu0
        %1122 = vmatpush.bf16.msra.mxu0 %v757
        %1123 = vmatpush.bf16.msra.mxu0 %v755
        %1124 = vmatpush.bf16.msra.mxu0 %v753
        %1125 = vmatpush.bf16.msra.mxu0 %v751
        %1126 = vmatpush.bf16.msra.mxu0 %v749
        %1127 = vmatpush.bf16.msra.mxu0 %v747
        %1128 = vmatpush.bf16.msra.mxu0 %v745
        %1129 = vmatpush.bf16.msra.mxu0 %v743
        %1130 = vmatmul.bf16.gmra.mxu0 %v931
        %v1131 = vpop.f32.mrf.mxu0
        %v1132 = vadd.f32 %v1093, %v1131
        %v1133 = vpop.f32.mrf.mxu0
        %v1134 = vadd.f32 %v1095, %v1133
        %1135 = vmatmul.bf16.gmra.mxu0 %v934
        %v1136 = vpop.f32.mrf.mxu0
        %v1137 = vadd.f32 %v1098, %v1136
        %v1138 = vpop.f32.mrf.mxu0
        %v1139 = vadd.f32 %v1100, %v1138
        %1140 = vmatmul.bf16.gmra.mxu0 %v937
        %v1141 = vpop.f32.mrf.mxu0
        %v1142 = vadd.f32 %v1103, %v1141
        %v1143 = vpop.f32.mrf.mxu0
        %v1144 = vadd.f32 %v1105, %v1143
        %1145 = vmatmul.bf16.gmra.mxu0 %v940
        %v1146 = vpop.f32.mrf.mxu0
        %v1147 = vadd.f32 %v1108, %v1146
        %v1148 = vpop.f32.mrf.mxu0
        %v1149 = vadd.f32 %v1110, %v1148
        %1150 = vmatmul.bf16.gmra.mxu0 %v943
        %v1151 = vpop.f32.mrf.mxu0
        %v1152 = vadd.f32 %v1113, %v1151
        %v1153 = vpop.f32.mrf.mxu0
        %v1154 = vadd.f32 %v1115, %v1153
        %1155 = vmatmul.bf16.gmra.mxu0 %v946
        %v1156 = vpop.f32.mrf.mxu0
        %v1157 = vadd.f32 %v1118, %v1156
        %v1158 = vpop.f32.mrf.mxu0
        %v1159 = vadd.f32 %v1120, %v1158
        %1160 = vdwg.mxu0
        %1161 = vmatpush.bf16.msra.mxu0 %v773
        %1162 = vmatpush.bf16.msra.mxu0 %v771
        %1163 = vmatpush.bf16.msra.mxu0 %v769
        %1164 = vmatpush.bf16.msra.mxu0 %v767
        %1165 = vmatpush.bf16.msra.mxu0 %v765
        %1166 = vmatpush.bf16.msra.mxu0 %v763
        %1167 = vmatpush.bf16.msra.mxu0 %v761
        %1168 = vmatpush.bf16.msra.mxu0 %v759
        %1169 = vmatmul.bf16.gmra.mxu0 %v932
        %v1170 = vpop.f32.mrf.mxu0
        %v1171 = vadd.f32 %v1132, %v1170
        %v1172 = vpop.f32.mrf.mxu0
        %v1173 = vadd.f32 %v1134, %v1172
        %1174 = vmatmul.bf16.gmra.mxu0 %v935
        %v1175 = vpop.f32.mrf.mxu0
        %v1176 = vadd.f32 %v1137, %v1175
        %v1177 = vpop.f32.mrf.mxu0
        %v1178 = vadd.f32 %v1139, %v1177
        %1179 = vmatmul.bf16.gmra.mxu0 %v938
        %v1180 = vpop.f32.mrf.mxu0
        %v1181 = vadd.f32 %v1142, %v1180
        %v1182 = vpop.f32.mrf.mxu0
        %v1183 = vadd.f32 %v1144, %v1182
        %1184 = vmatmul.bf16.gmra.mxu0 %v941
        %v1185 = vpop.f32.mrf.mxu0
        %v1186 = vadd.f32 %v1147, %v1185
        %v1187 = vpop.f32.mrf.mxu0
        %v1188 = vadd.f32 %v1149, %v1187
        %1189 = vmatmul.bf16.gmra.mxu0 %v944
        %v1190 = vpop.f32.mrf.mxu0
        %v1191 = vadd.f32 %v1152, %v1190
        %v1192 = vpop.f32.mrf.mxu0
        %v1193 = vadd.f32 %v1154, %v1192
        %1194 = vmatmul.bf16.gmra.mxu0 %v947
        %v1195 = vpop.f32.mrf.mxu0
        %v1196 = vadd.f32 %v1157, %v1195
        %v1197 = vpop.f32.mrf.mxu0
        %v1198 = vadd.f32 %v1159, %v1197
        %1199 = vdwg.mxu0
        %v1200 = vmax.f32 %v1054, 0.0
        %v1201 = vmax.f32 %v1171, 0.0
        %v1202 = vmax.f32 %v1056, 0.0
        %v1203 = vmax.f32 %v1173, 0.0
        %v1204 = vmax.f32 %v1059, 0.0
        %v1205 = vmax.f32 %v1176, 0.0
        %v1206 = vmax.f32 %v1061, 0.0
        %v1207 = vmax.f32 %v1178, 0.0
        %v1208 = vmax.f32 %v1064, 0.0
        %v1209 = vmax.f32 %v1181, 0.0
        %v1210 = vmax.f32 %v1066, 0.0
        %v1211 = vmax.f32 %v1183, 0.0
        %v1212 = vmax.f32 %v1069, 0.0
        %v1213 = vmax.f32 %v1186, 0.0
        %v1214 = vmax.f32 %v1071, 0.0
        %v1215 = vmax.f32 %v1188, 0.0
        %v1216 = vmax.f32 %v1074, 0.0
        %v1217 = vmax.f32 %v1191, 0.0
        %v1218 = vmax.f32 %v1076, 0.0
        %v1219 = vmax.f32 %v1193, 0.0
        %v1220 = vmax.f32 %v1079, 0.0
        %v1221 = vmax.f32 %v1196, 0.0
        %v1222 = vmax.f32 %v1081, 0.0
        %v1223 = vmax.f32 %v1198, 0.0
        %1224 = vrot.lane.b32.xlu0 %v1208, 17
        %v1225 = vpop.permute.xlu0 %1224
        %1226 = vrot.lane.b32.xlu0 %v1210, 17
        %v1227 = vpop.permute.xlu0 %1226
        %1228 = vrot.lane.b32.xlu0 %v1212, 17
        %v1229 = vpop.permute.xlu0 %1228
        %1230 = vrot.lane.b32.xlu0 %v1214, 17
        %v1231 = vpop.permute.xlu0 %1230
        %1232 = vrot.lane.b32.xlu0 %v1216, 17
        %v1233 = vpop.permute.xlu0 %1232
        %1234 = vrot.lane.b32.xlu0 %v1218, 17
        %v1235 = vpop.permute.xlu0 %1234
        %1236 = vrot.lane.b32.xlu0 %v1220, 17
        %v1237 = vpop.permute.xlu0 %1236
        %1238 = vrot.lane.b32.xlu0 %v1222, 17
        %v1239 = vpop.permute.xlu0 %1238
        %1240 = vrot.lane.b32.xlu0 %v1209, 17
        %v1241 = vpop.permute.xlu0 %1240
        %1242 = vrot.lane.b32.xlu0 %v1211, 17
        %v1243 = vpop.permute.xlu0 %1242
        %1244 = vrot.lane.b32.xlu0 %v1213, 17
        %v1245 = vpop.permute.xlu0 %1244
        %1246 = vrot.lane.b32.xlu0 %v1215, 17
        %v1247 = vpop.permute.xlu0 %1246
        %1248 = vrot.lane.b32.xlu0 %v1217, 17
        %v1249 = vpop.permute.xlu0 %1248
        %1250 = vrot.lane.b32.xlu0 %v1219, 17
        %v1251 = vpop.permute.xlu0 %1250
        %1252 = vrot.lane.b32.xlu0 %v1221, 17
        %v1253 = vpop.permute.xlu0 %1252
        %1254 = vrot.lane.b32.xlu0 %v1223, 17
        %v1255 = vpop.permute.xlu0 %1254
        %v1256 = vlaneseq
        %v1257 = vand.u32 %v1256, 127
        %vm1258 = vcmp.lt.s32.totalorder %v1257, 17
        %v1259 = vsel %vm1258, %v1225, %v1241
        %v1260 = vsel %vm1258, %v1227, %v1243
        %v1261 = vsel %vm1258, %v1229, %v1245
        %v1262 = vsel %vm1258, %v1231, %v1247
        %v1263 = vsel %vm1258, %v1233, %v1249
        %v1264 = vsel %vm1258, %v1235, %v1251
        %v1265 = vsel %vm1258, %v1237, %v1253
        %v1266 = vsel %vm1258, %v1239, %v1255
        %v1267 = vsel %vm1258, %v1241, %v1225
        %v1268 = vsel %vm1258, %v1243, %v1227
        %v1269 = vsel %vm1258, %v1245, %v1229
        %v1270 = vsel %vm1258, %v1247, %v1231
        %v1271 = vsel %vm1258, %v1249, %v1233
        %v1272 = vsel %vm1258, %v1251, %v1235
        %v1273 = vsel %vm1258, %v1253, %v1237
        %v1274 = vsel %vm1258, %v1255, %v1239
        %v1275 = vld [vmem:[#allocation17] sm:$0x3]
        %v1277 = vperm.slane %v1275, 0
        %v1278 = vperm.slane %v1275, 1
        %v1281 = vmul.f32 %v1267, %v1277
        %v1282 = vmul.f32 %v1259, %v1278
        %v1283 = vmul.f32 %v1268, %v1277
        %v1284 = vmul.f32 %v1260, %v1278
        %v1285 = vmul.f32 %v1269, %v1277
        %v1286 = vmul.f32 %v1261, %v1278
        %v1287 = vmul.f32 %v1270, %v1277
        %v1288 = vmul.f32 %v1262, %v1278
        %v1289 = vmul.f32 %v1271, %v1277
        %v1290 = vmul.f32 %v1263, %v1278
        %v1291 = vmul.f32 %v1272, %v1277
        %v1292 = vmul.f32 %v1264, %v1278
        %v1293 = vmul.f32 %v1273, %v1277
        %v1294 = vmul.f32 %v1265, %v1278
        %v1295 = vmul.f32 %v1274, %v1277
        %v1296 = vmul.f32 %v1266, %v1278
        %v1297 = vpack.c.bf16 %v1282, %v1281
        %v1298 = vpack.c.bf16 %v1284, %v1283
        %v1299 = vpack.c.bf16 %v1286, %v1285
        %v1300 = vpack.c.bf16 %v1288, %v1287
        %v1301 = vpack.c.bf16 %v1290, %v1289
        %v1302 = vpack.c.bf16 %v1292, %v1291
        %v1303 = vpack.c.bf16 %v1294, %v1293
        %v1304 = vpack.c.bf16 %v1296, %v1295
        %1305 = vst [vmem:[#allocation2] sm:$0xff] %v1297
        %1306 = vst [vmem:[#allocation2 + $0x8] sm:$0xff] %v1298
        %1307 = vst [vmem:[#allocation2 + $0x10] sm:$0xff] %v1299
        %1308 = vst [vmem:[#allocation2 + $0x18] sm:$0xff] %v1300
        %1309 = vst [vmem:[#allocation3] sm:$0xff] %v1301
        %1310 = vst [vmem:[#allocation3 + $0x8] sm:$0xff] %v1302
        %1311 = vst [vmem:[#allocation3 + $0x10] sm:$0xff] %v1303
        %1312 = vst [vmem:[#allocation3 + $0x18] sm:$0xff] %v1304
        %1313 = vrot.lane.b32.xlu0 %v1208, 16
        %v1314 = vpop.permute.xlu0 %1313
        %1315 = vrot.lane.b32.xlu0 %v1210, 16
        %v1316 = vpop.permute.xlu0 %1315
        %1317 = vrot.lane.b32.xlu0 %v1212, 16
        %v1318 = vpop.permute.xlu0 %1317
        %1319 = vrot.lane.b32.xlu0 %v1214, 16
        %v1320 = vpop.permute.xlu0 %1319
        %1321 = vrot.lane.b32.xlu0 %v1216, 16
        %v1322 = vpop.permute.xlu0 %1321
        %1323 = vrot.lane.b32.xlu0 %v1218, 16
        %v1324 = vpop.permute.xlu0 %1323
        %1325 = vrot.lane.b32.xlu0 %v1220, 16
        %v1326 = vpop.permute.xlu0 %1325
        %1327 = vrot.lane.b32.xlu0 %v1222, 16
        %v1328 = vpop.permute.xlu0 %1327
        %1329 = vrot.lane.b32.xlu0 %v1209, 16
        %v1330 = vpop.permute.xlu0 %1329
        %1331 = vrot.lane.b32.xlu0 %v1211, 16
        %v1332 = vpop.permute.xlu0 %1331
        %1333 = vrot.lane.b32.xlu0 %v1213, 16
        %v1334 = vpop.permute.xlu0 %1333
        %1335 = vrot.lane.b32.xlu0 %v1215, 16
        %v1336 = vpop.permute.xlu0 %1335
        %1337 = vrot.lane.b32.xlu0 %v1217, 16
        %v1338 = vpop.permute.xlu0 %1337
        %1339 = vrot.lane.b32.xlu0 %v1219, 16
        %v1340 = vpop.permute.xlu0 %1339
        %1341 = vrot.lane.b32.xlu0 %v1221, 16
        %v1342 = vpop.permute.xlu0 %1341
        %1343 = vrot.lane.b32.xlu0 %v1223, 16
        %v1344 = vpop.permute.xlu0 %1343
        %vm1345 = vcmp.lt.s32.totalorder %v1257, 16
        %v1346 = vsel %vm1345, %v1314, %v1330
        %v1347 = vsel %vm1345, %v1316, %v1332
        %v1348 = vsel %vm1345, %v1318, %v1334
        %v1349 = vsel %vm1345, %v1320, %v1336
        %v1350 = vsel %vm1345, %v1322, %v1338
        %v1351 = vsel %vm1345, %v1324, %v1340
        %v1352 = vsel %vm1345, %v1326, %v1342
        %v1353 = vsel %vm1345, %v1328, %v1344
        %v1354 = vsel %vm1345, %v1330, %v1314
        %v1355 = vsel %vm1345, %v1332, %v1316
        %v1356 = vsel %vm1345, %v1334, %v1318
        %v1357 = vsel %vm1345, %v1336, %v1320
        %v1358 = vsel %vm1345, %v1338, %v1322
        %v1359 = vsel %vm1345, %v1340, %v1324
        %v1360 = vsel %vm1345, %v1342, %v1326
        %v1361 = vsel %vm1345, %v1344, %v1328
        %s1362 = scalar_lea.vmem [#allocation17], 2
        %v1363 = vld [vmem:[%s1362] sm:$0x3]
        %v1365 = vperm.slane %v1363, 0
        %v1366 = vperm.slane %v1363, 1
        %v1369 = vmul.f32 %v1354, %v1365
        %v1370 = vmul.f32 %v1346, %v1366
        %v1371 = vmul.f32 %v1355, %v1365
        %v1372 = vmul.f32 %v1347, %v1366
        %v1373 = vmul.f32 %v1356, %v1365
        %v1374 = vmul.f32 %v1348, %v1366
        %v1375 = vmul.f32 %v1357, %v1365
        %v1376 = vmul.f32 %v1349, %v1366
        %v1377 = vmul.f32 %v1358, %v1365
        %v1378 = vmul.f32 %v1350, %v1366
        %v1379 = vmul.f32 %v1359, %v1365
        %v1380 = vmul.f32 %v1351, %v1366
        %v1381 = vmul.f32 %v1360, %v1365
        %v1382 = vmul.f32 %v1352, %v1366
        %v1383 = vmul.f32 %v1361, %v1365
        %v1384 = vmul.f32 %v1353, %v1366
        %v1385 = vpack.c.bf16 %v1370, %v1369
        %v1386 = vpack.c.bf16 %v1372, %v1371
        %v1387 = vpack.c.bf16 %v1374, %v1373
        %v1388 = vpack.c.bf16 %v1376, %v1375
        %v1389 = vpack.c.bf16 %v1378, %v1377
        %v1390 = vpack.c.bf16 %v1380, %v1379
        %v1391 = vpack.c.bf16 %v1382, %v1381
        %v1392 = vpack.c.bf16 %v1384, %v1383
        %1393 = vst [vmem:[#allocation2 + $0x20] sm:$0xff] %v1385
        %1394 = vst [vmem:[#allocation2 + $0x28] sm:$0xff] %v1386
        %1395 = vst [vmem:[#allocation2 + $0x30] sm:$0xff] %v1387
        %1396 = vst [vmem:[#allocation2 + $0x38] sm:$0xff] %v1388
        %1397 = vst [vmem:[#allocation3 + $0x20] sm:$0xff] %v1389
        %1398 = vst [vmem:[#allocation3 + $0x28] sm:$0xff] %v1390
        %1399 = vst [vmem:[#allocation3 + $0x30] sm:$0xff] %v1391
        %1400 = vst [vmem:[#allocation3 + $0x38] sm:$0xff] %v1392
        %1401 = vrot.lane.b32.xlu0 %v1208, 15
        %v1402 = vpop.permute.xlu0 %1401
        %1403 = vrot.lane.b32.xlu0 %v1210, 15
        %v1404 = vpop.permute.xlu0 %1403
        %1405 = vrot.lane.b32.xlu0 %v1212, 15
        %v1406 = vpop.permute.xlu0 %1405
        %1407 = vrot.lane.b32.xlu0 %v1214, 15
        %v1408 = vpop.permute.xlu0 %1407
        %1409 = vrot.lane.b32.xlu0 %v1216, 15
        %v1410 = vpop.permute.xlu0 %1409
        %1411 = vrot.lane.b32.xlu0 %v1218, 15
        %v1412 = vpop.permute.xlu0 %1411
        %1413 = vrot.lane.b32.xlu0 %v1220, 15
        %v1414 = vpop.permute.xlu0 %1413
        %1415 = vrot.lane.b32.xlu0 %v1222, 15
        %v1416 = vpop.permute.xlu0 %1415
        %1417 = vrot.lane.b32.xlu0 %v1209, 15
        %v1418 = vpop.permute.xlu0 %1417
        %1419 = vrot.lane.b32.xlu0 %v1211, 15
        %v1420 = vpop.permute.xlu0 %1419
        %1421 = vrot.lane.b32.xlu0 %v1213, 15
        %v1422 = vpop.permute.xlu0 %1421
        %1423 = vrot.lane.b32.xlu0 %v1215, 15
        %v1424 = vpop.permute.xlu0 %1423
        %1425 = vrot.lane.b32.xlu0 %v1217, 15
        %v1426 = vpop.permute.xlu0 %1425
        %1427 = vrot.lane.b32.xlu0 %v1219, 15
        %v1428 = vpop.permute.xlu0 %1427
        %1429 = vrot.lane.b32.xlu0 %v1221, 15
        %v1430 = vpop.permute.xlu0 %1429
        %1431 = vrot.lane.b32.xlu0 %v1223, 15
        %v1432 = vpop.permute.xlu0 %1431
        %vm1433 = vcmp.lt.s32.totalorder %v1257, 15
        %v1434 = vsel %vm1433, %v1402, %v1418
        %v1435 = vsel %vm1433, %v1404, %v1420
        %v1436 = vsel %vm1433, %v1406, %v1422
        %v1437 = vsel %vm1433, %v1408, %v1424
        %v1438 = vsel %vm1433, %v1410, %v1426
        %v1439 = vsel %vm1433, %v1412, %v1428
        %v1440 = vsel %vm1433, %v1414, %v1430
        %v1441 = vsel %vm1433, %v1416, %v1432
        %v1442 = vsel %vm1433, %v1418, %v1402
        %v1443 = vsel %vm1433, %v1420, %v1404
        %v1444 = vsel %vm1433, %v1422, %v1406
        %v1445 = vsel %vm1433, %v1424, %v1408
        %v1446 = vsel %vm1433, %v1426, %v1410
        %v1447 = vsel %vm1433, %v1428, %v1412
        %v1448 = vsel %vm1433, %v1430, %v1414
        %v1449 = vsel %vm1433, %v1432, %v1416
        %s1450 = scalar_lea.vmem [#allocation17], 4
        %v1451 = vld [vmem:[%s1450] sm:$0x3]
        %v1453 = vperm.slane %v1451, 0
        %v1454 = vperm.slane %v1451, 1
        %v1457 = vmul.f32 %v1442, %v1453
        %v1458 = vmul.f32 %v1434, %v1454
        %v1459 = vmul.f32 %v1443, %v1453
        %v1460 = vmul.f32 %v1435, %v1454
        %v1461 = vmul.f32 %v1444, %v1453
        %v1462 = vmul.f32 %v1436, %v1454
        %v1463 = vmul.f32 %v1445, %v1453
        %v1464 = vmul.f32 %v1437, %v1454
        %v1465 = vmul.f32 %v1446, %v1453
        %v1466 = vmul.f32 %v1438, %v1454
        %v1467 = vmul.f32 %v1447, %v1453
        %v1468 = vmul.f32 %v1439, %v1454
        %v1469 = vmul.f32 %v1448, %v1453
        %v1470 = vmul.f32 %v1440, %v1454
        %v1471 = vmul.f32 %v1449, %v1453
        %v1472 = vmul.f32 %v1441, %v1454
        %v1473 = vpack.c.bf16 %v1458, %v1457
        %v1474 = vpack.c.bf16 %v1460, %v1459
        %v1475 = vpack.c.bf16 %v1462, %v1461
        %v1476 = vpack.c.bf16 %v1464, %v1463
        %v1477 = vpack.c.bf16 %v1466, %v1465
        %v1478 = vpack.c.bf16 %v1468, %v1467
        %v1479 = vpack.c.bf16 %v1470, %v1469
        %v1480 = vpack.c.bf16 %v1472, %v1471
        %1481 = vst [vmem:[#allocation2 + $0x40] sm:$0xff] %v1473
        %1482 = vst [vmem:[#allocation2 + $0x48] sm:$0xff] %v1474
        %1483 = vst [vmem:[#allocation2 + $0x50] sm:$0xff] %v1475
        %1484 = vst [vmem:[#allocation2 + $0x58] sm:$0xff] %v1476
        %1485 = vst [vmem:[#allocation3 + $0x40] sm:$0xff] %v1477
        %1486 = vst [vmem:[#allocation3 + $0x48] sm:$0xff] %v1478
        %1487 = vst [vmem:[#allocation3 + $0x50] sm:$0xff] %v1479
        %1488 = vst [vmem:[#allocation3 + $0x58] sm:$0xff] %v1480
        %1489 = vrot.lane.b32.xlu0 %v1208, 1
        %v1490 = vpop.permute.xlu0 %1489
        %1491 = vrot.lane.b32.xlu0 %v1210, 1
        %v1492 = vpop.permute.xlu0 %1491
        %1493 = vrot.lane.b32.xlu0 %v1212, 1
        %v1494 = vpop.permute.xlu0 %1493
        %1495 = vrot.lane.b32.xlu0 %v1214, 1
        %v1496 = vpop.permute.xlu0 %1495
        %1497 = vrot.lane.b32.xlu0 %v1216, 1
        %v1498 = vpop.permute.xlu0 %1497
        %1499 = vrot.lane.b32.xlu0 %v1218, 1
        %v1500 = vpop.permute.xlu0 %1499
        %1501 = vrot.lane.b32.xlu0 %v1220, 1
        %v1502 = vpop.permute.xlu0 %1501
        %1503 = vrot.lane.b32.xlu0 %v1222, 1
        %v1504 = vpop.permute.xlu0 %1503
        %1505 = vrot.lane.b32.xlu0 %v1209, 1
        %v1506 = vpop.permute.xlu0 %1505
        %1507 = vrot.lane.b32.xlu0 %v1211, 1
        %v1508 = vpop.permute.xlu0 %1507
        %1509 = vrot.lane.b32.xlu0 %v1213, 1
        %v1510 = vpop.permute.xlu0 %1509
        %1511 = vrot.lane.b32.xlu0 %v1215, 1
        %v1512 = vpop.permute.xlu0 %1511
        %1513 = vrot.lane.b32.xlu0 %v1217, 1
        %v1514 = vpop.permute.xlu0 %1513
        %1515 = vrot.lane.b32.xlu0 %v1219, 1
        %v1516 = vpop.permute.xlu0 %1515
        %1517 = vrot.lane.b32.xlu0 %v1221, 1
        %v1518 = vpop.permute.xlu0 %1517
        %1519 = vrot.lane.b32.xlu0 %v1223, 1
        %v1520 = vpop.permute.xlu0 %1519
        %vm1521 = vcmp.lt.s32.totalorder %v1257, 1
        %v1522 = vsel %vm1521, %v1490, %v1506
        %v1523 = vsel %vm1521, %v1492, %v1508
        %v1524 = vsel %vm1521, %v1494, %v1510
        %v1525 = vsel %vm1521, %v1496, %v1512
        %v1526 = vsel %vm1521, %v1498, %v1514
        %v1527 = vsel %vm1521, %v1500, %v1516
        %v1528 = vsel %vm1521, %v1502, %v1518
        %v1529 = vsel %vm1521, %v1504, %v1520
        %v1530 = vsel %vm1521, %v1506, %v1490
        %v1531 = vsel %vm1521, %v1508, %v1492
        %v1532 = vsel %vm1521, %v1510, %v1494
        %v1533 = vsel %vm1521, %v1512, %v1496
        %v1534 = vsel %vm1521, %v1514, %v1498
        %v1535 = vsel %vm1521, %v1516, %v1500
        %v1536 = vsel %vm1521, %v1518, %v1502
        %v1537 = vsel %vm1521, %v1520, %v1504
        %s1538 = scalar_lea.vmem [#allocation17], 6
        %v1539 = vld [vmem:[%s1538] sm:$0x3]
        %v1541 = vperm.slane %v1539, 0
        %v1542 = vperm.slane %v1539, 1
        %v1545 = vmul.f32 %v1530, %v1541
        %v1546 = vmul.f32 %v1522, %v1542
        %v1547 = vmul.f32 %v1531, %v1541
        %v1548 = vmul.f32 %v1523, %v1542
        %v1549 = vmul.f32 %v1532, %v1541
        %v1550 = vmul.f32 %v1524, %v1542
        %v1551 = vmul.f32 %v1533, %v1541
        %v1552 = vmul.f32 %v1525, %v1542
        %v1553 = vmul.f32 %v1534, %v1541
        %v1554 = vmul.f32 %v1526, %v1542
        %v1555 = vmul.f32 %v1535, %v1541
        %v1556 = vmul.f32 %v1527, %v1542
        %v1557 = vmul.f32 %v1536, %v1541
        %v1558 = vmul.f32 %v1528, %v1542
        %v1559 = vmul.f32 %v1537, %v1541
        %v1560 = vmul.f32 %v1529, %v1542
        %v1561 = vpack.c.bf16 %v1546, %v1545
        %v1562 = vpack.c.bf16 %v1548, %v1547
        %v1563 = vpack.c.bf16 %v1550, %v1549
        %v1564 = vpack.c.bf16 %v1552, %v1551
        %v1565 = vpack.c.bf16 %v1554, %v1553
        %v1566 = vpack.c.bf16 %v1556, %v1555
        %v1567 = vpack.c.bf16 %v1558, %v1557
        %v1568 = vpack.c.bf16 %v1560, %v1559
        %1569 = vst [vmem:[#allocation2 + $0x60] sm:$0xff] %v1561
        %1570 = vst [vmem:[#allocation2 + $0x68] sm:$0xff] %v1562
        %1571 = vst [vmem:[#allocation2 + $0x70] sm:$0xff] %v1563
        %1572 = vst [vmem:[#allocation2 + $0x78] sm:$0xff] %v1564
        %1573 = vst [vmem:[#allocation3 + $0x60] sm:$0xff] %v1565
        %1574 = vst [vmem:[#allocation3 + $0x68] sm:$0xff] %v1566
        %1575 = vst [vmem:[#allocation3 + $0x70] sm:$0xff] %v1567
        %1576 = vst [vmem:[#allocation3 + $0x78] sm:$0xff] %v1568
        %s1577 = scalar_lea.vmem [#allocation17], 8
        %v1578 = vld [vmem:[%s1577] sm:$0x3]
        %v1580 = vperm.slane %v1578, 0
        %v1581 = vperm.slane %v1578, 1
        %v1584 = vmul.f32 %v1208, %v1580
        %v1585 = vmul.f32 %v1209, %v1581
        %v1586 = vmul.f32 %v1210, %v1580
        %v1587 = vmul.f32 %v1211, %v1581
        %v1588 = vmul.f32 %v1212, %v1580
        %v1589 = vmul.f32 %v1213, %v1581
        %v1590 = vmul.f32 %v1214, %v1580
        %v1591 = vmul.f32 %v1215, %v1581
        %v1592 = vmul.f32 %v1216, %v1580
        %v1593 = vmul.f32 %v1217, %v1581
        %v1594 = vmul.f32 %v1218, %v1580
        %v1595 = vmul.f32 %v1219, %v1581
        %v1596 = vmul.f32 %v1220, %v1580
        %v1597 = vmul.f32 %v1221, %v1581
        %v1598 = vmul.f32 %v1222, %v1580
        %v1599 = vmul.f32 %v1223, %v1581
        %v1600 = vpack.c.bf16 %v1585, %v1584
        %v1601 = vpack.c.bf16 %v1587, %v1586
        %v1602 = vpack.c.bf16 %v1589, %v1588
        %v1603 = vpack.c.bf16 %v1591, %v1590
        %v1604 = vpack.c.bf16 %v1593, %v1592
        %v1605 = vpack.c.bf16 %v1595, %v1594
        %v1606 = vpack.c.bf16 %v1597, %v1596
        %v1607 = vpack.c.bf16 %v1599, %v1598
        %1608 = vst [vmem:[#allocation2 + $0x80] sm:$0xff] %v1600
        %1609 = vst [vmem:[#allocation2 + $0x88] sm:$0xff] %v1601
        %1610 = vst [vmem:[#allocation2 + $0x90] sm:$0xff] %v1602
        %1611 = vst [vmem:[#allocation2 + $0x98] sm:$0xff] %v1603
        %1612 = vst [vmem:[#allocation3 + $0x80] sm:$0xff] %v1604
        %1613 = vst [vmem:[#allocation3 + $0x88] sm:$0xff] %v1605
        %1614 = vst [vmem:[#allocation3 + $0x90] sm:$0xff] %v1606
        %1615 = vst [vmem:[#allocation3 + $0x98] sm:$0xff] %v1607
        %1616 = vrot.lane.b32.xlu0 %v1208, 127
        %v1617 = vpop.permute.xlu0 %1616
        %1618 = vrot.lane.b32.xlu0 %v1210, 127
        %v1619 = vpop.permute.xlu0 %1618
        %1620 = vrot.lane.b32.xlu0 %v1212, 127
        %v1621 = vpop.permute.xlu0 %1620
        %1622 = vrot.lane.b32.xlu0 %v1214, 127
        %v1623 = vpop.permute.xlu0 %1622
        %1624 = vrot.lane.b32.xlu0 %v1216, 127
        %v1625 = vpop.permute.xlu0 %1624
        %1626 = vrot.lane.b32.xlu0 %v1218, 127
        %v1627 = vpop.permute.xlu0 %1626
        %1628 = vrot.lane.b32.xlu0 %v1220, 127
        %v1629 = vpop.permute.xlu0 %1628
        %1630 = vrot.lane.b32.xlu0 %v1222, 127
        %v1631 = vpop.permute.xlu0 %1630
        %1632 = vrot.lane.b32.xlu0 %v1209, 127
        %v1633 = vpop.permute.xlu0 %1632
        %1634 = vrot.lane.b32.xlu0 %v1211, 127
        %v1635 = vpop.permute.xlu0 %1634
        %1636 = vrot.lane.b32.xlu0 %v1213, 127
        %v1637 = vpop.permute.xlu0 %1636
        %1638 = vrot.lane.b32.xlu0 %v1215, 127
        %v1639 = vpop.permute.xlu0 %1638
        %1640 = vrot.lane.b32.xlu0 %v1217, 127
        %v1641 = vpop.permute.xlu0 %1640
        %1642 = vrot.lane.b32.xlu0 %v1219, 127
        %v1643 = vpop.permute.xlu0 %1642
        %1644 = vrot.lane.b32.xlu0 %v1221, 127
        %v1645 = vpop.permute.xlu0 %1644
        %1646 = vrot.lane.b32.xlu0 %v1223, 127
        %v1647 = vpop.permute.xlu0 %1646
        %vm1648 = vcmp.lt.s32.totalorder %v1257, 127
        %v1649 = vsel %vm1648, %v1617, %v1633
        %v1650 = vsel %vm1648, %v1619, %v1635
        %v1651 = vsel %vm1648, %v1621, %v1637
        %v1652 = vsel %vm1648, %v1623, %v1639
        %v1653 = vsel %vm1648, %v1625, %v1641
        %v1654 = vsel %vm1648, %v1627, %v1643
        %v1655 = vsel %vm1648, %v1629, %v1645
        %v1656 = vsel %vm1648, %v1631, %v1647
        %v1657 = vsel %vm1648, %v1633, %v1617
        %v1658 = vsel %vm1648, %v1635, %v1619
        %v1659 = vsel %vm1648, %v1637, %v1621
        %v1660 = vsel %vm1648, %v1639, %v1623
        %v1661 = vsel %vm1648, %v1641, %v1625
        %v1662 = vsel %vm1648, %v1643, %v1627
        %v1663 = vsel %vm1648, %v1645, %v1629
        %v1664 = vsel %vm1648, %v1647, %v1631
        %s1665 = scalar_lea.vmem [#allocation17], 10
        %v1666 = vld [vmem:[%s1665] sm:$0x3]
        %v1668 = vperm.slane %v1666, 0
        %v1669 = vperm.slane %v1666, 1
        %v1672 = vmul.f32 %v1649, %v1668
        %v1673 = vmul.f32 %v1657, %v1669
        %v1674 = vmul.f32 %v1650, %v1668
        %v1675 = vmul.f32 %v1658, %v1669
        %v1676 = vmul.f32 %v1651, %v1668
        %v1677 = vmul.f32 %v1659, %v1669
        %v1678 = vmul.f32 %v1652, %v1668
        %v1679 = vmul.f32 %v1660, %v1669
        %v1680 = vmul.f32 %v1653, %v1668
        %v1681 = vmul.f32 %v1661, %v1669
        %v1682 = vmul.f32 %v1654, %v1668
        %v1683 = vmul.f32 %v1662, %v1669
        %v1684 = vmul.f32 %v1655, %v1668
        %v1685 = vmul.f32 %v1663, %v1669
        %v1686 = vmul.f32 %v1656, %v1668
        %v1687 = vmul.f32 %v1664, %v1669
        %v1688 = vpack.c.bf16 %v1673, %v1672
        %v1689 = vpack.c.bf16 %v1675, %v1674
        %v1690 = vpack.c.bf16 %v1677, %v1676
        %v1691 = vpack.c.bf16 %v1679, %v1678
        %v1692 = vpack.c.bf16 %v1681, %v1680
        %v1693 = vpack.c.bf16 %v1683, %v1682
        %v1694 = vpack.c.bf16 %v1685, %v1684
        %v1695 = vpack.c.bf16 %v1687, %v1686
        %1696 = vst [vmem:[#allocation2 + $0xa0] sm:$0xff] %v1688
        %1697 = vst [vmem:[#allocation2 + $0xa8] sm:$0xff] %v1689
        %1698 = vst [vmem:[#allocation2 + $0xb0] sm:$0xff] %v1690
        %1699 = vst [vmem:[#allocation2 + $0xb8] sm:$0xff] %v1691
        %1700 = vst [vmem:[#allocation3 + $0xa0] sm:$0xff] %v1692
        %1701 = vst [vmem:[#allocation3 + $0xa8] sm:$0xff] %v1693
        %1702 = vst [vmem:[#allocation3 + $0xb0] sm:$0xff] %v1694
        %1703 = vst [vmem:[#allocation3 + $0xb8] sm:$0xff] %v1695
        %1704 = vrot.lane.b32.xlu0 %v1208, 113
        %v1705 = vpop.permute.xlu0 %1704
        %1706 = vrot.lane.b32.xlu0 %v1210, 113
        %v1707 = vpop.permute.xlu0 %1706
        %1708 = vrot.lane.b32.xlu0 %v1212, 113
        %v1709 = vpop.permute.xlu0 %1708
        %1710 = vrot.lane.b32.xlu0 %v1214, 113
        %v1711 = vpop.permute.xlu0 %1710
        %1712 = vrot.lane.b32.xlu0 %v1216, 113
        %v1713 = vpop.permute.xlu0 %1712
        %1714 = vrot.lane.b32.xlu0 %v1218, 113
        %v1715 = vpop.permute.xlu0 %1714
        %1716 = vrot.lane.b32.xlu0 %v1220, 113
        %v1717 = vpop.permute.xlu0 %1716
        %1718 = vrot.lane.b32.xlu0 %v1222, 113
        %v1719 = vpop.permute.xlu0 %1718
        %1720 = vrot.lane.b32.xlu0 %v1209, 113
        %v1721 = vpop.permute.xlu0 %1720
        %1722 = vrot.lane.b32.xlu0 %v1211, 113
        %v1723 = vpop.permute.xlu0 %1722
        %1724 = vrot.lane.b32.xlu0 %v1213, 113
        %v1725 = vpop.permute.xlu0 %1724
        %1726 = vrot.lane.b32.xlu0 %v1215, 113
        %v1727 = vpop.permute.xlu0 %1726
        %1728 = vrot.lane.b32.xlu0 %v1217, 113
        %v1729 = vpop.permute.xlu0 %1728
        %1730 = vrot.lane.b32.xlu0 %v1219, 113
        %v1731 = vpop.permute.xlu0 %1730
        %1732 = vrot.lane.b32.xlu0 %v1221, 113
        %v1733 = vpop.permute.xlu0 %1732
        %1734 = vrot.lane.b32.xlu0 %v1223, 113
        %v1735 = vpop.permute.xlu0 %1734
        %vm1736 = vcmp.lt.s32.totalorder %v1257, 113
        %v1737 = vsel %vm1736, %v1705, %v1721
        %v1738 = vsel %vm1736, %v1707, %v1723
        %v1739 = vsel %vm1736, %v1709, %v1725
        %v1740 = vsel %vm1736, %v1711, %v1727
        %v1741 = vsel %vm1736, %v1713, %v1729
        %v1742 = vsel %vm1736, %v1715, %v1731
        %v1743 = vsel %vm1736, %v1717, %v1733
        %v1744 = vsel %vm1736, %v1719, %v1735
        %v1745 = vsel %vm1736, %v1721, %v1705
        %v1746 = vsel %vm1736, %v1723, %v1707
        %v1747 = vsel %vm1736, %v1725, %v1709
        %v1748 = vsel %vm1736, %v1727, %v1711
        %v1749 = vsel %vm1736, %v1729, %v1713
        %v1750 = vsel %vm1736, %v1731, %v1715
        %v1751 = vsel %vm1736, %v1733, %v1717
        %v1752 = vsel %vm1736, %v1735, %v1719
        %s1753 = scalar_lea.vmem [#allocation17], 12
        %v1754 = vld [vmem:[%s1753] sm:$0x3]
        %v1756 = vperm.slane %v1754, 0
        %v1757 = vperm.slane %v1754, 1
        %v1760 = vmul.f32 %v1737, %v1756
        %v1761 = vmul.f32 %v1745, %v1757
        %v1762 = vmul.f32 %v1738, %v1756
        %v1763 = vmul.f32 %v1746, %v1757
        %v1764 = vmul.f32 %v1739, %v1756
        %v1765 = vmul.f32 %v1747, %v1757
        %v1766 = vmul.f32 %v1740, %v1756
        %v1767 = vmul.f32 %v1748, %v1757
        %v1768 = vmul.f32 %v1741, %v1756
        %v1769 = vmul.f32 %v1749, %v1757
        %v1770 = vmul.f32 %v1742, %v1756
        %v1771 = vmul.f32 %v1750, %v1757
        %v1772 = vmul.f32 %v1743, %v1756
        %v1773 = vmul.f32 %v1751, %v1757
        %v1774 = vmul.f32 %v1744, %v1756
        %v1775 = vmul.f32 %v1752, %v1757
        %v1776 = vpack.c.bf16 %v1761, %v1760
        %v1777 = vpack.c.bf16 %v1763, %v1762
        %v1778 = vpack.c.bf16 %v1765, %v1764
        %v1779 = vpack.c.bf16 %v1767, %v1766
        %v1780 = vpack.c.bf16 %v1769, %v1768
        %v1781 = vpack.c.bf16 %v1771, %v1770
        %v1782 = vpack.c.bf16 %v1773, %v1772
        %v1783 = vpack.c.bf16 %v1775, %v1774
        %1784 = vst [vmem:[#allocation2 + $0xc0] sm:$0xff] %v1776
        %1785 = vst [vmem:[#allocation2 + $0xc8] sm:$0xff] %v1777
        %1786 = vst [vmem:[#allocation2 + $0xd0] sm:$0xff] %v1778
        %1787 = vst [vmem:[#allocation2 + $0xd8] sm:$0xff] %v1779
        %1788 = vst [vmem:[#allocation3 + $0xc0] sm:$0xff] %v1780
        %1789 = vst [vmem:[#allocation3 + $0xc8] sm:$0xff] %v1781
        %1790 = vst [vmem:[#allocation3 + $0xd0] sm:$0xff] %v1782
        %1791 = vst [vmem:[#allocation3 + $0xd8] sm:$0xff] %v1783
        %1792 = vrot.lane.b32.xlu0 %v1208, 112
        %v1793 = vpop.permute.xlu0 %1792
        %1794 = vrot.lane.b32.xlu0 %v1210, 112
        %v1795 = vpop.permute.xlu0 %1794
        %1796 = vrot.lane.b32.xlu0 %v1212, 112
        %v1797 = vpop.permute.xlu0 %1796
        %1798 = vrot.lane.b32.xlu0 %v1214, 112
        %v1799 = vpop.permute.xlu0 %1798
        %1800 = vrot.lane.b32.xlu0 %v1216, 112
        %v1801 = vpop.permute.xlu0 %1800
        %1802 = vrot.lane.b32.xlu0 %v1218, 112
        %v1803 = vpop.permute.xlu0 %1802
        %1804 = vrot.lane.b32.xlu0 %v1220, 112
        %v1805 = vpop.permute.xlu0 %1804
        %1806 = vrot.lane.b32.xlu0 %v1222, 112
        %v1807 = vpop.permute.xlu0 %1806
        %1808 = vrot.lane.b32.xlu0 %v1209, 112
        %v1809 = vpop.permute.xlu0 %1808
        %1810 = vrot.lane.b32.xlu0 %v1211, 112
        %v1811 = vpop.permute.xlu0 %1810
        %1812 = vrot.lane.b32.xlu0 %v1213, 112
        %v1813 = vpop.permute.xlu0 %1812
        %1814 = vrot.lane.b32.xlu0 %v1215, 112
        %v1815 = vpop.permute.xlu0 %1814
        %1816 = vrot.lane.b32.xlu0 %v1217, 112
        %v1817 = vpop.permute.xlu0 %1816
        %1818 = vrot.lane.b32.xlu0 %v1219, 112
        %v1819 = vpop.permute.xlu0 %1818
        %1820 = vrot.lane.b32.xlu0 %v1221, 112
        %v1821 = vpop.permute.xlu0 %1820
        %1822 = vrot.lane.b32.xlu0 %v1223, 112
        %v1823 = vpop.permute.xlu0 %1822
        %vm1824 = vcmp.lt.s32.totalorder %v1257, 112
        %v1825 = vsel %vm1824, %v1793, %v1809
        %v1826 = vsel %vm1824, %v1795, %v1811
        %v1827 = vsel %vm1824, %v1797, %v1813
        %v1828 = vsel %vm1824, %v1799, %v1815
        %v1829 = vsel %vm1824, %v1801, %v1817
        %v1830 = vsel %vm1824, %v1803, %v1819
        %v1831 = vsel %vm1824, %v1805, %v1821
        %v1832 = vsel %vm1824, %v1807, %v1823
        %v1833 = vsel %vm1824, %v1809, %v1793
        %v1834 = vsel %vm1824, %v1811, %v1795
        %v1835 = vsel %vm1824, %v1813, %v1797
        %v1836 = vsel %vm1824, %v1815, %v1799
        %v1837 = vsel %vm1824, %v1817, %v1801
        %v1838 = vsel %vm1824, %v1819, %v1803
        %v1839 = vsel %vm1824, %v1821, %v1805
        %v1840 = vsel %vm1824, %v1823, %v1807
        %s1841 = scalar_lea.vmem [#allocation17], 14
        %v1842 = vld [vmem:[%s1841] sm:$0x3]
        %v1844 = vperm.slane %v1842, 0
        %v1845 = vperm.slane %v1842, 1
        %v1848 = vmul.f32 %v1825, %v1844
        %v1849 = vmul.f32 %v1833, %v1845
        %v1850 = vmul.f32 %v1826, %v1844
        %v1851 = vmul.f32 %v1834, %v1845
        %v1852 = vmul.f32 %v1827, %v1844
        %v1853 = vmul.f32 %v1835, %v1845
        %v1854 = vmul.f32 %v1828, %v1844
        %v1855 = vmul.f32 %v1836, %v1845
        %v1856 = vmul.f32 %v1829, %v1844
        %v1857 = vmul.f32 %v1837, %v1845
        %v1858 = vmul.f32 %v1830, %v1844
        %v1859 = vmul.f32 %v1838, %v1845
        %v1860 = vmul.f32 %v1831, %v1844
        %v1861 = vmul.f32 %v1839, %v1845
        %v1862 = vmul.f32 %v1832, %v1844
        %v1863 = vmul.f32 %v1840, %v1845
        %v1864 = vpack.c.bf16 %v1849, %v1848
        %v1865 = vpack.c.bf16 %v1851, %v1850
        %v1866 = vpack.c.bf16 %v1853, %v1852
        %v1867 = vpack.c.bf16 %v1855, %v1854
        %v1868 = vpack.c.bf16 %v1857, %v1856
        %v1869 = vpack.c.bf16 %v1859, %v1858
        %v1870 = vpack.c.bf16 %v1861, %v1860
        %v1871 = vpack.c.bf16 %v1863, %v1862
        %1872 = vst [vmem:[#allocation2 + $0xe0] sm:$0xff] %v1864
        %1873 = vst [vmem:[#allocation2 + $0xe8] sm:$0xff] %v1865
        %1874 = vst [vmem:[#allocation2 + $0xf0] sm:$0xff] %v1866
        %1875 = vst [vmem:[#allocation2 + $0xf8] sm:$0xff] %v1867
        %1876 = vst [vmem:[#allocation3 + $0xe0] sm:$0xff] %v1868
        %1877 = vst [vmem:[#allocation3 + $0xe8] sm:$0xff] %v1869
        %1878 = vst [vmem:[#allocation3 + $0xf0] sm:$0xff] %v1870
        %1879 = vst [vmem:[#allocation3 + $0xf8] sm:$0xff] %v1871
        %1880 = vrot.lane.b32.xlu0 %v1208, 111
        %v1881 = vpop.permute.xlu0 %1880
        %1882 = vrot.lane.b32.xlu0 %v1210, 111
        %v1883 = vpop.permute.xlu0 %1882
        %1884 = vrot.lane.b32.xlu0 %v1212, 111
        %v1885 = vpop.permute.xlu0 %1884
        %1886 = vrot.lane.b32.xlu0 %v1214, 111
        %v1887 = vpop.permute.xlu0 %1886
        %1888 = vrot.lane.b32.xlu0 %v1216, 111
        %v1889 = vpop.permute.xlu0 %1888
        %1890 = vrot.lane.b32.xlu0 %v1218, 111
        %v1891 = vpop.permute.xlu0 %1890
        %1892 = vrot.lane.b32.xlu0 %v1220, 111
        %v1893 = vpop.permute.xlu0 %1892
        %1894 = vrot.lane.b32.xlu0 %v1222, 111
        %v1895 = vpop.permute.xlu0 %1894
        %1896 = vrot.lane.b32.xlu0 %v1209, 111
        %v1897 = vpop.permute.xlu0 %1896
        %1898 = vrot.lane.b32.xlu0 %v1211, 111
        %v1899 = vpop.permute.xlu0 %1898
        %1900 = vrot.lane.b32.xlu0 %v1213, 111
        %v1901 = vpop.permute.xlu0 %1900
        %1902 = vrot.lane.b32.xlu0 %v1215, 111
        %v1903 = vpop.permute.xlu0 %1902
        %1904 = vrot.lane.b32.xlu0 %v1217, 111
        %v1905 = vpop.permute.xlu0 %1904
        %1906 = vrot.lane.b32.xlu0 %v1219, 111
        %v1907 = vpop.permute.xlu0 %1906
        %1908 = vrot.lane.b32.xlu0 %v1221, 111
        %v1909 = vpop.permute.xlu0 %1908
        %1910 = vrot.lane.b32.xlu0 %v1223, 111
        %v1911 = vpop.permute.xlu0 %1910
        %vm1912 = vcmp.lt.s32.totalorder %v1257, 111
        %v1913 = vsel %vm1912, %v1881, %v1897
        %v1914 = vsel %vm1912, %v1883, %v1899
        %v1915 = vsel %vm1912, %v1885, %v1901
        %v1916 = vsel %vm1912, %v1887, %v1903
        %v1917 = vsel %vm1912, %v1889, %v1905
        %v1918 = vsel %vm1912, %v1891, %v1907
        %v1919 = vsel %vm1912, %v1893, %v1909
        %v1920 = vsel %vm1912, %v1895, %v1911
        %v1921 = vsel %vm1912, %v1897, %v1881
        %v1922 = vsel %vm1912, %v1899, %v1883
        %v1923 = vsel %vm1912, %v1901, %v1885
        %v1924 = vsel %vm1912, %v1903, %v1887
        %v1925 = vsel %vm1912, %v1905, %v1889
        %v1926 = vsel %vm1912, %v1907, %v1891
        %v1927 = vsel %vm1912, %v1909, %v1893
        %v1928 = vsel %vm1912, %v1911, %v1895
        %s1929 = scalar_lea.vmem [#allocation17], 16
        %v1930 = vld [vmem:[%s1929] sm:$0x3]
        %v1932 = vperm.slane %v1930, 0
        %v1933 = vperm.slane %v1930, 1
        %v1936 = vmul.f32 %v1913, %v1932
        %v1937 = vmul.f32 %v1921, %v1933
        %v1938 = vmul.f32 %v1914, %v1932
        %v1939 = vmul.f32 %v1922, %v1933
        %v1940 = vmul.f32 %v1915, %v1932
        %v1941 = vmul.f32 %v1923, %v1933
        %v1942 = vmul.f32 %v1916, %v1932
        %v1943 = vmul.f32 %v1924, %v1933
        %v1944 = vmul.f32 %v1917, %v1932
        %v1945 = vmul.f32 %v1925, %v1933
        %v1946 = vmul.f32 %v1918, %v1932
        %v1947 = vmul.f32 %v1926, %v1933
        %v1948 = vmul.f32 %v1919, %v1932
        %v1949 = vmul.f32 %v1927, %v1933
        %v1950 = vmul.f32 %v1920, %v1932
        %v1951 = vmul.f32 %v1928, %v1933
        %v1952 = vpack.c.bf16 %v1937, %v1936
        %v1953 = vpack.c.bf16 %v1939, %v1938
        %v1954 = vpack.c.bf16 %v1941, %v1940
        %v1955 = vpack.c.bf16 %v1943, %v1942
        %v1956 = vpack.c.bf16 %v1945, %v1944
        %v1957 = vpack.c.bf16 %v1947, %v1946
        %v1958 = vpack.c.bf16 %v1949, %v1948
        %v1959 = vpack.c.bf16 %v1951, %v1950
        %1960 = vst [vmem:[#allocation2 + $0x100] sm:$0xff] %v1952
        %1961 = vst [vmem:[#allocation2 + $0x108] sm:$0xff] %v1953
        %1962 = vst [vmem:[#allocation2 + $0x110] sm:$0xff] %v1954
        %1963 = vst [vmem:[#allocation2 + $0x118] sm:$0xff] %v1955
        %1964 = vst [vmem:[#allocation3 + $0x100] sm:$0xff] %v1956
        %1965 = vst [vmem:[#allocation3 + $0x108] sm:$0xff] %v1957
        %1966 = vst [vmem:[#allocation3 + $0x110] sm:$0xff] %v1958
        %1967 = vst [vmem:[#allocation3 + $0x118] sm:$0xff] %v1959
        %v1968 = vld [vmem:[#allocation11] sm:$0xff]
        %v1969 = vld [vmem:[#allocation11 + $0x8] sm:$0xf]
        %v1970 = vld [vmem:[#allocation11 + $0xc] sm:$0xff]
        %v1971 = vld [vmem:[#allocation11 + $0x14] sm:$0xf]
        %v1972 = vld [vmem:[#allocation11 + $0x18] sm:$0xff]
        %v1973 = vld [vmem:[#allocation11 + $0x20] sm:$0xf]
        %v1974 = vld [vmem:[#allocation11 + $0x24] sm:$0xff]
        %v1975 = vld [vmem:[#allocation11 + $0x2c] sm:$0xf]
        %v1976 = vld [vmem:[#allocation2] sm:$0xff]
        %v1977 = vld [vmem:[#allocation2 + $0x8] sm:$0xff]
        %v1978 = vld [vmem:[#allocation2 + $0x10] sm:$0xff]
        %v1979 = vld [vmem:[#allocation2 + $0x18] sm:$0xff]
        %v1980 = vld [vmem:[#allocation2 + $0x20] sm:$0xff]
        %v1981 = vld [vmem:[#allocation2 + $0x28] sm:$0xff]
        %v1982 = vld [vmem:[#allocation2 + $0x30] sm:$0xff]
        %v1983 = vld [vmem:[#allocation2 + $0x38] sm:$0xff]
        %v1984 = vld [vmem:[#allocation2 + $0x40] sm:$0xff]
        %v1985 = vld [vmem:[#allocation2 + $0x48] sm:$0xff]
        %v1986 = vld [vmem:[#allocation2 + $0x50] sm:$0xff]
        %v1987 = vld [vmem:[#allocation2 + $0x58] sm:$0xff]
        %v1988 = vld [vmem:[#allocation2 + $0x60] sm:$0xff]
        %v1989 = vld [vmem:[#allocation2 + $0x68] sm:$0xff]
        %v1990 = vld [vmem:[#allocation2 + $0x70] sm:$0xff]
        %v1991 = vld [vmem:[#allocation2 + $0x78] sm:$0xff]
        %v1992 = vld [vmem:[#allocation2 + $0x80] sm:$0xff]
        %v1993 = vld [vmem:[#allocation2 + $0x88] sm:$0xff]
        %v1994 = vld [vmem:[#allocation2 + $0x90] sm:$0xff]
        %v1995 = vld [vmem:[#allocation2 + $0x98] sm:$0xff]
        %v1996 = vld [vmem:[#allocation2 + $0xa0] sm:$0xff]
        %v1997 = vld [vmem:[#allocation2 + $0xa8] sm:$0xff]
        %v1998 = vld [vmem:[#allocation2 + $0xb0] sm:$0xff]
        %v1999 = vld [vmem:[#allocation2 + $0xb8] sm:$0xff]
        %v2000 = vld [vmem:[#allocation2 + $0xc0] sm:$0xff]
        %v2001 = vld [vmem:[#allocation2 + $0xc8] sm:$0xff]
        %v2002 = vld [vmem:[#allocation2 + $0xd0] sm:$0xff]
        %v2003 = vld [vmem:[#allocation2 + $0xd8] sm:$0xff]
        %v2004 = vld [vmem:[#allocation2 + $0xe0] sm:$0xff]
        %v2005 = vld [vmem:[#allocation2 + $0xe8] sm:$0xff]
        %v2006 = vld [vmem:[#allocation2 + $0xf0] sm:$0xff]
        %v2007 = vld [vmem:[#allocation2 + $0xf8] sm:$0xff]
        %v2008 = vld [vmem:[#allocation2 + $0x100] sm:$0xff]
        %v2009 = vld [vmem:[#allocation2 + $0x108] sm:$0xff]
        %v2010 = vld [vmem:[#allocation2 + $0x110] sm:$0xff]
        %v2011 = vld [vmem:[#allocation2 + $0x118] sm:$0xff]
        %v2012 = vld [vmem:[%s4] sm:$0xff]
        %v2013 = vld [vmem:[%s4 + $0x8] sm:$0xff]
        %v2014 = vld [vmem:[%s4 + $0x10] sm:$0xff]
        %v2015 = vld [vmem:[%s4 + $0x18] sm:$0xff]
        %2017 = vset.pattern.permute.xlu0 0
        %2018 = vperm.xlu0 %2017, %v2012
        %v2019 = vpop.permute.xlu0 %2018
        %2022 = vset.pattern.permute.xlu0 0
        %2023 = vperm.xlu0 %2022, %v2013
        %v2024 = vpop.permute.xlu0 %2023
        %2027 = vset.pattern.permute.xlu0 0
        %2028 = vperm.xlu0 %2027, %v2014
        %v2029 = vpop.permute.xlu0 %2028
        %2032 = vset.pattern.permute.xlu0 0
        %2033 = vperm.xlu0 %2032, %v2015
        %v2034 = vpop.permute.xlu0 %2033
        %v2044 = vunpack.c.l.b16 %v1968
        %v2045 = vunpack.c.h.b16 %v1968
        %v2046 = vunpack.c.l.b16 %v1969
        %v2047 = vunpack.c.l.b16 %v1970
        %v2048 = vunpack.c.h.b16 %v1970
        %v2049 = vunpack.c.l.b16 %v1971
        %v2050 = vunpack.c.l.b16 %v1972
        %v2051 = vunpack.c.h.b16 %v1972
        %v2052 = vunpack.c.l.b16 %v1973
        %v2053 = vunpack.c.l.b16 %v1974
        %v2054 = vunpack.c.h.b16 %v1974
        %v2055 = vunpack.c.l.b16 %v1975
        %v2056 = vpack.c.b16 %v2047, %v2044
        %v2057 = vpack.c.b16 %v2048, %v2045
        %v2058 = vpack.c.b16 %v2049, %v2046
        %v2059 = vpack.c.b16 %v2053, %v2050
        %v2060 = vpack.c.b16 %v2054, %v2051
        %v2061 = vpack.c.b16 %v2055, %v2052
        %v2102 = vunpack.c.l.b16 %v1976
        %v2103 = vunpack.c.h.b16 %v1976
        %v2104 = vunpack.c.l.b16 %v1977
        %v2105 = vunpack.c.h.b16 %v1977
        %v2106 = vunpack.c.l.b16 %v1978
        %v2107 = vunpack.c.h.b16 %v1978
        %v2108 = vunpack.c.l.b16 %v1979
        %v2109 = vunpack.c.h.b16 %v1979
        %v2110 = vunpack.c.l.b16 %v1980
        %v2111 = vunpack.c.h.b16 %v1980
        %v2112 = vunpack.c.l.b16 %v1981
        %v2113 = vunpack.c.h.b16 %v1981
        %v2114 = vunpack.c.l.b16 %v1982
        %v2115 = vunpack.c.h.b16 %v1982
        %v2116 = vunpack.c.l.b16 %v1983
        %v2117 = vunpack.c.h.b16 %v1983
        %v2118 = vunpack.c.l.b16 %v1984
        %v2119 = vunpack.c.h.b16 %v1984
        %v2120 = vunpack.c.l.b16 %v1985
        %v2121 = vunpack.c.h.b16 %v1985
        %v2122 = vunpack.c.l.b16 %v1986
        %v2123 = vunpack.c.h.b16 %v1986
        %v2124 = vunpack.c.l.b16 %v1987
        %v2125 = vunpack.c.h.b16 %v1987
        %v2126 = vunpack.c.l.b16 %v1988
        %v2127 = vunpack.c.h.b16 %v1988
        %v2128 = vunpack.c.l.b16 %v1989
        %v2129 = vunpack.c.h.b16 %v1989
        %v2130 = vunpack.c.l.b16 %v1990
        %v2131 = vunpack.c.h.b16 %v1990
        %v2132 = vunpack.c.l.b16 %v1991
        %v2133 = vunpack.c.h.b16 %v1991
        %v2134 = vunpack.c.l.b16 %v1992
        %v2135 = vunpack.c.h.b16 %v1992
        %v2136 = vunpack.c.l.b16 %v1993
        %v2137 = vunpack.c.h.b16 %v1993
        %v2138 = vunpack.c.l.b16 %v1994
        %v2139 = vunpack.c.h.b16 %v1994
        %v2140 = vunpack.c.l.b16 %v1995
        %v2141 = vunpack.c.h.b16 %v1995
        %v2142 = vunpack.c.l.b16 %v1996
        %v2143 = vunpack.c.h.b16 %v1996
        %v2144 = vunpack.c.l.b16 %v1997
        %v2145 = vunpack.c.h.b16 %v1997
        %v2146 = vunpack.c.l.b16 %v1998
        %v2147 = vunpack.c.h.b16 %v1998
        %v2148 = vunpack.c.l.b16 %v1999
        %v2149 = vunpack.c.h.b16 %v1999
        %v2150 = vunpack.c.l.b16 %v2000
        %v2151 = vunpack.c.h.b16 %v2000
        %v2152 = vunpack.c.l.b16 %v2001
        %v2153 = vunpack.c.h.b16 %v2001
        %v2154 = vunpack.c.l.b16 %v2002
        %v2155 = vunpack.c.h.b16 %v2002
        %v2156 = vunpack.c.l.b16 %v2003
        %v2157 = vunpack.c.h.b16 %v2003
        %v2158 = vunpack.c.l.b16 %v2004
        %v2159 = vunpack.c.h.b16 %v2004
        %v2160 = vunpack.c.l.b16 %v2005
        %v2161 = vunpack.c.h.b16 %v2005
        %v2162 = vunpack.c.l.b16 %v2006
        %v2163 = vunpack.c.h.b16 %v2006
        %v2164 = vunpack.c.l.b16 %v2007
        %v2165 = vunpack.c.h.b16 %v2007
        %v2166 = vunpack.c.l.b16 %v2008
        %v2167 = vunpack.c.h.b16 %v2008
        %v2168 = vunpack.c.l.b16 %v2009
        %v2169 = vunpack.c.h.b16 %v2009
        %v2170 = vunpack.c.l.b16 %v2010
        %v2171 = vunpack.c.h.b16 %v2010
        %v2172 = vunpack.c.l.b16 %v2011
        %v2173 = vunpack.c.h.b16 %v2011
        %v2174 = vpack.c.b16 %v2104, %v2102
        %v2175 = vpack.c.b16 %v2105, %v2103
        %v2176 = vpack.c.b16 %v2108, %v2106
        %v2177 = vpack.c.b16 %v2109, %v2107
        %v2178 = vpack.c.b16 %v2112, %v2110
        %v2179 = vpack.c.b16 %v2113, %v2111
        %v2180 = vpack.c.b16 %v2116, %v2114
        %v2181 = vpack.c.b16 %v2117, %v2115
        %v2182 = vpack.c.b16 %v2120, %v2118
        %v2183 = vpack.c.b16 %v2121, %v2119
        %v2184 = vpack.c.b16 %v2124, %v2122
        %v2185 = vpack.c.b16 %v2125, %v2123
        %v2186 = vpack.c.b16 %v2128, %v2126
        %v2187 = vpack.c.b16 %v2129, %v2127
        %v2188 = vpack.c.b16 %v2132, %v2130
        %v2189 = vpack.c.b16 %v2133, %v2131
        %v2190 = vpack.c.b16 %v2136, %v2134
        %v2191 = vpack.c.b16 %v2137, %v2135
        %v2192 = vpack.c.b16 %v2140, %v2138
        %v2193 = vpack.c.b16 %v2141, %v2139
        %v2194 = vpack.c.b16 %v2144, %v2142
        %v2195 = vpack.c.b16 %v2145, %v2143
        %v2196 = vpack.c.b16 %v2148, %v2146
        %v2197 = vpack.c.b16 %v2149, %v2147
        %v2198 = vpack.c.b16 %v2152, %v2150
        %v2199 = vpack.c.b16 %v2153, %v2151
        %v2200 = vpack.c.b16 %v2156, %v2154
        %v2201 = vpack.c.b16 %v2157, %v2155
        %v2202 = vpack.c.b16 %v2160, %v2158
        %v2203 = vpack.c.b16 %v2161, %v2159
        %v2204 = vpack.c.b16 %v2164, %v2162
        %v2205 = vpack.c.b16 %v2165, %v2163
        %v2206 = vpack.c.b16 %v2168, %v2166
        %v2207 = vpack.c.b16 %v2169, %v2167
        %v2208 = vpack.c.b16 %v2172, %v2170
        %v2209 = vpack.c.b16 %v2173, %v2171
        %vm2246 = vcmask 261120
        %v2248 = vsel %vm2246, %v2058, 0
        %v2251 = vsel %vm2246, %v2061, 0
        %2253 = vmatpush.bf16.msra.mxu0 %v2188
        %2254 = vmatpush.bf16.msra.mxu0 %v2186
        %2255 = vmatpush.bf16.msra.mxu0 %v2184
        %2256 = vmatpush.bf16.msra.mxu0 %v2182
        %2257 = vmatpush.bf16.msra.mxu0 %v2180
        %2258 = vmatpush.bf16.msra.mxu0 %v2178
        %2259 = vmatpush.bf16.msra.mxu0 %v2176
        %2260 = vmatpush.bf16.msra.mxu0 %v2174
        %2261 = vmatmul.bf16.gmra.mxu0 %v2056
        %v2262 = vpop.f32.mrf.mxu0
        %v2263 = vadd.f32 %v2019, %v2262
        %v2264 = vpop.f32.mrf.mxu0
        %v2265 = vadd.f32 %v2024, %v2264
        %2266 = vmatmul.bf16.gmra.mxu0 %v2059
        %v2267 = vpop.f32.mrf.mxu0
        %v2268 = vadd.f32 %v2029, %v2267
        %v2269 = vpop.f32.mrf.mxu0
        %v2270 = vadd.f32 %v2034, %v2269
        %2271 = vdwg.mxu0
        %2272 = vmatpush.bf16.msra.mxu0 %v2204
        %2273 = vmatpush.bf16.msra.mxu0 %v2202
        %2274 = vmatpush.bf16.msra.mxu0 %v2200
        %2275 = vmatpush.bf16.msra.mxu0 %v2198
        %2276 = vmatpush.bf16.msra.mxu0 %v2196
        %2277 = vmatpush.bf16.msra.mxu0 %v2194
        %2278 = vmatpush.bf16.msra.mxu0 %v2192
        %2279 = vmatpush.bf16.msra.mxu0 %v2190
        %2280 = vmatmul.bf16.gmra.mxu0 %v2057
        %v2281 = vpop.f32.mrf.mxu0
        %v2282 = vadd.f32 %v2263, %v2281
        %v2283 = vpop.f32.mrf.mxu0
        %v2284 = vadd.f32 %v2265, %v2283
        %2285 = vmatmul.bf16.gmra.mxu0 %v2060
        %v2286 = vpop.f32.mrf.mxu0
        %v2287 = vadd.f32 %v2268, %v2286
        %v2288 = vpop.f32.mrf.mxu0
        %v2289 = vadd.f32 %v2270, %v2288
        %2290 = vdwg.mxu0
        %2291 = vmatpush.bf16.msra.mxu0 0
        %2292 = vmatpush.bf16.msra.mxu0 0
        %2293 = vmatpush.bf16.msra.mxu0 0
        %2294 = vmatpush.bf16.msra.mxu0 0
        %2295 = vmatpush.bf16.msra.mxu0 0
        %2296 = vmatpush.bf16.msra.mxu0 0
        %2297 = vmatpush.bf16.msra.mxu0 %v2208
        %2298 = vmatpush.bf16.msra.mxu0 %v2206
        %2299 = vmatmul.bf16.gmra.mxu0 %v2248
        %v2300 = vpop.f32.mrf.mxu0
        %v2301 = vadd.f32 %v2282, %v2300
        %v2302 = vpop.f32.mrf.mxu0
        %v2303 = vadd.f32 %v2284, %v2302
        %2304 = vmatmul.bf16.gmra.mxu0 %v2251
        %v2305 = vpop.f32.mrf.mxu0
        %v2306 = vadd.f32 %v2287, %v2305
        %v2307 = vpop.f32.mrf.mxu0
        %v2308 = vadd.f32 %v2289, %v2307
        %2309 = vdwg.mxu0
        %2310 = vmatpush.bf16.msra.mxu0 %v2189
        %2311 = vmatpush.bf16.msra.mxu0 %v2187
        %2312 = vmatpush.bf16.msra.mxu0 %v2185
        %2313 = vmatpush.bf16.msra.mxu0 %v2183
        %2314 = vmatpush.bf16.msra.mxu0 %v2181
        %2315 = vmatpush.bf16.msra.mxu0 %v2179
        %2316 = vmatpush.bf16.msra.mxu0 %v2177
        %2317 = vmatpush.bf16.msra.mxu0 %v2175
        %2318 = vmatmul.bf16.gmra.mxu0 %v2056
        %v2319 = vpop.f32.mrf.mxu0
        %v2320 = vadd.f32 %v2019, %v2319
        %v2321 = vpop.f32.mrf.mxu0
        %v2322 = vadd.f32 %v2024, %v2321
        %2323 = vmatmul.bf16.gmra.mxu0 %v2059
        %v2324 = vpop.f32.mrf.mxu0
        %v2325 = vadd.f32 %v2029, %v2324
        %v2326 = vpop.f32.mrf.mxu0
        %v2327 = vadd.f32 %v2034, %v2326
        %2328 = vdwg.mxu0
        %2329 = vmatpush.bf16.msra.mxu0 %v2205
        %2330 = vmatpush.bf16.msra.mxu0 %v2203
        %2331 = vmatpush.bf16.msra.mxu0 %v2201
        %2332 = vmatpush.bf16.msra.mxu0 %v2199
        %2333 = vmatpush.bf16.msra.mxu0 %v2197
        %2334 = vmatpush.bf16.msra.mxu0 %v2195
        %2335 = vmatpush.bf16.msra.mxu0 %v2193
        %2336 = vmatpush.bf16.msra.mxu0 %v2191
        %2337 = vmatmul.bf16.gmra.mxu0 %v2057
        %v2338 = vpop.f32.mrf.mxu0
        %v2339 = vadd.f32 %v2320, %v2338
        %v2340 = vpop.f32.mrf.mxu0
        %v2341 = vadd.f32 %v2322, %v2340
        %2342 = vmatmul.bf16.gmra.mxu0 %v2060
        %v2343 = vpop.f32.mrf.mxu0
        %v2344 = vadd.f32 %v2325, %v2343
        %v2345 = vpop.f32.mrf.mxu0
        %v2346 = vadd.f32 %v2327, %v2345
        %2347 = vdwg.mxu0
        %2348 = vmatpush.bf16.msra.mxu0 0
        %2349 = vmatpush.bf16.msra.mxu0 0
        %2350 = vmatpush.bf16.msra.mxu0 0
        %2351 = vmatpush.bf16.msra.mxu0 0
        %2352 = vmatpush.bf16.msra.mxu0 0
        %2353 = vmatpush.bf16.msra.mxu0 0
        %2354 = vmatpush.bf16.msra.mxu0 %v2209
        %2355 = vmatpush.bf16.msra.mxu0 %v2207
        %2356 = vmatmul.bf16.gmra.mxu0 %v2248
        %v2357 = vpop.f32.mrf.mxu0
        %v2358 = vadd.f32 %v2339, %v2357
        %v2359 = vpop.f32.mrf.mxu0
        %v2360 = vadd.f32 %v2341, %v2359
        %2361 = vmatmul.bf16.gmra.mxu0 %v2251
        %v2362 = vpop.f32.mrf.mxu0
        %v2363 = vadd.f32 %v2344, %v2362
        %v2364 = vpop.f32.mrf.mxu0
        %v2365 = vadd.f32 %v2346, %v2364
        %2366 = vdwg.mxu0
        %v2367 = vmax.f32 %v2301, 0.0
        %v2368 = vmax.f32 %v2358, 0.0
        %v2369 = vmax.f32 %v2303, 0.0
        %v2370 = vmax.f32 %v2360, 0.0
        %v2371 = vmax.f32 %v2306, 0.0
        %v2372 = vmax.f32 %v2363, 0.0
        %v2373 = vmax.f32 %v2308, 0.0
        %v2374 = vmax.f32 %v2365, 0.0
        %v2375 = vld [vmem:[#allocation12] sm:$0xff]
        %v2376 = vld [vmem:[#allocation12 + $0x8] sm:$0xf]
        %v2377 = vld [vmem:[#allocation12 + $0xc] sm:$0xff]
        %v2378 = vld [vmem:[#allocation12 + $0x14] sm:$0xf]
        %v2379 = vld [vmem:[#allocation12 + $0x18] sm:$0xff]
        %v2380 = vld [vmem:[#allocation12 + $0x20] sm:$0xf]
        %v2381 = vld [vmem:[#allocation12 + $0x24] sm:$0xff]
        %v2382 = vld [vmem:[#allocation12 + $0x2c] sm:$0xf]
        %v2383 = vld [vmem:[#allocation12 + $0x30] sm:$0xff]
        %v2384 = vld [vmem:[#allocation12 + $0x38] sm:$0xf]
        %v2385 = vld [vmem:[#allocation12 + $0x3c] sm:$0xff]
        %v2386 = vld [vmem:[#allocation12 + $0x44] sm:$0xf]
        %v2387 = vld [vmem:[#allocation3] sm:$0xff]
        %v2388 = vld [vmem:[#allocation3 + $0x8] sm:$0xff]
        %v2389 = vld [vmem:[#allocation3 + $0x10] sm:$0xff]
        %v2390 = vld [vmem:[#allocation3 + $0x18] sm:$0xff]
        %v2391 = vld [vmem:[#allocation3 + $0x20] sm:$0xff]
        %v2392 = vld [vmem:[#allocation3 + $0x28] sm:$0xff]
        %v2393 = vld [vmem:[#allocation3 + $0x30] sm:$0xff]
        %v2394 = vld [vmem:[#allocation3 + $0x38] sm:$0xff]
        %v2395 = vld [vmem:[#allocation3 + $0x40] sm:$0xff]
        %v2396 = vld [vmem:[#allocation3 + $0x48] sm:$0xff]
        %v2397 = vld [vmem:[#allocation3 + $0x50] sm:$0xff]
        %v2398 = vld [vmem:[#allocation3 + $0x58] sm:$0xff]
        %v2399 = vld [vmem:[#allocation3 + $0x60] sm:$0xff]
        %v2400 = vld [vmem:[#allocation3 + $0x68] sm:$0xff]
        %v2401 = vld [vmem:[#allocation3 + $0x70] sm:$0xff]
        %v2402 = vld [vmem:[#allocation3 + $0x78] sm:$0xff]
        %v2403 = vld [vmem:[#allocation3 + $0x80] sm:$0xff]
        %v2404 = vld [vmem:[#allocation3 + $0x88] sm:$0xff]
        %v2405 = vld [vmem:[#allocation3 + $0x90] sm:$0xff]
        %v2406 = vld [vmem:[#allocation3 + $0x98] sm:$0xff]
        %v2407 = vld [vmem:[#allocation3 + $0xa0] sm:$0xff]
        %v2408 = vld [vmem:[#allocation3 + $0xa8] sm:$0xff]
        %v2409 = vld [vmem:[#allocation3 + $0xb0] sm:$0xff]
        %v2410 = vld [vmem:[#allocation3 + $0xb8] sm:$0xff]
        %v2411 = vld [vmem:[#allocation3 + $0xc0] sm:$0xff]
        %v2412 = vld [vmem:[#allocation3 + $0xc8] sm:$0xff]
        %v2413 = vld [vmem:[#allocation3 + $0xd0] sm:$0xff]
        %v2414 = vld [vmem:[#allocation3 + $0xd8] sm:$0xff]
        %v2415 = vld [vmem:[#allocation3 + $0xe0] sm:$0xff]
        %v2416 = vld [vmem:[#allocation3 + $0xe8] sm:$0xff]
        %v2417 = vld [vmem:[#allocation3 + $0xf0] sm:$0xff]
        %v2418 = vld [vmem:[#allocation3 + $0xf8] sm:$0xff]
        %v2419 = vld [vmem:[#allocation3 + $0x100] sm:$0xff]
        %v2420 = vld [vmem:[#allocation3 + $0x108] sm:$0xff]
        %v2421 = vld [vmem:[#allocation3 + $0x110] sm:$0xff]
        %v2422 = vld [vmem:[#allocation3 + $0x118] sm:$0xff]
        %v2423 = vld [vmem:[%s6] sm:$0xff]
        %v2424 = vld [vmem:[%s6 + $0x8] sm:$0xff]
        %v2425 = vld [vmem:[%s6 + $0x10] sm:$0xff]
        %v2426 = vld [vmem:[%s6 + $0x18] sm:$0xff]
        %v2427 = vld [vmem:[%s6 + $0x20] sm:$0xff]
        %v2428 = vld [vmem:[%s6 + $0x28] sm:$0xff]
        %2430 = vset.pattern.permute.xlu0 0
        %2431 = vperm.xlu0 %2430, %v2423
        %v2432 = vpop.permute.xlu0 %2431
        %2435 = vset.pattern.permute.xlu0 0
        %2436 = vperm.xlu0 %2435, %v2424
        %v2437 = vpop.permute.xlu0 %2436
        %2440 = vset.pattern.permute.xlu0 0
        %2441 = vperm.xlu0 %2440, %v2425
        %v2442 = vpop.permute.xlu0 %2441
        %2445 = vset.pattern.permute.xlu0 0
        %2446 = vperm.xlu0 %2445, %v2426
        %v2447 = vpop.permute.xlu0 %2446
        %2450 = vset.pattern.permute.xlu0 0
        %2451 = vperm.xlu0 %2450, %v2427
        %v2452 = vpop.permute.xlu0 %2451
        %2455 = vset.pattern.permute.xlu0 0
        %2456 = vperm.xlu0 %2455, %v2428
        %v2457 = vpop.permute.xlu0 %2456
        %v2471 = vunpack.c.l.b16 %v2375
        %v2472 = vunpack.c.h.b16 %v2375
        %v2473 = vunpack.c.l.b16 %v2376
        %v2474 = vunpack.c.l.b16 %v2377
        %v2475 = vunpack.c.h.b16 %v2377
        %v2476 = vunpack.c.l.b16 %v2378
        %v2477 = vunpack.c.l.b16 %v2379
        %v2478 = vunpack.c.h.b16 %v2379
        %v2479 = vunpack.c.l.b16 %v2380
        %v2480 = vunpack.c.l.b16 %v2381
        %v2481 = vunpack.c.h.b16 %v2381
        %v2482 = vunpack.c.l.b16 %v2382
        %v2483 = vunpack.c.l.b16 %v2383
        %v2484 = vunpack.c.h.b16 %v2383
        %v2485 = vunpack.c.l.b16 %v2384
        %v2486 = vunpack.c.l.b16 %v2385
        %v2487 = vunpack.c.h.b16 %v2385
        %v2488 = vunpack.c.l.b16 %v2386
        %v2489 = vpack.c.b16 %v2474, %v2471
        %v2490 = vpack.c.b16 %v2475, %v2472
        %v2491 = vpack.c.b16 %v2476, %v2473
        %v2492 = vpack.c.b16 %v2480, %v2477
        %v2493 = vpack.c.b16 %v2481, %v2478
        %v2494 = vpack.c.b16 %v2482, %v2479
        %v2495 = vpack.c.b16 %v2486, %v2483
        %v2496 = vpack.c.b16 %v2487, %v2484
        %v2497 = vpack.c.b16 %v2488, %v2485
        %v2540 = vunpack.c.l.b16 %v2387
        %v2541 = vunpack.c.h.b16 %v2387
        %v2542 = vunpack.c.l.b16 %v2388
        %v2543 = vunpack.c.h.b16 %v2388
        %v2544 = vunpack.c.l.b16 %v2389
        %v2545 = vunpack.c.h.b16 %v2389
        %v2546 = vunpack.c.l.b16 %v2390
        %v2547 = vunpack.c.h.b16 %v2390
        %v2548 = vunpack.c.l.b16 %v2391
        %v2549 = vunpack.c.h.b16 %v2391
        %v2550 = vunpack.c.l.b16 %v2392
        %v2551 = vunpack.c.h.b16 %v2392
        %v2552 = vunpack.c.l.b16 %v2393
        %v2553 = vunpack.c.h.b16 %v2393
        %v2554 = vunpack.c.l.b16 %v2394
        %v2555 = vunpack.c.h.b16 %v2394
        %v2556 = vunpack.c.l.b16 %v2395
        %v2557 = vunpack.c.h.b16 %v2395
        %v2558 = vunpack.c.l.b16 %v2396
        %v2559 = vunpack.c.h.b16 %v2396
        %v2560 = vunpack.c.l.b16 %v2397
        %v2561 = vunpack.c.h.b16 %v2397
        %v2562 = vunpack.c.l.b16 %v2398
        %v2563 = vunpack.c.h.b16 %v2398
        %v2564 = vunpack.c.l.b16 %v2399
        %v2565 = vunpack.c.h.b16 %v2399
        %v2566 = vunpack.c.l.b16 %v2400
        %v2567 = vunpack.c.h.b16 %v2400
        %v2568 = vunpack.c.l.b16 %v2401
        %v2569 = vunpack.c.h.b16 %v2401
        %v2570 = vunpack.c.l.b16 %v2402
        %v2571 = vunpack.c.h.b16 %v2402
        %v2572 = vunpack.c.l.b16 %v2403
        %v2573 = vunpack.c.h.b16 %v2403
        %v2574 = vunpack.c.l.b16 %v2404
        %v2575 = vunpack.c.h.b16 %v2404
        %v2576 = vunpack.c.l.b16 %v2405
        %v2577 = vunpack.c.h.b16 %v2405
        %v2578 = vunpack.c.l.b16 %v2406
        %v2579 = vunpack.c.h.b16 %v2406
        %v2580 = vunpack.c.l.b16 %v2407
        %v2581 = vunpack.c.h.b16 %v2407
        %v2582 = vunpack.c.l.b16 %v2408
        %v2583 = vunpack.c.h.b16 %v2408
        %v2584 = vunpack.c.l.b16 %v2409
        %v2585 = vunpack.c.h.b16 %v2409
        %v2586 = vunpack.c.l.b16 %v2410
        %v2587 = vunpack.c.h.b16 %v2410
        %v2588 = vunpack.c.l.b16 %v2411
        %v2589 = vunpack.c.h.b16 %v2411
        %v2590 = vunpack.c.l.b16 %v2412
        %v2591 = vunpack.c.h.b16 %v2412
        %v2592 = vunpack.c.l.b16 %v2413
        %v2593 = vunpack.c.h.b16 %v2413
        %v2594 = vunpack.c.l.b16 %v2414
        %v2595 = vunpack.c.h.b16 %v2414
        %v2596 = vunpack.c.l.b16 %v2415
        %v2597 = vunpack.c.h.b16 %v2415
        %v2598 = vunpack.c.l.b16 %v2416
        %v2599 = vunpack.c.h.b16 %v2416
        %v2600 = vunpack.c.l.b16 %v2417
        %v2601 = vunpack.c.h.b16 %v2417
        %v2602 = vunpack.c.l.b16 %v2418
        %v2603 = vunpack.c.h.b16 %v2418
        %v2604 = vunpack.c.l.b16 %v2419
        %v2605 = vunpack.c.h.b16 %v2419
        %v2606 = vunpack.c.l.b16 %v2420
        %v2607 = vunpack.c.h.b16 %v2420
        %v2608 = vunpack.c.l.b16 %v2421
        %v2609 = vunpack.c.h.b16 %v2421
        %v2610 = vunpack.c.l.b16 %v2422
        %v2611 = vunpack.c.h.b16 %v2422
        %v2612 = vpack.c.b16 %v2542, %v2540
        %v2613 = vpack.c.b16 %v2543, %v2541
        %v2614 = vpack.c.b16 %v2546, %v2544
        %v2615 = vpack.c.b16 %v2547, %v2545
        %v2616 = vpack.c.b16 %v2550, %v2548
        %v2617 = vpack.c.b16 %v2551, %v2549
        %v2618 = vpack.c.b16 %v2554, %v2552
        %v2619 = vpack.c.b16 %v2555, %v2553
        %v2620 = vpack.c.b16 %v2558, %v2556
        %v2621 = vpack.c.b16 %v2559, %v2557
        %v2622 = vpack.c.b16 %v2562, %v2560
        %v2623 = vpack.c.b16 %v2563, %v2561
        %v2624 = vpack.c.b16 %v2566, %v2564
        %v2625 = vpack.c.b16 %v2567, %v2565
        %v2626 = vpack.c.b16 %v2570, %v2568
        %v2627 = vpack.c.b16 %v2571, %v2569
        %v2628 = vpack.c.b16 %v2574, %v2572
        %v2629 = vpack.c.b16 %v2575, %v2573
        %v2630 = vpack.c.b16 %v2578, %v2576
        %v2631 = vpack.c.b16 %v2579, %v2577
        %v2632 = vpack.c.b16 %v2582, %v2580
        %v2633 = vpack.c.b16 %v2583, %v2581
        %v2634 = vpack.c.b16 %v2586, %v2584
        %v2635 = vpack.c.b16 %v2587, %v2585
        %v2636 = vpack.c.b16 %v2590, %v2588
        %v2637 = vpack.c.b16 %v2591, %v2589
        %v2638 = vpack.c.b16 %v2594, %v2592
        %v2639 = vpack.c.b16 %v2595, %v2593
        %v2640 = vpack.c.b16 %v2598, %v2596
        %v2641 = vpack.c.b16 %v2599, %v2597
        %v2642 = vpack.c.b16 %v2602, %v2600
        %v2643 = vpack.c.b16 %v2603, %v2601
        %v2644 = vpack.c.b16 %v2606, %v2604
        %v2645 = vpack.c.b16 %v2607, %v2605
        %v2646 = vpack.c.b16 %v2610, %v2608
        %v2647 = vpack.c.b16 %v2611, %v2609
        %v2685 = vsel %vm2246, %v2491, 0
        %v2688 = vsel %vm2246, %v2494, 0
        %v2691 = vsel %vm2246, %v2497, 0
        %2693 = vmatpush.bf16.msra.mxu0 %v2626
        %2694 = vmatpush.bf16.msra.mxu0 %v2624
        %2695 = vmatpush.bf16.msra.mxu0 %v2622
        %2696 = vmatpush.bf16.msra.mxu0 %v2620
        %2697 = vmatpush.bf16.msra.mxu0 %v2618
        %2698 = vmatpush.bf16.msra.mxu0 %v2616
        %2699 = vmatpush.bf16.msra.mxu0 %v2614
        %2700 = vmatpush.bf16.msra.mxu0 %v2612
        %2701 = vmatmul.bf16.gmra.mxu0 %v2489
        %v2702 = vpop.f32.mrf.mxu0
        %v2703 = vadd.f32 %v2432, %v2702
        %v2704 = vpop.f32.mrf.mxu0
        %v2705 = vadd.f32 %v2437, %v2704
        %2706 = vmatmul.bf16.gmra.mxu0 %v2492
        %v2707 = vpop.f32.mrf.mxu0
        %v2708 = vadd.f32 %v2442, %v2707
        %v2709 = vpop.f32.mrf.mxu0
        %v2710 = vadd.f32 %v2447, %v2709
        %2711 = vmatmul.bf16.gmra.mxu0 %v2495
        %v2712 = vpop.f32.mrf.mxu0
        %v2713 = vadd.f32 %v2452, %v2712
        %v2714 = vpop.f32.mrf.mxu0
        %v2715 = vadd.f32 %v2457, %v2714
        %2716 = vdwg.mxu0
        %2717 = vmatpush.bf16.msra.mxu0 %v2642
        %2718 = vmatpush.bf16.msra.mxu0 %v2640
        %2719 = vmatpush.bf16.msra.mxu0 %v2638
        %2720 = vmatpush.bf16.msra.mxu0 %v2636
        %2721 = vmatpush.bf16.msra.mxu0 %v2634
        %2722 = vmatpush.bf16.msra.mxu0 %v2632
        %2723 = vmatpush.bf16.msra.mxu0 %v2630
        %2724 = vmatpush.bf16.msra.mxu0 %v2628
        %2725 = vmatmul.bf16.gmra.mxu0 %v2490
        %v2726 = vpop.f32.mrf.mxu0
        %v2727 = vadd.f32 %v2703, %v2726
        %v2728 = vpop.f32.mrf.mxu0
        %v2729 = vadd.f32 %v2705, %v2728
        %2730 = vmatmul.bf16.gmra.mxu0 %v2493
        %v2731 = vpop.f32.mrf.mxu0
        %v2732 = vadd.f32 %v2708, %v2731
        %v2733 = vpop.f32.mrf.mxu0
        %v2734 = vadd.f32 %v2710, %v2733
        %2735 = vmatmul.bf16.gmra.mxu0 %v2496
        %v2736 = vpop.f32.mrf.mxu0
        %v2737 = vadd.f32 %v2713, %v2736
        %v2738 = vpop.f32.mrf.mxu0
        %v2739 = vadd.f32 %v2715, %v2738
        %2740 = vdwg.mxu0
        %2741 = vmatpush.bf16.msra.mxu0 0
        %2742 = vmatpush.bf16.msra.mxu0 0
        %2743 = vmatpush.bf16.msra.mxu0 0
        %2744 = vmatpush.bf16.msra.mxu0 0
        %2745 = vmatpush.bf16.msra.mxu0 0
        %2746 = vmatpush.bf16.msra.mxu0 0
        %2747 = vmatpush.bf16.msra.mxu0 %v2646
        %2748 = vmatpush.bf16.msra.mxu0 %v2644
        %2749 = vmatmul.bf16.gmra.mxu0 %v2685
        %v2750 = vpop.f32.mrf.mxu0
        %v2751 = vadd.f32 %v2727, %v2750
        %v2752 = vpop.f32.mrf.mxu0
        %v2753 = vadd.f32 %v2729, %v2752
        %2754 = vmatmul.bf16.gmra.mxu0 %v2688
        %v2755 = vpop.f32.mrf.mxu0
        %v2756 = vadd.f32 %v2732, %v2755
        %v2757 = vpop.f32.mrf.mxu0
        %v2758 = vadd.f32 %v2734, %v2757
        %2759 = vmatmul.bf16.gmra.mxu0 %v2691
        %v2760 = vpop.f32.mrf.mxu0
        %v2761 = vadd.f32 %v2737, %v2760
        %v2762 = vpop.f32.mrf.mxu0
        %v2763 = vadd.f32 %v2739, %v2762
        %2764 = vdwg.mxu0
        %2765 = vmatpush.bf16.msra.mxu0 %v2627
        %2766 = vmatpush.bf16.msra.mxu0 %v2625
        %2767 = vmatpush.bf16.msra.mxu0 %v2623
        %2768 = vmatpush.bf16.msra.mxu0 %v2621
        %2769 = vmatpush.bf16.msra.mxu0 %v2619
        %2770 = vmatpush.bf16.msra.mxu0 %v2617
        %2771 = vmatpush.bf16.msra.mxu0 %v2615
        %2772 = vmatpush.bf16.msra.mxu0 %v2613
        %2773 = vmatmul.bf16.gmra.mxu0 %v2489
        %v2774 = vpop.f32.mrf.mxu0
        %v2775 = vadd.f32 %v2432, %v2774
        %v2776 = vpop.f32.mrf.mxu0
        %v2777 = vadd.f32 %v2437, %v2776
        %2778 = vmatmul.bf16.gmra.mxu0 %v2492
        %v2779 = vpop.f32.mrf.mxu0
        %v2780 = vadd.f32 %v2442, %v2779
        %v2781 = vpop.f32.mrf.mxu0
        %v2782 = vadd.f32 %v2447, %v2781
        %2783 = vmatmul.bf16.gmra.mxu0 %v2495
        %v2784 = vpop.f32.mrf.mxu0
        %v2785 = vadd.f32 %v2452, %v2784
        %v2786 = vpop.f32.mrf.mxu0
        %v2787 = vadd.f32 %v2457, %v2786
        %2788 = vdwg.mxu0
        %2789 = vmatpush.bf16.msra.mxu0 %v2643
        %2790 = vmatpush.bf16.msra.mxu0 %v2641
        %2791 = vmatpush.bf16.msra.mxu0 %v2639
        %2792 = vmatpush.bf16.msra.mxu0 %v2637
        %2793 = vmatpush.bf16.msra.mxu0 %v2635
        %2794 = vmatpush.bf16.msra.mxu0 %v2633
        %2795 = vmatpush.bf16.msra.mxu0 %v2631
        %2796 = vmatpush.bf16.msra.mxu0 %v2629
        %2797 = vmatmul.bf16.gmra.mxu0 %v2490
        %v2798 = vpop.f32.mrf.mxu0
        %v2799 = vadd.f32 %v2775, %v2798
        %v2800 = vpop.f32.mrf.mxu0
        %v2801 = vadd.f32 %v2777, %v2800
        %2802 = vmatmul.bf16.gmra.mxu0 %v2493
        %v2803 = vpop.f32.mrf.mxu0
        %v2804 = vadd.f32 %v2780, %v2803
        %v2805 = vpop.f32.mrf.mxu0
        %v2806 = vadd.f32 %v2782, %v2805
        %2807 = vmatmul.bf16.gmra.mxu0 %v2496
        %v2808 = vpop.f32.mrf.mxu0
        %v2809 = vadd.f32 %v2785, %v2808
        %v2810 = vpop.f32.mrf.mxu0
        %v2811 = vadd.f32 %v2787, %v2810
        %2812 = vdwg.mxu0
        %2813 = vmatpush.bf16.msra.mxu0 0
        %2814 = vmatpush.bf16.msra.mxu0 0
        %2815 = vmatpush.bf16.msra.mxu0 0
        %2816 = vmatpush.bf16.msra.mxu0 0
        %2817 = vmatpush.bf16.msra.mxu0 0
        %2818 = vmatpush.bf16.msra.mxu0 0
        %2819 = vmatpush.bf16.msra.mxu0 %v2647
        %2820 = vmatpush.bf16.msra.mxu0 %v2645
        %2821 = vmatmul.bf16.gmra.mxu0 %v2685
        %v2822 = vpop.f32.mrf.mxu0
        %v2823 = vadd.f32 %v2799, %v2822
        %v2824 = vpop.f32.mrf.mxu0
        %v2825 = vadd.f32 %v2801, %v2824
        %2826 = vmatmul.bf16.gmra.mxu0 %v2688
        %v2827 = vpop.f32.mrf.mxu0
        %v2828 = vadd.f32 %v2804, %v2827
        %v2829 = vpop.f32.mrf.mxu0
        %v2830 = vadd.f32 %v2806, %v2829
        %2831 = vmatmul.bf16.gmra.mxu0 %v2691
        %v2832 = vpop.f32.mrf.mxu0
        %v2833 = vadd.f32 %v2809, %v2832
        %v2834 = vpop.f32.mrf.mxu0
        %v2835 = vadd.f32 %v2811, %v2834
        %2836 = vdwg.mxu0
        %v2837 = vmax.f32 %v2751, 0.0
        %v2838 = vmax.f32 %v2823, 0.0
        %v2839 = vmax.f32 %v2753, 0.0
        %v2840 = vmax.f32 %v2825, 0.0
        %v2841 = vmax.f32 %v2756, 0.0
        %v2842 = vmax.f32 %v2828, 0.0
        %v2843 = vmax.f32 %v2758, 0.0
        %v2844 = vmax.f32 %v2830, 0.0
        %v2845 = vmax.f32 %v2761, 0.0
        %v2846 = vmax.f32 %v2833, 0.0
        %v2847 = vmax.f32 %v2763, 0.0
        %v2848 = vmax.f32 %v2835, 0.0
        %2849 = vrot.lane.b32.xlu0 %v2837, 17
        %v2850 = vpop.permute.xlu0 %2849
        %2851 = vrot.lane.b32.xlu0 %v2839, 17
        %v2852 = vpop.permute.xlu0 %2851
        %2853 = vrot.lane.b32.xlu0 %v2841, 17
        %v2854 = vpop.permute.xlu0 %2853
        %2855 = vrot.lane.b32.xlu0 %v2843, 17
        %v2856 = vpop.permute.xlu0 %2855
        %2857 = vrot.lane.b32.xlu0 %v2845, 17
        %v2858 = vpop.permute.xlu0 %2857
        %2859 = vrot.lane.b32.xlu0 %v2847, 17
        %v2860 = vpop.permute.xlu0 %2859
        %2861 = vrot.lane.b32.xlu0 %v2838, 17
        %v2862 = vpop.permute.xlu0 %2861
        %2863 = vrot.lane.b32.xlu0 %v2840, 17
        %v2864 = vpop.permute.xlu0 %2863
        %2865 = vrot.lane.b32.xlu0 %v2842, 17
        %v2866 = vpop.permute.xlu0 %2865
        %2867 = vrot.lane.b32.xlu0 %v2844, 17
        %v2868 = vpop.permute.xlu0 %2867
        %2869 = vrot.lane.b32.xlu0 %v2846, 17
        %v2870 = vpop.permute.xlu0 %2869
        %2871 = vrot.lane.b32.xlu0 %v2848, 17
        %v2872 = vpop.permute.xlu0 %2871
        %v2873 = vsel %vm1258, %v2850, %v2862
        %v2874 = vsel %vm1258, %v2852, %v2864
        %v2875 = vsel %vm1258, %v2854, %v2866
        %v2876 = vsel %vm1258, %v2856, %v2868
        %v2877 = vsel %vm1258, %v2858, %v2870
        %v2878 = vsel %vm1258, %v2860, %v2872
        %v2879 = vsel %vm1258, %v2862, %v2850
        %v2880 = vsel %vm1258, %v2864, %v2852
        %v2881 = vsel %vm1258, %v2866, %v2854
        %v2882 = vsel %vm1258, %v2868, %v2856
        %v2883 = vsel %vm1258, %v2870, %v2858
        %v2884 = vsel %vm1258, %v2872, %v2860
        %v2885 = vld [vmem:[#allocation17] sm:$0x3]
        %v2887 = vperm.slane %v2885, 0
        %v2888 = vperm.slane %v2885, 1
        %v2891 = vmul.f32 %v2879, %v2887
        %v2892 = vmul.f32 %v2873, %v2888
        %v2893 = vmul.f32 %v2880, %v2887
        %v2894 = vmul.f32 %v2874, %v2888
        %v2895 = vmul.f32 %v2881, %v2887
        %v2896 = vmul.f32 %v2875, %v2888
        %v2897 = vmul.f32 %v2882, %v2887
        %v2898 = vmul.f32 %v2876, %v2888
        %v2899 = vmul.f32 %v2883, %v2887
        %v2900 = vmul.f32 %v2877, %v2888
        %v2901 = vmul.f32 %v2884, %v2887
        %v2902 = vmul.f32 %v2878, %v2888
        %v2903 = vpack.c.bf16 %v2892, %v2891
        %v2904 = vpack.c.bf16 %v2894, %v2893
        %v2905 = vpack.c.bf16 %v2896, %v2895
        %v2906 = vpack.c.bf16 %v2898, %v2897
        %v2907 = vpack.c.bf16 %v2900, %v2899
        %v2908 = vpack.c.bf16 %v2902, %v2901
        %2909 = vst [vmem:[#allocation4] sm:$0xff] %v2903
        %2910 = vst [vmem:[#allocation4 + $0x8] sm:$0xff] %v2904
        %2911 = vst [vmem:[#allocation4 + $0x10] sm:$0xff] %v2905
        %2912 = vst [vmem:[#allocation4 + $0x18] sm:$0xff] %v2906
        %2913 = vst [vmem:[#allocation4 + $0x20] sm:$0xff] %v2907
        %2914 = vst [vmem:[#allocation4 + $0x28] sm:$0xff] %v2908
        %2915 = vrot.lane.b32.xlu0 %v2837, 16
        %v2916 = vpop.permute.xlu0 %2915
        %2917 = vrot.lane.b32.xlu0 %v2839, 16
        %v2918 = vpop.permute.xlu0 %2917
        %2919 = vrot.lane.b32.xlu0 %v2841, 16
        %v2920 = vpop.permute.xlu0 %2919
        %2921 = vrot.lane.b32.xlu0 %v2843, 16
        %v2922 = vpop.permute.xlu0 %2921
        %2923 = vrot.lane.b32.xlu0 %v2845, 16
        %v2924 = vpop.permute.xlu0 %2923
        %2925 = vrot.lane.b32.xlu0 %v2847, 16
        %v2926 = vpop.permute.xlu0 %2925
        %2927 = vrot.lane.b32.xlu0 %v2838, 16
        %v2928 = vpop.permute.xlu0 %2927
        %2929 = vrot.lane.b32.xlu0 %v2840, 16
        %v2930 = vpop.permute.xlu0 %2929
        %2931 = vrot.lane.b32.xlu0 %v2842, 16
        %v2932 = vpop.permute.xlu0 %2931
        %2933 = vrot.lane.b32.xlu0 %v2844, 16
        %v2934 = vpop.permute.xlu0 %2933
        %2935 = vrot.lane.b32.xlu0 %v2846, 16
        %v2936 = vpop.permute.xlu0 %2935
        %2937 = vrot.lane.b32.xlu0 %v2848, 16
        %v2938 = vpop.permute.xlu0 %2937
        %v2939 = vsel %vm1345, %v2916, %v2928
        %v2940 = vsel %vm1345, %v2918, %v2930
        %v2941 = vsel %vm1345, %v2920, %v2932
        %v2942 = vsel %vm1345, %v2922, %v2934
        %v2943 = vsel %vm1345, %v2924, %v2936
        %v2944 = vsel %vm1345, %v2926, %v2938
        %v2945 = vsel %vm1345, %v2928, %v2916
        %v2946 = vsel %vm1345, %v2930, %v2918
        %v2947 = vsel %vm1345, %v2932, %v2920
        %v2948 = vsel %vm1345, %v2934, %v2922
        %v2949 = vsel %vm1345, %v2936, %v2924
        %v2950 = vsel %vm1345, %v2938, %v2926
        %v2951 = vld [vmem:[%s1362] sm:$0x3]
        %v2953 = vperm.slane %v2951, 0
        %v2954 = vperm.slane %v2951, 1
        %v2957 = vmul.f32 %v2945, %v2953
        %v2958 = vmul.f32 %v2939, %v2954
        %v2959 = vmul.f32 %v2946, %v2953
        %v2960 = vmul.f32 %v2940, %v2954
        %v2961 = vmul.f32 %v2947, %v2953
        %v2962 = vmul.f32 %v2941, %v2954
        %v2963 = vmul.f32 %v2948, %v2953
        %v2964 = vmul.f32 %v2942, %v2954
        %v2965 = vmul.f32 %v2949, %v2953
        %v2966 = vmul.f32 %v2943, %v2954
        %v2967 = vmul.f32 %v2950, %v2953
        %v2968 = vmul.f32 %v2944, %v2954
        %v2969 = vpack.c.bf16 %v2958, %v2957
        %v2970 = vpack.c.bf16 %v2960, %v2959
        %v2971 = vpack.c.bf16 %v2962, %v2961
        %v2972 = vpack.c.bf16 %v2964, %v2963
        %v2973 = vpack.c.bf16 %v2966, %v2965
        %v2974 = vpack.c.bf16 %v2968, %v2967
        %2975 = vst [vmem:[#allocation4 + $0x30] sm:$0xff] %v2969
        %2976 = vst [vmem:[#allocation4 + $0x38] sm:$0xff] %v2970
        %2977 = vst [vmem:[#allocation4 + $0x40] sm:$0xff] %v2971
        %2978 = vst [vmem:[#allocation4 + $0x48] sm:$0xff] %v2972
        %2979 = vst [vmem:[#allocation4 + $0x50] sm:$0xff] %v2973
        %2980 = vst [vmem:[#allocation4 + $0x58] sm:$0xff] %v2974
        %2981 = vrot.lane.b32.xlu0 %v2837, 15
        %v2982 = vpop.permute.xlu0 %2981
        %2983 = vrot.lane.b32.xlu0 %v2839, 15
        %v2984 = vpop.permute.xlu0 %2983
        %2985 = vrot.lane.b32.xlu0 %v2841, 15
        %v2986 = vpop.permute.xlu0 %2985
        %2987 = vrot.lane.b32.xlu0 %v2843, 15
        %v2988 = vpop.permute.xlu0 %2987
        %2989 = vrot.lane.b32.xlu0 %v2845, 15
        %v2990 = vpop.permute.xlu0 %2989
        %2991 = vrot.lane.b32.xlu0 %v2847, 15
        %v2992 = vpop.permute.xlu0 %2991
        %2993 = vrot.lane.b32.xlu0 %v2838, 15
        %v2994 = vpop.permute.xlu0 %2993
        %2995 = vrot.lane.b32.xlu0 %v2840, 15
        %v2996 = vpop.permute.xlu0 %2995
        %2997 = vrot.lane.b32.xlu0 %v2842, 15
        %v2998 = vpop.permute.xlu0 %2997
        %2999 = vrot.lane.b32.xlu0 %v2844, 15
        %v3000 = vpop.permute.xlu0 %2999
        %3001 = vrot.lane.b32.xlu0 %v2846, 15
        %v3002 = vpop.permute.xlu0 %3001
        %3003 = vrot.lane.b32.xlu0 %v2848, 15
        %v3004 = vpop.permute.xlu0 %3003
        %v3005 = vsel %vm1433, %v2982, %v2994
        %v3006 = vsel %vm1433, %v2984, %v2996
        %v3007 = vsel %vm1433, %v2986, %v2998
        %v3008 = vsel %vm1433, %v2988, %v3000
        %v3009 = vsel %vm1433, %v2990, %v3002
        %v3010 = vsel %vm1433, %v2992, %v3004
        %v3011 = vsel %vm1433, %v2994, %v2982
        %v3012 = vsel %vm1433, %v2996, %v2984
        %v3013 = vsel %vm1433, %v2998, %v2986
        %v3014 = vsel %vm1433, %v3000, %v2988
        %v3015 = vsel %vm1433, %v3002, %v2990
        %v3016 = vsel %vm1433, %v3004, %v2992
        %v3017 = vld [vmem:[%s1450] sm:$0x3]
        %v3019 = vperm.slane %v3017, 0
        %v3020 = vperm.slane %v3017, 1
        %v3023 = vmul.f32 %v3011, %v3019
        %v3024 = vmul.f32 %v3005, %v3020
        %v3025 = vmul.f32 %v3012, %v3019
        %v3026 = vmul.f32 %v3006, %v3020
        %v3027 = vmul.f32 %v3013, %v3019
        %v3028 = vmul.f32 %v3007, %v3020
        %v3029 = vmul.f32 %v3014, %v3019
        %v3030 = vmul.f32 %v3008, %v3020
        %v3031 = vmul.f32 %v3015, %v3019
        %v3032 = vmul.f32 %v3009, %v3020
        %v3033 = vmul.f32 %v3016, %v3019
        %v3034 = vmul.f32 %v3010, %v3020
        %v3035 = vpack.c.bf16 %v3024, %v3023
        %v3036 = vpack.c.bf16 %v3026, %v3025
        %v3037 = vpack.c.bf16 %v3028, %v3027
        %v3038 = vpack.c.bf16 %v3030, %v3029
        %v3039 = vpack.c.bf16 %v3032, %v3031
        %v3040 = vpack.c.bf16 %v3034, %v3033
        %3041 = vst [vmem:[#allocation4 + $0x60] sm:$0xff] %v3035
        %3042 = vst [vmem:[#allocation4 + $0x68] sm:$0xff] %v3036
        %3043 = vst [vmem:[#allocation4 + $0x70] sm:$0xff] %v3037
        %3044 = vst [vmem:[#allocation4 + $0x78] sm:$0xff] %v3038
        %3045 = vst [vmem:[#allocation4 + $0x80] sm:$0xff] %v3039
        %3046 = vst [vmem:[#allocation4 + $0x88] sm:$0xff] %v3040
        %3047 = vrot.lane.b32.xlu0 %v2837, 1
        %v3048 = vpop.permute.xlu0 %3047
        %3049 = vrot.lane.b32.xlu0 %v2839, 1
        %v3050 = vpop.permute.xlu0 %3049
        %3051 = vrot.lane.b32.xlu0 %v2841, 1
        %v3052 = vpop.permute.xlu0 %3051
        %3053 = vrot.lane.b32.xlu0 %v2843, 1
        %v3054 = vpop.permute.xlu0 %3053
        %3055 = vrot.lane.b32.xlu0 %v2845, 1
        %v3056 = vpop.permute.xlu0 %3055
        %3057 = vrot.lane.b32.xlu0 %v2847, 1
        %v3058 = vpop.permute.xlu0 %3057
        %3059 = vrot.lane.b32.xlu0 %v2838, 1
        %v3060 = vpop.permute.xlu0 %3059
        %3061 = vrot.lane.b32.xlu0 %v2840, 1
        %v3062 = vpop.permute.xlu0 %3061
        %3063 = vrot.lane.b32.xlu0 %v2842, 1
        %v3064 = vpop.permute.xlu0 %3063
        %3065 = vrot.lane.b32.xlu0 %v2844, 1
        %v3066 = vpop.permute.xlu0 %3065
        %3067 = vrot.lane.b32.xlu0 %v2846, 1
        %v3068 = vpop.permute.xlu0 %3067
        %3069 = vrot.lane.b32.xlu0 %v2848, 1
        %v3070 = vpop.permute.xlu0 %3069
        %v3071 = vsel %vm1521, %v3048, %v3060
        %v3072 = vsel %vm1521, %v3050, %v3062
        %v3073 = vsel %vm1521, %v3052, %v3064
        %v3074 = vsel %vm1521, %v3054, %v3066
        %v3075 = vsel %vm1521, %v3056, %v3068
        %v3076 = vsel %vm1521, %v3058, %v3070
        %v3077 = vsel %vm1521, %v3060, %v3048
        %v3078 = vsel %vm1521, %v3062, %v3050
        %v3079 = vsel %vm1521, %v3064, %v3052
        %v3080 = vsel %vm1521, %v3066, %v3054
        %v3081 = vsel %vm1521, %v3068, %v3056
        %v3082 = vsel %vm1521, %v3070, %v3058
        %v3083 = vld [vmem:[%s1538] sm:$0x3]
        %v3085 = vperm.slane %v3083, 0
        %v3086 = vperm.slane %v3083, 1
        %v3089 = vmul.f32 %v3077, %v3085
        %v3090 = vmul.f32 %v3071, %v3086
        %v3091 = vmul.f32 %v3078, %v3085
        %v3092 = vmul.f32 %v3072, %v3086
        %v3093 = vmul.f32 %v3079, %v3085
        %v3094 = vmul.f32 %v3073, %v3086
        %v3095 = vmul.f32 %v3080, %v3085
        %v3096 = vmul.f32 %v3074, %v3086
        %v3097 = vmul.f32 %v3081, %v3085
        %v3098 = vmul.f32 %v3075, %v3086
        %v3099 = vmul.f32 %v3082, %v3085
        %v3100 = vmul.f32 %v3076, %v3086
        %v3101 = vpack.c.bf16 %v3090, %v3089
        %v3102 = vpack.c.bf16 %v3092, %v3091
        %v3103 = vpack.c.bf16 %v3094, %v3093
        %v3104 = vpack.c.bf16 %v3096, %v3095
        %v3105 = vpack.c.bf16 %v3098, %v3097
        %v3106 = vpack.c.bf16 %v3100, %v3099
        %3107 = vst [vmem:[#allocation4 + $0x90] sm:$0xff] %v3101
        %3108 = vst [vmem:[#allocation4 + $0x98] sm:$0xff] %v3102
        %3109 = vst [vmem:[#allocation4 + $0xa0] sm:$0xff] %v3103
        %3110 = vst [vmem:[#allocation4 + $0xa8] sm:$0xff] %v3104
        %3111 = vst [vmem:[#allocation4 + $0xb0] sm:$0xff] %v3105
        %3112 = vst [vmem:[#allocation4 + $0xb8] sm:$0xff] %v3106
        %v3113 = vld [vmem:[%s1577] sm:$0x3]
        %v3115 = vperm.slane %v3113, 0
        %v3116 = vperm.slane %v3113, 1
        %v3119 = vmul.f32 %v2837, %v3115
        %v3120 = vmul.f32 %v2838, %v3116
        %v3121 = vmul.f32 %v2839, %v3115
        %v3122 = vmul.f32 %v2840, %v3116
        %v3123 = vmul.f32 %v2841, %v3115
        %v3124 = vmul.f32 %v2842, %v3116
        %v3125 = vmul.f32 %v2843, %v3115
        %v3126 = vmul.f32 %v2844, %v3116
        %v3127 = vmul.f32 %v2845, %v3115
        %v3128 = vmul.f32 %v2846, %v3116
        %v3129 = vmul.f32 %v2847, %v3115
        %v3130 = vmul.f32 %v2848, %v3116
        %v3131 = vpack.c.bf16 %v3120, %v3119
        %v3132 = vpack.c.bf16 %v3122, %v3121
        %v3133 = vpack.c.bf16 %v3124, %v3123
        %v3134 = vpack.c.bf16 %v3126, %v3125
        %v3135 = vpack.c.bf16 %v3128, %v3127
        %v3136 = vpack.c.bf16 %v3130, %v3129
        %3137 = vst [vmem:[#allocation4 + $0xc0] sm:$0xff] %v3131
        %3138 = vst [vmem:[#allocation4 + $0xc8] sm:$0xff] %v3132
        %3139 = vst [vmem:[#allocation4 + $0xd0] sm:$0xff] %v3133
        %3140 = vst [vmem:[#allocation4 + $0xd8] sm:$0xff] %v3134
        %3141 = vst [vmem:[#allocation4 + $0xe0] sm:$0xff] %v3135
        %3142 = vst [vmem:[#allocation4 + $0xe8] sm:$0xff] %v3136
        %3143 = vrot.lane.b32.xlu0 %v2837, 127
        %v3144 = vpop.permute.xlu0 %3143
        %3145 = vrot.lane.b32.xlu0 %v2839, 127
        %v3146 = vpop.permute.xlu0 %3145
        %3147 = vrot.lane.b32.xlu0 %v2841, 127
        %v3148 = vpop.permute.xlu0 %3147
        %3149 = vrot.lane.b32.xlu0 %v2843, 127
        %v3150 = vpop.permute.xlu0 %3149
        %3151 = vrot.lane.b32.xlu0 %v2845, 127
        %v3152 = vpop.permute.xlu0 %3151
        %3153 = vrot.lane.b32.xlu0 %v2847, 127
        %v3154 = vpop.permute.xlu0 %3153
        %3155 = vrot.lane.b32.xlu0 %v2838, 127
        %v3156 = vpop.permute.xlu0 %3155
        %3157 = vrot.lane.b32.xlu0 %v2840, 127
        %v3158 = vpop.permute.xlu0 %3157
        %3159 = vrot.lane.b32.xlu0 %v2842, 127
        %v3160 = vpop.permute.xlu0 %3159
        %3161 = vrot.lane.b32.xlu0 %v2844, 127
        %v3162 = vpop.permute.xlu0 %3161
        %3163 = vrot.lane.b32.xlu0 %v2846, 127
        %v3164 = vpop.permute.xlu0 %3163
        %3165 = vrot.lane.b32.xlu0 %v2848, 127
        %v3166 = vpop.permute.xlu0 %3165
        %v3167 = vsel %vm1648, %v3144, %v3156
        %v3168 = vsel %vm1648, %v3146, %v3158
        %v3169 = vsel %vm1648, %v3148, %v3160
        %v3170 = vsel %vm1648, %v3150, %v3162
        %v3171 = vsel %vm1648, %v3152, %v3164
        %v3172 = vsel %vm1648, %v3154, %v3166
        %v3173 = vsel %vm1648, %v3156, %v3144
        %v3174 = vsel %vm1648, %v3158, %v3146
        %v3175 = vsel %vm1648, %v3160, %v3148
        %v3176 = vsel %vm1648, %v3162, %v3150
        %v3177 = vsel %vm1648, %v3164, %v3152
        %v3178 = vsel %vm1648, %v3166, %v3154
        %v3179 = vld [vmem:[%s1665] sm:$0x3]
        %v3181 = vperm.slane %v3179, 0
        %v3182 = vperm.slane %v3179, 1
        %v3185 = vmul.f32 %v3167, %v3181
        %v3186 = vmul.f32 %v3173, %v3182
        %v3187 = vmul.f32 %v3168, %v3181
        %v3188 = vmul.f32 %v3174, %v3182
        %v3189 = vmul.f32 %v3169, %v3181
        %v3190 = vmul.f32 %v3175, %v3182
        %v3191 = vmul.f32 %v3170, %v3181
        %v3192 = vmul.f32 %v3176, %v3182
        %v3193 = vmul.f32 %v3171, %v3181
        %v3194 = vmul.f32 %v3177, %v3182
        %v3195 = vmul.f32 %v3172, %v3181
        %v3196 = vmul.f32 %v3178, %v3182
        %v3197 = vpack.c.bf16 %v3186, %v3185
        %v3198 = vpack.c.bf16 %v3188, %v3187
        %v3199 = vpack.c.bf16 %v3190, %v3189
        %v3200 = vpack.c.bf16 %v3192, %v3191
        %v3201 = vpack.c.bf16 %v3194, %v3193
        %v3202 = vpack.c.bf16 %v3196, %v3195
        %3203 = vst [vmem:[#allocation4 + $0xf0] sm:$0xff] %v3197
        %3204 = vst [vmem:[#allocation4 + $0xf8] sm:$0xff] %v3198
        %3205 = vst [vmem:[#allocation4 + $0x100] sm:$0xff] %v3199
        %3206 = vst [vmem:[#allocation4 + $0x108] sm:$0xff] %v3200
        %3207 = vst [vmem:[#allocation4 + $0x110] sm:$0xff] %v3201
        %3208 = vst [vmem:[#allocation4 + $0x118] sm:$0xff] %v3202
        %3209 = vrot.lane.b32.xlu0 %v2837, 113
        %v3210 = vpop.permute.xlu0 %3209
        %3211 = vrot.lane.b32.xlu0 %v2839, 113
        %v3212 = vpop.permute.xlu0 %3211
        %3213 = vrot.lane.b32.xlu0 %v2841, 113
        %v3214 = vpop.permute.xlu0 %3213
        %3215 = vrot.lane.b32.xlu0 %v2843, 113
        %v3216 = vpop.permute.xlu0 %3215
        %3217 = vrot.lane.b32.xlu0 %v2845, 113
        %v3218 = vpop.permute.xlu0 %3217
        %3219 = vrot.lane.b32.xlu0 %v2847, 113
        %v3220 = vpop.permute.xlu0 %3219
        %3221 = vrot.lane.b32.xlu0 %v2838, 113
        %v3222 = vpop.permute.xlu0 %3221
        %3223 = vrot.lane.b32.xlu0 %v2840, 113
        %v3224 = vpop.permute.xlu0 %3223
        %3225 = vrot.lane.b32.xlu0 %v2842, 113
        %v3226 = vpop.permute.xlu0 %3225
        %3227 = vrot.lane.b32.xlu0 %v2844, 113
        %v3228 = vpop.permute.xlu0 %3227
        %3229 = vrot.lane.b32.xlu0 %v2846, 113
        %v3230 = vpop.permute.xlu0 %3229
        %3231 = vrot.lane.b32.xlu0 %v2848, 113
        %v3232 = vpop.permute.xlu0 %3231
        %v3233 = vsel %vm1736, %v3210, %v3222
        %v3234 = vsel %vm1736, %v3212, %v3224
        %v3235 = vsel %vm1736, %v3214, %v3226
        %v3236 = vsel %vm1736, %v3216, %v3228
        %v3237 = vsel %vm1736, %v3218, %v3230
        %v3238 = vsel %vm1736, %v3220, %v3232
        %v3239 = vsel %vm1736, %v3222, %v3210
        %v3240 = vsel %vm1736, %v3224, %v3212
        %v3241 = vsel %vm1736, %v3226, %v3214
        %v3242 = vsel %vm1736, %v3228, %v3216
        %v3243 = vsel %vm1736, %v3230, %v3218
        %v3244 = vsel %vm1736, %v3232, %v3220
        %v3245 = vld [vmem:[%s1753] sm:$0x3]
        %v3247 = vperm.slane %v3245, 0
        %v3248 = vperm.slane %v3245, 1
        %v3251 = vmul.f32 %v3233, %v3247
        %v3252 = vmul.f32 %v3239, %v3248
        %v3253 = vmul.f32 %v3234, %v3247
        %v3254 = vmul.f32 %v3240, %v3248
        %v3255 = vmul.f32 %v3235, %v3247
        %v3256 = vmul.f32 %v3241, %v3248
        %v3257 = vmul.f32 %v3236, %v3247
        %v3258 = vmul.f32 %v3242, %v3248
        %v3259 = vmul.f32 %v3237, %v3247
        %v3260 = vmul.f32 %v3243, %v3248
        %v3261 = vmul.f32 %v3238, %v3247
        %v3262 = vmul.f32 %v3244, %v3248
        %v3263 = vpack.c.bf16 %v3252, %v3251
        %v3264 = vpack.c.bf16 %v3254, %v3253
        %v3265 = vpack.c.bf16 %v3256, %v3255
        %v3266 = vpack.c.bf16 %v3258, %v3257
        %v3267 = vpack.c.bf16 %v3260, %v3259
        %v3268 = vpack.c.bf16 %v3262, %v3261
        %3269 = vst [vmem:[#allocation4 + $0x120] sm:$0xff] %v3263
        %3270 = vst [vmem:[#allocation4 + $0x128] sm:$0xff] %v3264
        %3271 = vst [vmem:[#allocation4 + $0x130] sm:$0xff] %v3265
        %3272 = vst [vmem:[#allocation4 + $0x138] sm:$0xff] %v3266
        %3273 = vst [vmem:[#allocation4 + $0x140] sm:$0xff] %v3267
        %3274 = vst [vmem:[#allocation4 + $0x148] sm:$0xff] %v3268
        %3275 = vrot.lane.b32.xlu0 %v2837, 112
        %v3276 = vpop.permute.xlu0 %3275
        %3277 = vrot.lane.b32.xlu0 %v2839, 112
        %v3278 = vpop.permute.xlu0 %3277
        %3279 = vrot.lane.b32.xlu0 %v2841, 112
        %v3280 = vpop.permute.xlu0 %3279
        %3281 = vrot.lane.b32.xlu0 %v2843, 112
        %v3282 = vpop.permute.xlu0 %3281
        %3283 = vrot.lane.b32.xlu0 %v2845, 112
        %v3284 = vpop.permute.xlu0 %3283
        %3285 = vrot.lane.b32.xlu0 %v2847, 112
        %v3286 = vpop.permute.xlu0 %3285
        %3287 = vrot.lane.b32.xlu0 %v2838, 112
        %v3288 = vpop.permute.xlu0 %3287
        %3289 = vrot.lane.b32.xlu0 %v2840, 112
        %v3290 = vpop.permute.xlu0 %3289
        %3291 = vrot.lane.b32.xlu0 %v2842, 112
        %v3292 = vpop.permute.xlu0 %3291
        %3293 = vrot.lane.b32.xlu0 %v2844, 112
        %v3294 = vpop.permute.xlu0 %3293
        %3295 = vrot.lane.b32.xlu0 %v2846, 112
        %v3296 = vpop.permute.xlu0 %3295
        %3297 = vrot.lane.b32.xlu0 %v2848, 112
        %v3298 = vpop.permute.xlu0 %3297
        %v3299 = vsel %vm1824, %v3276, %v3288
        %v3300 = vsel %vm1824, %v3278, %v3290
        %v3301 = vsel %vm1824, %v3280, %v3292
        %v3302 = vsel %vm1824, %v3282, %v3294
        %v3303 = vsel %vm1824, %v3284, %v3296
        %v3304 = vsel %vm1824, %v3286, %v3298
        %v3305 = vsel %vm1824, %v3288, %v3276
        %v3306 = vsel %vm1824, %v3290, %v3278
        %v3307 = vsel %vm1824, %v3292, %v3280
        %v3308 = vsel %vm1824, %v3294, %v3282
        %v3309 = vsel %vm1824, %v3296, %v3284
        %v3310 = vsel %vm1824, %v3298, %v3286
        %v3311 = vld [vmem:[%s1841] sm:$0x3]
        %v3313 = vperm.slane %v3311, 0
        %v3314 = vperm.slane %v3311, 1
        %v3317 = vmul.f32 %v3299, %v3313
        %v3318 = vmul.f32 %v3305, %v3314
        %v3319 = vmul.f32 %v3300, %v3313
        %v3320 = vmul.f32 %v3306, %v3314
        %v3321 = vmul.f32 %v3301, %v3313
        %v3322 = vmul.f32 %v3307, %v3314
        %v3323 = vmul.f32 %v3302, %v3313
        %v3324 = vmul.f32 %v3308, %v3314
        %v3325 = vmul.f32 %v3303, %v3313
        %v3326 = vmul.f32 %v3309, %v3314
        %v3327 = vmul.f32 %v3304, %v3313
        %v3328 = vmul.f32 %v3310, %v3314
        %v3329 = vpack.c.bf16 %v3318, %v3317
        %v3330 = vpack.c.bf16 %v3320, %v3319
        %v3331 = vpack.c.bf16 %v3322, %v3321
        %v3332 = vpack.c.bf16 %v3324, %v3323
        %v3333 = vpack.c.bf16 %v3326, %v3325
        %v3334 = vpack.c.bf16 %v3328, %v3327
        %3335 = vst [vmem:[#allocation4 + $0x150] sm:$0xff] %v3329
        %3336 = vst [vmem:[#allocation4 + $0x158] sm:$0xff] %v3330
        %3337 = vst [vmem:[#allocation4 + $0x160] sm:$0xff] %v3331
        %3338 = vst [vmem:[#allocation4 + $0x168] sm:$0xff] %v3332
        %3339 = vst [vmem:[#allocation4 + $0x170] sm:$0xff] %v3333
        %3340 = vst [vmem:[#allocation4 + $0x178] sm:$0xff] %v3334
        %3341 = vrot.lane.b32.xlu0 %v2837, 111
        %v3342 = vpop.permute.xlu0 %3341
        %3343 = vrot.lane.b32.xlu0 %v2839, 111
        %v3344 = vpop.permute.xlu0 %3343
        %3345 = vrot.lane.b32.xlu0 %v2841, 111
        %v3346 = vpop.permute.xlu0 %3345
        %3347 = vrot.lane.b32.xlu0 %v2843, 111
        %v3348 = vpop.permute.xlu0 %3347
        %3349 = vrot.lane.b32.xlu0 %v2845, 111
        %v3350 = vpop.permute.xlu0 %3349
        %3351 = vrot.lane.b32.xlu0 %v2847, 111
        %v3352 = vpop.permute.xlu0 %3351
        %3353 = vrot.lane.b32.xlu0 %v2838, 111
        %v3354 = vpop.permute.xlu0 %3353
        %3355 = vrot.lane.b32.xlu0 %v2840, 111
        %v3356 = vpop.permute.xlu0 %3355
        %3357 = vrot.lane.b32.xlu0 %v2842, 111
        %v3358 = vpop.permute.xlu0 %3357
        %3359 = vrot.lane.b32.xlu0 %v2844, 111
        %v3360 = vpop.permute.xlu0 %3359
        %3361 = vrot.lane.b32.xlu0 %v2846, 111
        %v3362 = vpop.permute.xlu0 %3361
        %3363 = vrot.lane.b32.xlu0 %v2848, 111
        %v3364 = vpop.permute.xlu0 %3363
        %v3365 = vsel %vm1912, %v3342, %v3354
        %v3366 = vsel %vm1912, %v3344, %v3356
        %v3367 = vsel %vm1912, %v3346, %v3358
        %v3368 = vsel %vm1912, %v3348, %v3360
        %v3369 = vsel %vm1912, %v3350, %v3362
        %v3370 = vsel %vm1912, %v3352, %v3364
        %v3371 = vsel %vm1912, %v3354, %v3342
        %v3372 = vsel %vm1912, %v3356, %v3344
        %v3373 = vsel %vm1912, %v3358, %v3346
        %v3374 = vsel %vm1912, %v3360, %v3348
        %v3375 = vsel %vm1912, %v3362, %v3350
        %v3376 = vsel %vm1912, %v3364, %v3352
        %v3377 = vld [vmem:[%s1929] sm:$0x3]
        %v3379 = vperm.slane %v3377, 0
        %v3380 = vperm.slane %v3377, 1
        %v3383 = vmul.f32 %v3365, %v3379
        %v3384 = vmul.f32 %v3371, %v3380
        %v3385 = vmul.f32 %v3366, %v3379
        %v3386 = vmul.f32 %v3372, %v3380
        %v3387 = vmul.f32 %v3367, %v3379
        %v3388 = vmul.f32 %v3373, %v3380
        %v3389 = vmul.f32 %v3368, %v3379
        %v3390 = vmul.f32 %v3374, %v3380
        %v3391 = vmul.f32 %v3369, %v3379
        %v3392 = vmul.f32 %v3375, %v3380
        %v3393 = vmul.f32 %v3370, %v3379
        %v3394 = vmul.f32 %v3376, %v3380
        %v3395 = vpack.c.bf16 %v3384, %v3383
        %v3396 = vpack.c.bf16 %v3386, %v3385
        %v3397 = vpack.c.bf16 %v3388, %v3387
        %v3398 = vpack.c.bf16 %v3390, %v3389
        %v3399 = vpack.c.bf16 %v3392, %v3391
        %v3400 = vpack.c.bf16 %v3394, %v3393
        %3401 = vst [vmem:[#allocation4 + $0x180] sm:$0xff] %v3395
        %3402 = vst [vmem:[#allocation4 + $0x188] sm:$0xff] %v3396
        %3403 = vst [vmem:[#allocation4 + $0x190] sm:$0xff] %v3397
        %3404 = vst [vmem:[#allocation4 + $0x198] sm:$0xff] %v3398
        %3405 = vst [vmem:[#allocation4 + $0x1a0] sm:$0xff] %v3399
        %3406 = vst [vmem:[#allocation4 + $0x1a8] sm:$0xff] %v3400
        %v3407 = vld [vmem:[#allocation14] sm:$0xff]
        %v3408 = vld [vmem:[#allocation14 + $0x8] sm:$0xff]
        %v3409 = vld [vmem:[#allocation14 + $0x10] sm:$0xff]
        %v3410 = vld [vmem:[#allocation14 + $0x18] sm:$0xff]
        %v3411 = vld [vmem:[#allocation14 + $0x20] sm:$0xff]
        %v3412 = vld [vmem:[#allocation14 + $0x28] sm:$0xff]
        %v3413 = vld [vmem:[#allocation14 + $0x30] sm:$0xff]
        %v3414 = vld [vmem:[#allocation14 + $0x38] sm:$0xff]
        %v3415 = vld [vmem:[#allocation14 + $0x40] sm:$0xff]
        %v3416 = vld [vmem:[#allocation14 + $0x48] sm:$0xff]
        %v3417 = vld [vmem:[#allocation14 + $0x50] sm:$0xff]
        %v3418 = vld [vmem:[#allocation14 + $0x58] sm:$0xff]
        %v3419 = vld [vmem:[#allocation14 + $0x60] sm:$0xff]
        %v3420 = vld [vmem:[#allocation14 + $0x68] sm:$0xff]
        %v3421 = vld [vmem:[#allocation14 + $0x70] sm:$0xff]
        %v3422 = vld [vmem:[#allocation14 + $0x78] sm:$0xff]
        %v3423 = vld [vmem:[#allocation4] sm:$0xff]
        %v3424 = vld [vmem:[#allocation4 + $0x8] sm:$0xff]
        %v3425 = vld [vmem:[#allocation4 + $0x10] sm:$0xff]
        %v3426 = vld [vmem:[#allocation4 + $0x18] sm:$0xff]
        %v3427 = vld [vmem:[#allocation4 + $0x20] sm:$0xff]
        %v3428 = vld [vmem:[#allocation4 + $0x28] sm:$0xff]
        %v3429 = vld [vmem:[#allocation4 + $0x30] sm:$0xff]
        %v3430 = vld [vmem:[#allocation4 + $0x38] sm:$0xff]
        %v3431 = vld [vmem:[#allocation4 + $0x40] sm:$0xff]
        %v3432 = vld [vmem:[#allocation4 + $0x48] sm:$0xff]
        %v3433 = vld [vmem:[#allocation4 + $0x50] sm:$0xff]
        %v3434 = vld [vmem:[#allocation4 + $0x58] sm:$0xff]
        %v3435 = vld [vmem:[#allocation4 + $0x60] sm:$0xff]
        %v3436 = vld [vmem:[#allocation4 + $0x68] sm:$0xff]
        %v3437 = vld [vmem:[#allocation4 + $0x70] sm:$0xff]
        %v3438 = vld [vmem:[#allocation4 + $0x78] sm:$0xff]
        %v3439 = vld [vmem:[#allocation4 + $0x80] sm:$0xff]
        %v3440 = vld [vmem:[#allocation4 + $0x88] sm:$0xff]
        %v3441 = vld [vmem:[#allocation4 + $0x90] sm:$0xff]
        %v3442 = vld [vmem:[#allocation4 + $0x98] sm:$0xff]
        %v3443 = vld [vmem:[#allocation4 + $0xa0] sm:$0xff]
        %v3444 = vld [vmem:[#allocation4 + $0xa8] sm:$0xff]
        %v3445 = vld [vmem:[#allocation4 + $0xb0] sm:$0xff]
        %v3446 = vld [vmem:[#allocation4 + $0xb8] sm:$0xff]
        %v3447 = vld [vmem:[#allocation4 + $0xc0] sm:$0xff]
        %v3448 = vld [vmem:[#allocation4 + $0xc8] sm:$0xff]
        %v3449 = vld [vmem:[#allocation4 + $0xd0] sm:$0xff]
        %v3450 = vld [vmem:[#allocation4 + $0xd8] sm:$0xff]
        %v3451 = vld [vmem:[#allocation4 + $0xe0] sm:$0xff]
        %v3452 = vld [vmem:[#allocation4 + $0xe8] sm:$0xff]
        %v3453 = vld [vmem:[#allocation4 + $0xf0] sm:$0xff]
        %v3454 = vld [vmem:[#allocation4 + $0xf8] sm:$0xff]
        %v3455 = vld [vmem:[#allocation4 + $0x100] sm:$0xff]
        %v3456 = vld [vmem:[#allocation4 + $0x108] sm:$0xff]
        %v3457 = vld [vmem:[#allocation4 + $0x110] sm:$0xff]
        %v3458 = vld [vmem:[#allocation4 + $0x118] sm:$0xff]
        %v3459 = vld [vmem:[#allocation4 + $0x120] sm:$0xff]
        %v3460 = vld [vmem:[#allocation4 + $0x128] sm:$0xff]
        %v3461 = vld [vmem:[#allocation4 + $0x130] sm:$0xff]
        %v3462 = vld [vmem:[#allocation4 + $0x138] sm:$0xff]
        %v3463 = vld [vmem:[#allocation4 + $0x140] sm:$0xff]
        %v3464 = vld [vmem:[#allocation4 + $0x148] sm:$0xff]
        %v3465 = vld [vmem:[#allocation4 + $0x150] sm:$0xff]
        %v3466 = vld [vmem:[#allocation4 + $0x158] sm:$0xff]
        %v3467 = vld [vmem:[#allocation4 + $0x160] sm:$0xff]
        %v3468 = vld [vmem:[#allocation4 + $0x168] sm:$0xff]
        %v3469 = vld [vmem:[#allocation4 + $0x170] sm:$0xff]
        %v3470 = vld [vmem:[#allocation4 + $0x178] sm:$0xff]
        %v3471 = vld [vmem:[#allocation4 + $0x180] sm:$0xff]
        %v3472 = vld [vmem:[#allocation4 + $0x188] sm:$0xff]
        %v3473 = vld [vmem:[#allocation4 + $0x190] sm:$0xff]
        %v3474 = vld [vmem:[#allocation4 + $0x198] sm:$0xff]
        %v3475 = vld [vmem:[#allocation4 + $0x1a0] sm:$0xff]
        %v3476 = vld [vmem:[#allocation4 + $0x1a8] sm:$0xff]
        %v3477 = vld [vmem:[%s8] sm:$0xff]
        %v3478 = vld [vmem:[%s8 + $0x8] sm:$0xff]
        %v3479 = vld [vmem:[%s8 + $0x10] sm:$0xff]
        %v3480 = vld [vmem:[%s8 + $0x18] sm:$0xff]
        %v3481 = vld [vmem:[%s8 + $0x20] sm:$0xff]
        %v3482 = vld [vmem:[%s8 + $0x28] sm:$0xff]
        %v3483 = vld [vmem:[%s8 + $0x30] sm:$0xff]
        %v3484 = vld [vmem:[%s8 + $0x38] sm:$0xff]
        %3486 = vset.pattern.permute.xlu0 0
        %3487 = vperm.xlu0 %3486, %v3477
        %v3488 = vpop.permute.xlu0 %3487
        %3491 = vset.pattern.permute.xlu0 0
        %3492 = vperm.xlu0 %3491, %v3478
        %v3493 = vpop.permute.xlu0 %3492
        %3496 = vset.pattern.permute.xlu0 0
        %3497 = vperm.xlu0 %3496, %v3479
        %v3498 = vpop.permute.xlu0 %3497
        %3501 = vset.pattern.permute.xlu0 0
        %3502 = vperm.xlu0 %3501, %v3480
        %v3503 = vpop.permute.xlu0 %3502
        %3506 = vset.pattern.permute.xlu0 0
        %3507 = vperm.xlu0 %3506, %v3481
        %v3508 = vpop.permute.xlu0 %3507
        %3511 = vset.pattern.permute.xlu0 0
        %3512 = vperm.xlu0 %3511, %v3482
        %v3513 = vpop.permute.xlu0 %3512
        %3516 = vset.pattern.permute.xlu0 0
        %3517 = vperm.xlu0 %3516, %v3483
        %v3518 = vpop.permute.xlu0 %3517
        %3521 = vset.pattern.permute.xlu0 0
        %3522 = vperm.xlu0 %3521, %v3484
        %v3523 = vpop.permute.xlu0 %3522
        %v3541 = vunpack.c.l.b16 %v3407
        %v3542 = vunpack.c.h.b16 %v3407
        %v3543 = vunpack.c.l.b16 %v3408
        %v3544 = vunpack.c.h.b16 %v3408
        %v3545 = vunpack.c.l.b16 %v3409
        %v3546 = vunpack.c.h.b16 %v3409
        %v3547 = vunpack.c.l.b16 %v3410
        %v3548 = vunpack.c.h.b16 %v3410
        %v3549 = vunpack.c.l.b16 %v3411
        %v3550 = vunpack.c.h.b16 %v3411
        %v3551 = vunpack.c.l.b16 %v3412
        %v3552 = vunpack.c.h.b16 %v3412
        %v3553 = vunpack.c.l.b16 %v3413
        %v3554 = vunpack.c.h.b16 %v3413
        %v3555 = vunpack.c.l.b16 %v3414
        %v3556 = vunpack.c.h.b16 %v3414
        %v3557 = vunpack.c.l.b16 %v3415
        %v3558 = vunpack.c.h.b16 %v3415
        %v3559 = vunpack.c.l.b16 %v3416
        %v3560 = vunpack.c.h.b16 %v3416
        %v3561 = vunpack.c.l.b16 %v3417
        %v3562 = vunpack.c.h.b16 %v3417
        %v3563 = vunpack.c.l.b16 %v3418
        %v3564 = vunpack.c.h.b16 %v3418
        %v3565 = vunpack.c.l.b16 %v3419
        %v3566 = vunpack.c.h.b16 %v3419
        %v3567 = vunpack.c.l.b16 %v3420
        %v3568 = vunpack.c.h.b16 %v3420
        %v3569 = vunpack.c.l.b16 %v3421
        %v3570 = vunpack.c.h.b16 %v3421
        %v3571 = vunpack.c.l.b16 %v3422
        %v3572 = vunpack.c.h.b16 %v3422
        %v3573 = vpack.c.b16 %v3545, %v3541
        %v3574 = vpack.c.b16 %v3546, %v3542
        %v3575 = vpack.c.b16 %v3547, %v3543
        %v3576 = vpack.c.b16 %v3548, %v3544
        %v3577 = vpack.c.b16 %v3553, %v3549
        %v3578 = vpack.c.b16 %v3554, %v3550
        %v3579 = vpack.c.b16 %v3555, %v3551
        %v3580 = vpack.c.b16 %v3556, %v3552
        %v3581 = vpack.c.b16 %v3561, %v3557
        %v3582 = vpack.c.b16 %v3562, %v3558
        %v3583 = vpack.c.b16 %v3563, %v3559
        %v3584 = vpack.c.b16 %v3564, %v3560
        %v3585 = vpack.c.b16 %v3569, %v3565
        %v3586 = vpack.c.b16 %v3570, %v3566
        %v3587 = vpack.c.b16 %v3571, %v3567
        %v3588 = vpack.c.b16 %v3572, %v3568
        %v3655 = vunpack.c.l.b16 %v3423
        %v3656 = vunpack.c.h.b16 %v3423
        %v3657 = vunpack.c.l.b16 %v3424
        %v3658 = vunpack.c.h.b16 %v3424
        %v3659 = vunpack.c.l.b16 %v3425
        %v3660 = vunpack.c.h.b16 %v3425
        %v3661 = vunpack.c.l.b16 %v3426
        %v3662 = vunpack.c.h.b16 %v3426
        %v3663 = vunpack.c.l.b16 %v3427
        %v3664 = vunpack.c.h.b16 %v3427
        %v3665 = vunpack.c.l.b16 %v3428
        %v3666 = vunpack.c.h.b16 %v3428
        %v3667 = vunpack.c.l.b16 %v3429
        %v3668 = vunpack.c.h.b16 %v3429
        %v3669 = vunpack.c.l.b16 %v3430
        %v3670 = vunpack.c.h.b16 %v3430
        %v3671 = vunpack.c.l.b16 %v3431
        %v3672 = vunpack.c.h.b16 %v3431
        %v3673 = vunpack.c.l.b16 %v3432
        %v3674 = vunpack.c.h.b16 %v3432
        %v3675 = vunpack.c.l.b16 %v3433
        %v3676 = vunpack.c.h.b16 %v3433
        %v3677 = vunpack.c.l.b16 %v3434
        %v3678 = vunpack.c.h.b16 %v3434
        %v3679 = vunpack.c.l.b16 %v3435
        %v3680 = vunpack.c.h.b16 %v3435
        %v3681 = vunpack.c.l.b16 %v3436
        %v3682 = vunpack.c.h.b16 %v3436
        %v3683 = vunpack.c.l.b16 %v3437
        %v3684 = vunpack.c.h.b16 %v3437
        %v3685 = vunpack.c.l.b16 %v3438
        %v3686 = vunpack.c.h.b16 %v3438
        %v3687 = vunpack.c.l.b16 %v3439
        %v3688 = vunpack.c.h.b16 %v3439
        %v3689 = vunpack.c.l.b16 %v3440
        %v3690 = vunpack.c.h.b16 %v3440
        %v3691 = vunpack.c.l.b16 %v3441
        %v3692 = vunpack.c.h.b16 %v3441
        %v3693 = vunpack.c.l.b16 %v3442
        %v3694 = vunpack.c.h.b16 %v3442
        %v3695 = vunpack.c.l.b16 %v3443
        %v3696 = vunpack.c.h.b16 %v3443
        %v3697 = vunpack.c.l.b16 %v3444
        %v3698 = vunpack.c.h.b16 %v3444
        %v3699 = vunpack.c.l.b16 %v3445
        %v3700 = vunpack.c.h.b16 %v3445
        %v3701 = vunpack.c.l.b16 %v3446
        %v3702 = vunpack.c.h.b16 %v3446
        %v3703 = vunpack.c.l.b16 %v3447
        %v3704 = vunpack.c.h.b16 %v3447
        %v3705 = vunpack.c.l.b16 %v3448
        %v3706 = vunpack.c.h.b16 %v3448
        %v3707 = vunpack.c.l.b16 %v3449
        %v3708 = vunpack.c.h.b16 %v3449
        %v3709 = vunpack.c.l.b16 %v3450
        %v3710 = vunpack.c.h.b16 %v3450
        %v3711 = vunpack.c.l.b16 %v3451
        %v3712 = vunpack.c.h.b16 %v3451
        %v3713 = vunpack.c.l.b16 %v3452
        %v3714 = vunpack.c.h.b16 %v3452
        %v3715 = vunpack.c.l.b16 %v3453
        %v3716 = vunpack.c.h.b16 %v3453
        %v3717 = vunpack.c.l.b16 %v3454
        %v3718 = vunpack.c.h.b16 %v3454
        %v3719 = vunpack.c.l.b16 %v3455
        %v3720 = vunpack.c.h.b16 %v3455
        %v3721 = vunpack.c.l.b16 %v3456
        %v3722 = vunpack.c.h.b16 %v3456
        %v3723 = vunpack.c.l.b16 %v3457
        %v3724 = vunpack.c.h.b16 %v3457
        %v3725 = vunpack.c.l.b16 %v3458
        %v3726 = vunpack.c.h.b16 %v3458
        %v3727 = vunpack.c.l.b16 %v3459
        %v3728 = vunpack.c.h.b16 %v3459
        %v3729 = vunpack.c.l.b16 %v3460
        %v3730 = vunpack.c.h.b16 %v3460
        %v3731 = vunpack.c.l.b16 %v3461
        %v3732 = vunpack.c.h.b16 %v3461
        %v3733 = vunpack.c.l.b16 %v3462
        %v3734 = vunpack.c.h.b16 %v3462
        %v3735 = vunpack.c.l.b16 %v3463
        %v3736 = vunpack.c.h.b16 %v3463
        %v3737 = vunpack.c.l.b16 %v3464
        %v3738 = vunpack.c.h.b16 %v3464
        %v3739 = vunpack.c.l.b16 %v3465
        %v3740 = vunpack.c.h.b16 %v3465
        %v3741 = vunpack.c.l.b16 %v3466
        %v3742 = vunpack.c.h.b16 %v3466
        %v3743 = vunpack.c.l.b16 %v3467
        %v3744 = vunpack.c.h.b16 %v3467
        %v3745 = vunpack.c.l.b16 %v3468
        %v3746 = vunpack.c.h.b16 %v3468
        %v3747 = vunpack.c.l.b16 %v3469
        %v3748 = vunpack.c.h.b16 %v3469
        %v3749 = vunpack.c.l.b16 %v3470
        %v3750 = vunpack.c.h.b16 %v3470
        %v3751 = vunpack.c.l.b16 %v3471
        %v3752 = vunpack.c.h.b16 %v3471
        %v3753 = vunpack.c.l.b16 %v3472
        %v3754 = vunpack.c.h.b16 %v3472
        %v3755 = vunpack.c.l.b16 %v3473
        %v3756 = vunpack.c.h.b16 %v3473
        %v3757 = vunpack.c.l.b16 %v3474
        %v3758 = vunpack.c.h.b16 %v3474
        %v3759 = vunpack.c.l.b16 %v3475
        %v3760 = vunpack.c.h.b16 %v3475
        %v3761 = vunpack.c.l.b16 %v3476
        %v3762 = vunpack.c.h.b16 %v3476
        %v3763 = vpack.c.b16 %v3657, %v3655
        %v3764 = vpack.c.b16 %v3658, %v3656
        %v3765 = vpack.c.b16 %v3661, %v3659
        %v3766 = vpack.c.b16 %v3662, %v3660
        %v3767 = vpack.c.b16 %v3665, %v3663
        %v3768 = vpack.c.b16 %v3666, %v3664
        %v3769 = vpack.c.b16 %v3669, %v3667
        %v3770 = vpack.c.b16 %v3670, %v3668
        %v3771 = vpack.c.b16 %v3673, %v3671
        %v3772 = vpack.c.b16 %v3674, %v3672
        %v3773 = vpack.c.b16 %v3677, %v3675
        %v3774 = vpack.c.b16 %v3678, %v3676
        %v3775 = vpack.c.b16 %v3681, %v3679
        %v3776 = vpack.c.b16 %v3682, %v3680
        %v3777 = vpack.c.b16 %v3685, %v3683
        %v3778 = vpack.c.b16 %v3686, %v3684
        %v3779 = vpack.c.b16 %v3689, %v3687
        %v3780 = vpack.c.b16 %v3690, %v3688
        %v3781 = vpack.c.b16 %v3693, %v3691
        %v3782 = vpack.c.b16 %v3694, %v3692
        %v3783 = vpack.c.b16 %v3697, %v3695
        %v3784 = vpack.c.b16 %v3698, %v3696
        %v3785 = vpack.c.b16 %v3701, %v3699
        %v3786 = vpack.c.b16 %v3702, %v3700
        %v3787 = vpack.c.b16 %v3705, %v3703
        %v3788 = vpack.c.b16 %v3706, %v3704
        %v3789 = vpack.c.b16 %v3709, %v3707
        %v3790 = vpack.c.b16 %v3710, %v3708
        %v3791 = vpack.c.b16 %v3713, %v3711
        %v3792 = vpack.c.b16 %v3714, %v3712
        %v3793 = vpack.c.b16 %v3717, %v3715
        %v3794 = vpack.c.b16 %v3718, %v3716
        %v3795 = vpack.c.b16 %v3721, %v3719
        %v3796 = vpack.c.b16 %v3722, %v3720
        %v3797 = vpack.c.b16 %v3725, %v3723
        %v3798 = vpack.c.b16 %v3726, %v3724
        %v3799 = vpack.c.b16 %v3729, %v3727
        %v3800 = vpack.c.b16 %v3730, %v3728
        %v3801 = vpack.c.b16 %v3733, %v3731
        %v3802 = vpack.c.b16 %v3734, %v3732
        %v3803 = vpack.c.b16 %v3737, %v3735
        %v3804 = vpack.c.b16 %v3738, %v3736
        %v3805 = vpack.c.b16 %v3741, %v3739
        %v3806 = vpack.c.b16 %v3742, %v3740
        %v3807 = vpack.c.b16 %v3745, %v3743
        %v3808 = vpack.c.b16 %v3746, %v3744
        %v3809 = vpack.c.b16 %v3749, %v3747
        %v3810 = vpack.c.b16 %v3750, %v3748
        %v3811 = vpack.c.b16 %v3753, %v3751
        %v3812 = vpack.c.b16 %v3754, %v3752
        %v3813 = vpack.c.b16 %v3757, %v3755
        %v3814 = vpack.c.b16 %v3758, %v3756
        %v3815 = vpack.c.b16 %v3761, %v3759
        %v3816 = vpack.c.b16 %v3762, %v3760
        %vm3871 = vcmask 392192
        %v3873 = vsel %vm3871, %v3576, 0
        %v3876 = vsel %vm3871, %v3580, 0
        %v3879 = vsel %vm3871, %v3584, 0
        %v3882 = vsel %vm3871, %v3588, 0
        %3884 = vmatpush.bf16.msra.mxu0 %v3777
        %3885 = vmatpush.bf16.msra.mxu0 %v3775
        %3886 = vmatpush.bf16.msra.mxu0 %v3773
        %3887 = vmatpush.bf16.msra.mxu0 %v3771
        %3888 = vmatpush.bf16.msra.mxu0 %v3769
        %3889 = vmatpush.bf16.msra.mxu0 %v3767
        %3890 = vmatpush.bf16.msra.mxu0 %v3765
        %3891 = vmatpush.bf16.msra.mxu0 %v3763
        %3892 = vmatmul.bf16.gmra.mxu0 %v3573
        %v3893 = vpop.f32.mrf.mxu0
        %v3894 = vadd.f32 %v3488, %v3893
        %v3895 = vpop.f32.mrf.mxu0
        %v3896 = vadd.f32 %v3493, %v3895
        %3897 = vmatmul.bf16.gmra.mxu0 %v3577
        %v3898 = vpop.f32.mrf.mxu0
        %v3899 = vadd.f32 %v3498, %v3898
        %v3900 = vpop.f32.mrf.mxu0
        %v3901 = vadd.f32 %v3503, %v3900
        %3902 = vmatmul.bf16.gmra.mxu0 %v3581
        %v3903 = vpop.f32.mrf.mxu0
        %v3904 = vadd.f32 %v3508, %v3903
        %v3905 = vpop.f32.mrf.mxu0
        %v3906 = vadd.f32 %v3513, %v3905
        %3907 = vmatmul.bf16.gmra.mxu0 %v3585
        %v3908 = vpop.f32.mrf.mxu0
        %v3909 = vadd.f32 %v3518, %v3908
        %v3910 = vpop.f32.mrf.mxu0
        %v3911 = vadd.f32 %v3523, %v3910
        %3912 = vdwg.mxu0
        %3913 = vmatpush.bf16.msra.mxu0 %v3793
        %3914 = vmatpush.bf16.msra.mxu0 %v3791
        %3915 = vmatpush.bf16.msra.mxu0 %v3789
        %3916 = vmatpush.bf16.msra.mxu0 %v3787
        %3917 = vmatpush.bf16.msra.mxu0 %v3785
        %3918 = vmatpush.bf16.msra.mxu0 %v3783
        %3919 = vmatpush.bf16.msra.mxu0 %v3781
        %3920 = vmatpush.bf16.msra.mxu0 %v3779
        %3921 = vmatmul.bf16.gmra.mxu0 %v3574
        %v3922 = vpop.f32.mrf.mxu0
        %v3923 = vadd.f32 %v3894, %v3922
        %v3924 = vpop.f32.mrf.mxu0
        %v3925 = vadd.f32 %v3896, %v3924
        %3926 = vmatmul.bf16.gmra.mxu0 %v3578
        %v3927 = vpop.f32.mrf.mxu0
        %v3928 = vadd.f32 %v3899, %v3927
        %v3929 = vpop.f32.mrf.mxu0
        %v3930 = vadd.f32 %v3901, %v3929
        %3931 = vmatmul.bf16.gmra.mxu0 %v3582
        %v3932 = vpop.f32.mrf.mxu0
        %v3933 = vadd.f32 %v3904, %v3932
        %v3934 = vpop.f32.mrf.mxu0
        %v3935 = vadd.f32 %v3906, %v3934
        %3936 = vmatmul.bf16.gmra.mxu0 %v3586
        %v3937 = vpop.f32.mrf.mxu0
        %v3938 = vadd.f32 %v3909, %v3937
        %v3939 = vpop.f32.mrf.mxu0
        %v3940 = vadd.f32 %v3911, %v3939
        %3941 = vdwg.mxu0
        %3942 = vmatpush.bf16.msra.mxu0 %v3809
        %3943 = vmatpush.bf16.msra.mxu0 %v3807
        %3944 = vmatpush.bf16.msra.mxu0 %v3805
        %3945 = vmatpush.bf16.msra.mxu0 %v3803
        %3946 = vmatpush.bf16.msra.mxu0 %v3801
        %3947 = vmatpush.bf16.msra.mxu0 %v3799
        %3948 = vmatpush.bf16.msra.mxu0 %v3797
        %3949 = vmatpush.bf16.msra.mxu0 %v3795
        %3950 = vmatmul.bf16.gmra.mxu0 %v3575
        %v3951 = vpop.f32.mrf.mxu0
        %v3952 = vadd.f32 %v3923, %v3951
        %v3953 = vpop.f32.mrf.mxu0
        %v3954 = vadd.f32 %v3925, %v3953
        %3955 = vmatmul.bf16.gmra.mxu0 %v3579
        %v3956 = vpop.f32.mrf.mxu0
        %v3957 = vadd.f32 %v3928, %v3956
        %v3958 = vpop.f32.mrf.mxu0
        %v3959 = vadd.f32 %v3930, %v3958
        %3960 = vmatmul.bf16.gmra.mxu0 %v3583
        %v3961 = vpop.f32.mrf.mxu0
        %v3962 = vadd.f32 %v3933, %v3961
        %v3963 = vpop.f32.mrf.mxu0
        %v3964 = vadd.f32 %v3935, %v3963
        %3965 = vmatmul.bf16.gmra.mxu0 %v3587
        %v3966 = vpop.f32.mrf.mxu0
        %v3967 = vadd.f32 %v3938, %v3966
        %v3968 = vpop.f32.mrf.mxu0
        %v3969 = vadd.f32 %v3940, %v3968
        %3970 = vdwg.mxu0
        %3971 = vmatpush.bf16.msra.mxu0 0
        %3972 = vmatpush.bf16.msra.mxu0 0
        %3973 = vmatpush.bf16.msra.mxu0 0
        %3974 = vmatpush.bf16.msra.mxu0 0
        %3975 = vmatpush.bf16.msra.mxu0 0
        %3976 = vmatpush.bf16.msra.mxu0 %v3815
        %3977 = vmatpush.bf16.msra.mxu0 %v3813
        %3978 = vmatpush.bf16.msra.mxu0 %v3811
        %3979 = vmatmul.bf16.gmra.mxu0 %v3873
        %v3980 = vpop.f32.mrf.mxu0
        %v3981 = vadd.f32 %v3952, %v3980
        %v3982 = vpop.f32.mrf.mxu0
        %v3983 = vadd.f32 %v3954, %v3982
        %3984 = vmatmul.bf16.gmra.mxu0 %v3876
        %v3985 = vpop.f32.mrf.mxu0
        %v3986 = vadd.f32 %v3957, %v3985
        %v3987 = vpop.f32.mrf.mxu0
        %v3988 = vadd.f32 %v3959, %v3987
        %3989 = vmatmul.bf16.gmra.mxu0 %v3879
        %v3990 = vpop.f32.mrf.mxu0
        %v3991 = vadd.f32 %v3962, %v3990
        %v3992 = vpop.f32.mrf.mxu0
        %v3993 = vadd.f32 %v3964, %v3992
        %3994 = vmatmul.bf16.gmra.mxu0 %v3882
        %v3995 = vpop.f32.mrf.mxu0
        %v3996 = vadd.f32 %v3967, %v3995
        %v3997 = vpop.f32.mrf.mxu0
        %v3998 = vadd.f32 %v3969, %v3997
        %3999 = vdwg.mxu0
        %4000 = vmatpush.bf16.msra.mxu0 %v3778
        %4001 = vmatpush.bf16.msra.mxu0 %v3776
        %4002 = vmatpush.bf16.msra.mxu0 %v3774
        %4003 = vmatpush.bf16.msra.mxu0 %v3772
        %4004 = vmatpush.bf16.msra.mxu0 %v3770
        %4005 = vmatpush.bf16.msra.mxu0 %v3768
        %4006 = vmatpush.bf16.msra.mxu0 %v3766
        %4007 = vmatpush.bf16.msra.mxu0 %v3764
        %4008 = vmatmul.bf16.gmra.mxu0 %v3573
        %v4009 = vpop.f32.mrf.mxu0
        %v4010 = vadd.f32 %v3488, %v4009
        %v4011 = vpop.f32.mrf.mxu0
        %v4012 = vadd.f32 %v3493, %v4011
        %4013 = vmatmul.bf16.gmra.mxu0 %v3577
        %v4014 = vpop.f32.mrf.mxu0
        %v4015 = vadd.f32 %v3498, %v4014
        %v4016 = vpop.f32.mrf.mxu0
        %v4017 = vadd.f32 %v3503, %v4016
        %4018 = vmatmul.bf16.gmra.mxu0 %v3581
        %v4019 = vpop.f32.mrf.mxu0
        %v4020 = vadd.f32 %v3508, %v4019
        %v4021 = vpop.f32.mrf.mxu0
        %v4022 = vadd.f32 %v3513, %v4021
        %4023 = vmatmul.bf16.gmra.mxu0 %v3585
        %v4024 = vpop.f32.mrf.mxu0
        %v4025 = vadd.f32 %v3518, %v4024
        %v4026 = vpop.f32.mrf.mxu0
        %v4027 = vadd.f32 %v3523, %v4026
        %4028 = vdwg.mxu0
        %4029 = vmatpush.bf16.msra.mxu0 %v3794
        %4030 = vmatpush.bf16.msra.mxu0 %v3792
        %4031 = vmatpush.bf16.msra.mxu0 %v3790
        %4032 = vmatpush.bf16.msra.mxu0 %v3788
        %4033 = vmatpush.bf16.msra.mxu0 %v3786
        %4034 = vmatpush.bf16.msra.mxu0 %v3784
        %4035 = vmatpush.bf16.msra.mxu0 %v3782
        %4036 = vmatpush.bf16.msra.mxu0 %v3780
        %4037 = vmatmul.bf16.gmra.mxu0 %v3574
        %v4038 = vpop.f32.mrf.mxu0
        %v4039 = vadd.f32 %v4010, %v4038
        %v4040 = vpop.f32.mrf.mxu0
        %v4041 = vadd.f32 %v4012, %v4040
        %4042 = vmatmul.bf16.gmra.mxu0 %v3578
        %v4043 = vpop.f32.mrf.mxu0
        %v4044 = vadd.f32 %v4015, %v4043
        %v4045 = vpop.f32.mrf.mxu0
        %v4046 = vadd.f32 %v4017, %v4045
        %4047 = vmatmul.bf16.gmra.mxu0 %v3582
        %v4048 = vpop.f32.mrf.mxu0
        %v4049 = vadd.f32 %v4020, %v4048
        %v4050 = vpop.f32.mrf.mxu0
        %v4051 = vadd.f32 %v4022, %v4050
        %4052 = vmatmul.bf16.gmra.mxu0 %v3586
        %v4053 = vpop.f32.mrf.mxu0
        %v4054 = vadd.f32 %v4025, %v4053
        %v4055 = vpop.f32.mrf.mxu0
        %v4056 = vadd.f32 %v4027, %v4055
        %4057 = vdwg.mxu0
        %4058 = vmatpush.bf16.msra.mxu0 %v3810
        %4059 = vmatpush.bf16.msra.mxu0 %v3808
        %4060 = vmatpush.bf16.msra.mxu0 %v3806
        %4061 = vmatpush.bf16.msra.mxu0 %v3804
        %4062 = vmatpush.bf16.msra.mxu0 %v3802
        %4063 = vmatpush.bf16.msra.mxu0 %v3800
        %4064 = vmatpush.bf16.msra.mxu0 %v3798
        %4065 = vmatpush.bf16.msra.mxu0 %v3796
        %4066 = vmatmul.bf16.gmra.mxu0 %v3575
        %v4067 = vpop.f32.mrf.mxu0
        %v4068 = vadd.f32 %v4039, %v4067
        %v4069 = vpop.f32.mrf.mxu0
        %v4070 = vadd.f32 %v4041, %v4069
        %4071 = vmatmul.bf16.gmra.mxu0 %v3579
        %v4072 = vpop.f32.mrf.mxu0
        %v4073 = vadd.f32 %v4044, %v4072
        %v4074 = vpop.f32.mrf.mxu0
        %v4075 = vadd.f32 %v4046, %v4074
        %4076 = vmatmul.bf16.gmra.mxu0 %v3583
        %v4077 = vpop.f32.mrf.mxu0
        %v4078 = vadd.f32 %v4049, %v4077
        %v4079 = vpop.f32.mrf.mxu0
        %v4080 = vadd.f32 %v4051, %v4079
        %4081 = vmatmul.bf16.gmra.mxu0 %v3587
        %v4082 = vpop.f32.mrf.mxu0
        %v4083 = vadd.f32 %v4054, %v4082
        %v4084 = vpop.f32.mrf.mxu0
        %v4085 = vadd.f32 %v4056, %v4084
        %4086 = vdwg.mxu0
        %4087 = vmatpush.bf16.msra.mxu0 0
        %4088 = vmatpush.bf16.msra.mxu0 0
        %4089 = vmatpush.bf16.msra.mxu0 0
        %4090 = vmatpush.bf16.msra.mxu0 0
        %4091 = vmatpush.bf16.msra.mxu0 0
        %4092 = vmatpush.bf16.msra.mxu0 %v3816
        %4093 = vmatpush.bf16.msra.mxu0 %v3814
        %4094 = vmatpush.bf16.msra.mxu0 %v3812
        %4095 = vmatmul.bf16.gmra.mxu0 %v3873
        %v4096 = vpop.f32.mrf.mxu0
        %v4097 = vadd.f32 %v4068, %v4096
        %v4098 = vpop.f32.mrf.mxu0
        %v4099 = vadd.f32 %v4070, %v4098
        %4100 = vmatmul.bf16.gmra.mxu0 %v3876
        %v4101 = vpop.f32.mrf.mxu0
        %v4102 = vadd.f32 %v4073, %v4101
        %v4103 = vpop.f32.mrf.mxu0
        %v4104 = vadd.f32 %v4075, %v4103
        %4105 = vmatmul.bf16.gmra.mxu0 %v3879
        %v4106 = vpop.f32.mrf.mxu0
        %v4107 = vadd.f32 %v4078, %v4106
        %v4108 = vpop.f32.mrf.mxu0
        %v4109 = vadd.f32 %v4080, %v4108
        %4110 = vmatmul.bf16.gmra.mxu0 %v3882
        %v4111 = vpop.f32.mrf.mxu0
        %v4112 = vadd.f32 %v4083, %v4111
        %v4113 = vpop.f32.mrf.mxu0
        %v4114 = vadd.f32 %v4085, %v4113
        %4115 = vdwg.mxu0
        %v4116 = vmax.f32 %v3981, 0.0
        %v4117 = vmax.f32 %v4097, 0.0
        %v4118 = vmax.f32 %v3983, 0.0
        %v4119 = vmax.f32 %v4099, 0.0
        %v4120 = vmax.f32 %v3986, 0.0
        %v4121 = vmax.f32 %v4102, 0.0
        %v4122 = vmax.f32 %v3988, 0.0
        %v4123 = vmax.f32 %v4104, 0.0
        %v4124 = vmax.f32 %v3991, 0.0
        %v4125 = vmax.f32 %v4107, 0.0
        %v4126 = vmax.f32 %v3993, 0.0
        %v4127 = vmax.f32 %v4109, 0.0
        %v4128 = vmax.f32 %v3996, 0.0
        %v4129 = vmax.f32 %v4112, 0.0
        %v4130 = vmax.f32 %v3998, 0.0
        %v4131 = vmax.f32 %v4114, 0.0
        %v4132 = vpack.c.bf16 %v1201, %v1200
        %v4133 = vpack.c.bf16 %v1203, %v1202
        %v4134 = vpack.c.bf16 %v1205, %v1204
        %v4135 = vpack.c.bf16 %v1207, %v1206
        %4136 = vst [vmem:[#allocation5] sm:$0xff] %v4132
        %4137 = vst [vmem:[#allocation5 + $0x8] sm:$0xff] %v4133
        %4138 = vst [vmem:[#allocation5 + $0x10] sm:$0xff] %v4134
        %4139 = vst [vmem:[#allocation5 + $0x18] sm:$0xff] %v4135
        %v4140 = vpack.c.bf16 %v2368, %v2367
        %v4141 = vpack.c.bf16 %v2370, %v2369
        %v4142 = vpack.c.bf16 %v2372, %v2371
        %v4143 = vpack.c.bf16 %v2374, %v2373
        %4144 = vst [vmem:[#allocation5 + $0x20] sm:$0xff] %v4140
        %4145 = vst [vmem:[#allocation5 + $0x28] sm:$0xff] %v4141
        %4146 = vst [vmem:[#allocation5 + $0x30] sm:$0xff] %v4142
        %4147 = vst [vmem:[#allocation5 + $0x38] sm:$0xff] %v4143
        %v4148 = vpack.c.bf16 %v4117, %v4116
        %v4149 = vpack.c.bf16 %v4119, %v4118
        %v4150 = vpack.c.bf16 %v4121, %v4120
        %v4151 = vpack.c.bf16 %v4123, %v4122
        %v4152 = vpack.c.bf16 %v4125, %v4124
        %v4153 = vpack.c.bf16 %v4127, %v4126
        %v4154 = vpack.c.bf16 %v4129, %v4128
        %v4155 = vpack.c.bf16 %v4131, %v4130
        %4156 = vst [vmem:[#allocation5 + $0x40] sm:$0xff] %v4148
        %4157 = vst [vmem:[#allocation5 + $0x48] sm:$0xff] %v4149
        %4158 = vst [vmem:[#allocation5 + $0x50] sm:$0xff] %v4150
        %4159 = vst [vmem:[#allocation5 + $0x58] sm:$0xff] %v4151
        %4160 = vst [vmem:[#allocation5 + $0x60] sm:$0xff] %v4152
        %4161 = vst [vmem:[#allocation5 + $0x68] sm:$0xff] %v4153
        %4162 = vst [vmem:[#allocation5 + $0x70] sm:$0xff] %v4154
        %4163 = vst [vmem:[#allocation5 + $0x78] sm:$0xff] %v4155
        %v4164 = vld [vmem:[#allocation15] sm:$0xf]
        %v4165 = vld [vmem:[#allocation15 + $0x4] sm:$0xf]
        %v4166 = vld [vmem:[#allocation15 + $0x8] sm:$0xf]
        %v4167 = vld [vmem:[#allocation15 + $0xc] sm:$0xf]
        %v4168 = vld [vmem:[#allocation15 + $0x10] sm:$0xf]
        %v4169 = vld [vmem:[#allocation15 + $0x14] sm:$0xf]
        %v4170 = vld [vmem:[#allocation15 + $0x18] sm:$0xf]
        %v4171 = vld [vmem:[#allocation15 + $0x1c] sm:$0xf]
        %v4172 = vld [vmem:[#allocation15 + $0x20] sm:$0xf]
        %v4173 = vld [vmem:[#allocation15 + $0x24] sm:$0xf]
        %v4174 = vld [vmem:[#allocation15 + $0x28] sm:$0xf]
        %v4175 = vld [vmem:[#allocation15 + $0x2c] sm:$0xf]
        %v4176 = vld [vmem:[#allocation15 + $0x30] sm:$0xf]
        %v4177 = vld [vmem:[#allocation15 + $0x34] sm:$0xf]
        %v4178 = vld [vmem:[#allocation15 + $0x38] sm:$0xf]
        %v4179 = vld [vmem:[#allocation15 + $0x3c] sm:$0xf]
        %v4180 = vld [vmem:[#allocation15 + $0x40] sm:$0xf]
        %v4181 = vld [vmem:[#allocation15 + $0x44] sm:$0xf]
        %v4182 = vld [vmem:[#allocation15 + $0x48] sm:$0xf]
        %v4183 = vld [vmem:[#allocation15 + $0x4c] sm:$0xf]
        %v4184 = vld [vmem:[#allocation15 + $0x50] sm:$0xf]
        %v4185 = vld [vmem:[#allocation15 + $0x54] sm:$0xf]
        %v4186 = vld [vmem:[#allocation15 + $0x58] sm:$0xf]
        %v4187 = vld [vmem:[#allocation15 + $0x5c] sm:$0xf]
        %v4188 = vld [vmem:[#allocation15 + $0x60] sm:$0xf]
        %v4189 = vld [vmem:[#allocation15 + $0x64] sm:$0xf]
        %v4190 = vld [vmem:[#allocation15 + $0x68] sm:$0xf]
        %v4191 = vld [vmem:[#allocation15 + $0x6c] sm:$0xf]
        %v4192 = vld [vmem:[#allocation15 + $0x70] sm:$0xf]
        %v4193 = vld [vmem:[#allocation15 + $0x74] sm:$0xf]
        %v4194 = vld [vmem:[#allocation15 + $0x78] sm:$0xf]
        %v4195 = vld [vmem:[#allocation15 + $0x7c] sm:$0xf]
        %v4196 = vld [vmem:[#allocation15 + $0x80] sm:$0xf]
        %v4197 = vld [vmem:[#allocation15 + $0x84] sm:$0xf]
        %v4198 = vld [vmem:[#allocation15 + $0x88] sm:$0xf]
        %v4199 = vld [vmem:[#allocation15 + $0x8c] sm:$0xf]
        %v4200 = vld [vmem:[#allocation15 + $0x90] sm:$0xf]
        %v4201 = vld [vmem:[#allocation15 + $0x94] sm:$0xf]
        %v4202 = vld [vmem:[#allocation15 + $0x98] sm:$0xf]
        %v4203 = vld [vmem:[#allocation15 + $0x9c] sm:$0xf]
        %v4204 = vld [vmem:[#allocation15 + $0xa0] sm:$0xf]
        %v4205 = vld [vmem:[#allocation15 + $0xa4] sm:$0xf]
        %v4206 = vld [vmem:[#allocation15 + $0xa8] sm:$0xf]
        %v4207 = vld [vmem:[#allocation15 + $0xac] sm:$0xf]
        %v4208 = vld [vmem:[#allocation15 + $0xb0] sm:$0xf]
        %v4209 = vld [vmem:[#allocation15 + $0xb4] sm:$0xf]
        %v4210 = vld [vmem:[#allocation15 + $0xb8] sm:$0xf]
        %v4211 = vld [vmem:[#allocation15 + $0xbc] sm:$0xf]
        %v4212 = vld [vmem:[#allocation5] sm:$0xff]
        %v4213 = vld [vmem:[#allocation5 + $0x8] sm:$0xff]
        %v4214 = vld [vmem:[#allocation5 + $0x10] sm:$0xff]
        %v4215 = vld [vmem:[#allocation5 + $0x18] sm:$0xff]
        %v4216 = vld [vmem:[#allocation5 + $0x20] sm:$0xff]
        %v4217 = vld [vmem:[#allocation5 + $0x28] sm:$0xff]
        %v4218 = vld [vmem:[#allocation5 + $0x30] sm:$0xff]
        %v4219 = vld [vmem:[#allocation5 + $0x38] sm:$0xff]
        %v4220 = vld [vmem:[#allocation5 + $0x40] sm:$0xff]
        %v4221 = vld [vmem:[#allocation5 + $0x48] sm:$0xff]
        %v4222 = vld [vmem:[#allocation5 + $0x50] sm:$0xff]
        %v4223 = vld [vmem:[#allocation5 + $0x58] sm:$0xff]
        %v4224 = vld [vmem:[#allocation5 + $0x60] sm:$0xff]
        %v4225 = vld [vmem:[#allocation5 + $0x68] sm:$0xff]
        %v4226 = vld [vmem:[#allocation5 + $0x70] sm:$0xff]
        %v4227 = vld [vmem:[#allocation5 + $0x78] sm:$0xff]
        %v4228 = vld [vmem:[%s10] sm:$0xff]
        %v4229 = vld [vmem:[%s10 + $0x8] sm:$0xff]
        %v4230 = vld [vmem:[%s10 + $0x10] sm:$0xff]
        %v4231 = vld [vmem:[%s10 + $0x18] sm:$0xff]
        %v4232 = vld [vmem:[%s10 + $0x20] sm:$0xff]
        %v4233 = vld [vmem:[%s10 + $0x28] sm:$0xff]
        %v4234 = vld [vmem:[%s10 + $0x30] sm:$0xff]
        %v4235 = vld [vmem:[%s10 + $0x38] sm:$0xff]
        %v4236 = vld [vmem:[%s10 + $0x40] sm:$0xff]
        %v4237 = vld [vmem:[%s10 + $0x48] sm:$0xff]
        %v4238 = vld [vmem:[%s10 + $0x50] sm:$0xff]
        %v4239 = vld [vmem:[%s10 + $0x58] sm:$0xff]
        %v4240 = vld [vmem:[%s10 + $0x60] sm:$0xff]
        %v4241 = vld [vmem:[%s10 + $0x68] sm:$0xff]
        %v4242 = vld [vmem:[%s10 + $0x70] sm:$0xff]
        %v4243 = vld [vmem:[%s10 + $0x78] sm:$0xff]
        %v4244 = vld [vmem:[%s10 + $0x80] sm:$0xff]
        %v4245 = vld [vmem:[%s10 + $0x88] sm:$0xff]
        %v4246 = vld [vmem:[%s10 + $0x90] sm:$0xff]
        %v4247 = vld [vmem:[%s10 + $0x98] sm:$0xff]
        %v4248 = vld [vmem:[%s10 + $0xa0] sm:$0xff]
        %v4249 = vld [vmem:[%s10 + $0xa8] sm:$0xff]
        %v4250 = vld [vmem:[%s10 + $0xb0] sm:$0xff]
        %v4251 = vld [vmem:[%s10 + $0xb8] sm:$0xff]
        %v4252 = vld [vmem:[%s10 + $0xc0] sm:$0xff]
        %v4253 = vld [vmem:[%s10 + $0xc8] sm:$0xff]
        %v4254 = vld [vmem:[%s10 + $0xd0] sm:$0xff]
        %v4255 = vld [vmem:[%s10 + $0xd8] sm:$0xff]
        %v4256 = vld [vmem:[%s10 + $0xe0] sm:$0xff]
        %v4257 = vld [vmem:[%s10 + $0xe8] sm:$0xff]
        %v4258 = vld [vmem:[%s10 + $0xf0] sm:$0xff]
        %v4259 = vld [vmem:[%s10 + $0xf8] sm:$0xff]
        %v4260 = vld [vmem:[%s10 + $0x100] sm:$0xff]
        %v4261 = vld [vmem:[%s10 + $0x108] sm:$0xff]
        %v4262 = vld [vmem:[%s10 + $0x110] sm:$0xff]
        %v4263 = vld [vmem:[%s10 + $0x118] sm:$0xff]
        %v4264 = vld [vmem:[%s10 + $0x120] sm:$0xff]
        %v4265 = vld [vmem:[%s10 + $0x128] sm:$0xff]
        %v4266 = vld [vmem:[%s10 + $0x130] sm:$0xff]
        %v4267 = vld [vmem:[%s10 + $0x138] sm:$0xff]
        %v4268 = vld [vmem:[%s10 + $0x140] sm:$0xff]
        %v4269 = vld [vmem:[%s10 + $0x148] sm:$0xff]
        %v4270 = vld [vmem:[%s10 + $0x150] sm:$0xff]
        %v4271 = vld [vmem:[%s10 + $0x158] sm:$0xff]
        %v4272 = vld [vmem:[%s10 + $0x160] sm:$0xff]
        %v4273 = vld [vmem:[%s10 + $0x168] sm:$0xff]
        %v4274 = vld [vmem:[%s10 + $0x170] sm:$0xff]
        %v4275 = vld [vmem:[%s10 + $0x178] sm:$0xff]
        %4277 = vset.pattern.permute.xlu0 0
        %4278 = vperm.xlu0 %4277, %v4228
        %v4279 = vpop.permute.xlu0 %4278
        %4282 = vset.pattern.permute.xlu0 0
        %4283 = vperm.xlu0 %4282, %v4229
        %v4284 = vpop.permute.xlu0 %4283
        %4287 = vset.pattern.permute.xlu0 0
        %4288 = vperm.xlu0 %4287, %v4230
        %v4289 = vpop.permute.xlu0 %4288
        %4292 = vset.pattern.permute.xlu0 0
        %4293 = vperm.xlu0 %4292, %v4231
        %v4294 = vpop.permute.xlu0 %4293
        %4297 = vset.pattern.permute.xlu0 0
        %4298 = vperm.xlu0 %4297, %v4232
        %v4299 = vpop.permute.xlu0 %4298
        %4302 = vset.pattern.permute.xlu0 0
        %4303 = vperm.xlu0 %4302, %v4233
        %v4304 = vpop.permute.xlu0 %4303
        %4307 = vset.pattern.permute.xlu0 0
        %4308 = vperm.xlu0 %4307, %v4234
        %v4309 = vpop.permute.xlu0 %4308
        %4312 = vset.pattern.permute.xlu0 0
        %4313 = vperm.xlu0 %4312, %v4235
        %v4314 = vpop.permute.xlu0 %4313
        %4317 = vset.pattern.permute.xlu0 0
        %4318 = vperm.xlu0 %4317, %v4236
        %v4319 = vpop.permute.xlu0 %4318
        %4322 = vset.pattern.permute.xlu0 0
        %4323 = vperm.xlu0 %4322, %v4237
        %v4324 = vpop.permute.xlu0 %4323
        %4327 = vset.pattern.permute.xlu0 0
        %4328 = vperm.xlu0 %4327, %v4238
        %v4329 = vpop.permute.xlu0 %4328
        %4332 = vset.pattern.permute.xlu0 0
        %4333 = vperm.xlu0 %4332, %v4239
        %v4334 = vpop.permute.xlu0 %4333
        %4337 = vset.pattern.permute.xlu0 0
        %4338 = vperm.xlu0 %4337, %v4240
        %v4339 = vpop.permute.xlu0 %4338
        %4342 = vset.pattern.permute.xlu0 0
        %4343 = vperm.xlu0 %4342, %v4241
        %v4344 = vpop.permute.xlu0 %4343
        %4347 = vset.pattern.permute.xlu0 0
        %4348 = vperm.xlu0 %4347, %v4242
        %v4349 = vpop.permute.xlu0 %4348
        %4352 = vset.pattern.permute.xlu0 0
        %4353 = vperm.xlu0 %4352, %v4243
        %v4354 = vpop.permute.xlu0 %4353
        %4357 = vset.pattern.permute.xlu0 0
        %4358 = vperm.xlu0 %4357, %v4244
        %v4359 = vpop.permute.xlu0 %4358
        %4362 = vset.pattern.permute.xlu0 0
        %4363 = vperm.xlu0 %4362, %v4245
        %v4364 = vpop.permute.xlu0 %4363
        %4367 = vset.pattern.permute.xlu0 0
        %4368 = vperm.xlu0 %4367, %v4246
        %v4369 = vpop.permute.xlu0 %4368
        %4372 = vset.pattern.permute.xlu0 0
        %4373 = vperm.xlu0 %4372, %v4247
        %v4374 = vpop.permute.xlu0 %4373
        %4377 = vset.pattern.permute.xlu0 0
        %4378 = vperm.xlu0 %4377, %v4248
        %v4379 = vpop.permute.xlu0 %4378
        %4382 = vset.pattern.permute.xlu0 0
        %4383 = vperm.xlu0 %4382, %v4249
        %v4384 = vpop.permute.xlu0 %4383
        %4387 = vset.pattern.permute.xlu0 0
        %4388 = vperm.xlu0 %4387, %v4250
        %v4389 = vpop.permute.xlu0 %4388
        %4392 = vset.pattern.permute.xlu0 0
        %4393 = vperm.xlu0 %4392, %v4251
        %v4394 = vpop.permute.xlu0 %4393
        %4397 = vset.pattern.permute.xlu0 0
        %4398 = vperm.xlu0 %4397, %v4252
        %v4399 = vpop.permute.xlu0 %4398
        %4402 = vset.pattern.permute.xlu0 0
        %4403 = vperm.xlu0 %4402, %v4253
        %v4404 = vpop.permute.xlu0 %4403
        %4407 = vset.pattern.permute.xlu0 0
        %4408 = vperm.xlu0 %4407, %v4254
        %v4409 = vpop.permute.xlu0 %4408
        %4412 = vset.pattern.permute.xlu0 0
        %4413 = vperm.xlu0 %4412, %v4255
        %v4414 = vpop.permute.xlu0 %4413
        %4417 = vset.pattern.permute.xlu0 0
        %4418 = vperm.xlu0 %4417, %v4256
        %v4419 = vpop.permute.xlu0 %4418
        %4422 = vset.pattern.permute.xlu0 0
        %4423 = vperm.xlu0 %4422, %v4257
        %v4424 = vpop.permute.xlu0 %4423
        %4427 = vset.pattern.permute.xlu0 0
        %4428 = vperm.xlu0 %4427, %v4258
        %v4429 = vpop.permute.xlu0 %4428
        %4432 = vset.pattern.permute.xlu0 0
        %4433 = vperm.xlu0 %4432, %v4259
        %v4434 = vpop.permute.xlu0 %4433
        %4437 = vset.pattern.permute.xlu0 0
        %4438 = vperm.xlu0 %4437, %v4260
        %v4439 = vpop.permute.xlu0 %4438
        %4442 = vset.pattern.permute.xlu0 0
        %4443 = vperm.xlu0 %4442, %v4261
        %v4444 = vpop.permute.xlu0 %4443
        %4447 = vset.pattern.permute.xlu0 0
        %4448 = vperm.xlu0 %4447, %v4262
        %v4449 = vpop.permute.xlu0 %4448
        %4452 = vset.pattern.permute.xlu0 0
        %4453 = vperm.xlu0 %4452, %v4263
        %v4454 = vpop.permute.xlu0 %4453
        %4457 = vset.pattern.permute.xlu0 0
        %4458 = vperm.xlu0 %4457, %v4264
        %v4459 = vpop.permute.xlu0 %4458
        %4462 = vset.pattern.permute.xlu0 0
        %4463 = vperm.xlu0 %4462, %v4265
        %v4464 = vpop.permute.xlu0 %4463
        %4467 = vset.pattern.permute.xlu0 0
        %4468 = vperm.xlu0 %4467, %v4266
        %v4469 = vpop.permute.xlu0 %4468
        %4472 = vset.pattern.permute.xlu0 0
        %4473 = vperm.xlu0 %4472, %v4267
        %v4474 = vpop.permute.xlu0 %4473
        %4477 = vset.pattern.permute.xlu0 0
        %4478 = vperm.xlu0 %4477, %v4268
        %v4479 = vpop.permute.xlu0 %4478
        %4482 = vset.pattern.permute.xlu0 0
        %4483 = vperm.xlu0 %4482, %v4269
        %v4484 = vpop.permute.xlu0 %4483
        %4487 = vset.pattern.permute.xlu0 0
        %4488 = vperm.xlu0 %4487, %v4270
        %v4489 = vpop.permute.xlu0 %4488
        %4492 = vset.pattern.permute.xlu0 0
        %4493 = vperm.xlu0 %4492, %v4271
        %v4494 = vpop.permute.xlu0 %4493
        %4497 = vset.pattern.permute.xlu0 0
        %4498 = vperm.xlu0 %4497, %v4272
        %v4499 = vpop.permute.xlu0 %4498
        %4502 = vset.pattern.permute.xlu0 0
        %4503 = vperm.xlu0 %4502, %v4273
        %v4504 = vpop.permute.xlu0 %4503
        %4507 = vset.pattern.permute.xlu0 0
        %4508 = vperm.xlu0 %4507, %v4274
        %v4509 = vpop.permute.xlu0 %4508
        %4512 = vset.pattern.permute.xlu0 0
        %4513 = vperm.xlu0 %4512, %v4275
        %v4514 = vpop.permute.xlu0 %4513
        %v4564 = vunpack.c.l.b16 %v4164
        %v4565 = vunpack.c.l.b16 %v4165
        %v4566 = vunpack.c.l.b16 %v4166
        %v4567 = vunpack.c.l.b16 %v4167
        %v4568 = vunpack.c.l.b16 %v4168
        %v4569 = vunpack.c.l.b16 %v4169
        %v4570 = vunpack.c.l.b16 %v4170
        %v4571 = vunpack.c.l.b16 %v4171
        %v4572 = vunpack.c.l.b16 %v4172
        %v4573 = vunpack.c.l.b16 %v4173
        %v4574 = vunpack.c.l.b16 %v4174
        %v4575 = vunpack.c.l.b16 %v4175
        %v4576 = vunpack.c.l.b16 %v4176
        %v4577 = vunpack.c.l.b16 %v4177
        %v4578 = vunpack.c.l.b16 %v4178
        %v4579 = vunpack.c.l.b16 %v4179
        %v4580 = vunpack.c.l.b16 %v4180
        %v4581 = vunpack.c.l.b16 %v4181
        %v4582 = vunpack.c.l.b16 %v4182
        %v4583 = vunpack.c.l.b16 %v4183
        %v4584 = vunpack.c.l.b16 %v4184
        %v4585 = vunpack.c.l.b16 %v4185
        %v4586 = vunpack.c.l.b16 %v4186
        %v4587 = vunpack.c.l.b16 %v4187
        %v4588 = vunpack.c.l.b16 %v4188
        %v4589 = vunpack.c.l.b16 %v4189
        %v4590 = vunpack.c.l.b16 %v4190
        %v4591 = vunpack.c.l.b16 %v4191
        %v4592 = vunpack.c.l.b16 %v4192
        %v4593 = vunpack.c.l.b16 %v4193
        %v4594 = vunpack.c.l.b16 %v4194
        %v4595 = vunpack.c.l.b16 %v4195
        %v4596 = vunpack.c.l.b16 %v4196
        %v4597 = vunpack.c.l.b16 %v4197
        %v4598 = vunpack.c.l.b16 %v4198
        %v4599 = vunpack.c.l.b16 %v4199
        %v4600 = vunpack.c.l.b16 %v4200
        %v4601 = vunpack.c.l.b16 %v4201
        %v4602 = vunpack.c.l.b16 %v4202
        %v4603 = vunpack.c.l.b16 %v4203
        %v4604 = vunpack.c.l.b16 %v4204
        %v4605 = vunpack.c.l.b16 %v4205
        %v4606 = vunpack.c.l.b16 %v4206
        %v4607 = vunpack.c.l.b16 %v4207
        %v4608 = vunpack.c.l.b16 %v4208
        %v4609 = vunpack.c.l.b16 %v4209
        %v4610 = vunpack.c.l.b16 %v4210
        %v4611 = vunpack.c.l.b16 %v4211
        %v4612 = vpack.c.b16 %v4565, %v4564
        %v4613 = vpack.c.b16 %v4567, %v4566
        %v4614 = vpack.c.b16 %v4569, %v4568
        %v4615 = vpack.c.b16 %v4571, %v4570
        %v4616 = vpack.c.b16 %v4573, %v4572
        %v4617 = vpack.c.b16 %v4575, %v4574
        %v4618 = vpack.c.b16 %v4577, %v4576
        %v4619 = vpack.c.b16 %v4579, %v4578
        %v4620 = vpack.c.b16 %v4581, %v4580
        %v4621 = vpack.c.b16 %v4583, %v4582
        %v4622 = vpack.c.b16 %v4585, %v4584
        %v4623 = vpack.c.b16 %v4587, %v4586
        %v4624 = vpack.c.b16 %v4589, %v4588
        %v4625 = vpack.c.b16 %v4591, %v4590
        %v4626 = vpack.c.b16 %v4593, %v4592
        %v4627 = vpack.c.b16 %v4595, %v4594
        %v4628 = vpack.c.b16 %v4597, %v4596
        %v4629 = vpack.c.b16 %v4599, %v4598
        %v4630 = vpack.c.b16 %v4601, %v4600
        %v4631 = vpack.c.b16 %v4603, %v4602
        %v4632 = vpack.c.b16 %v4605, %v4604
        %v4633 = vpack.c.b16 %v4607, %v4606
        %v4634 = vpack.c.b16 %v4609, %v4608
        %v4635 = vpack.c.b16 %v4611, %v4610
        %v4676 = vunpack.c.l.b16 %v4212
        %v4677 = vunpack.c.h.b16 %v4212
        %v4678 = vunpack.c.l.b16 %v4213
        %v4679 = vunpack.c.h.b16 %v4213
        %v4680 = vunpack.c.l.b16 %v4214
        %v4681 = vunpack.c.h.b16 %v4214
        %v4682 = vunpack.c.l.b16 %v4215
        %v4683 = vunpack.c.h.b16 %v4215
        %v4684 = vunpack.c.l.b16 %v4216
        %v4685 = vunpack.c.h.b16 %v4216
        %v4686 = vunpack.c.l.b16 %v4217
        %v4687 = vunpack.c.h.b16 %v4217
        %v4688 = vunpack.c.l.b16 %v4218
        %v4689 = vunpack.c.h.b16 %v4218
        %v4690 = vunpack.c.l.b16 %v4219
        %v4691 = vunpack.c.h.b16 %v4219
        %v4692 = vunpack.c.l.b16 %v4220
        %v4693 = vunpack.c.h.b16 %v4220
        %v4694 = vunpack.c.l.b16 %v4221
        %v4695 = vunpack.c.h.b16 %v4221
        %v4696 = vunpack.c.l.b16 %v4222
        %v4697 = vunpack.c.h.b16 %v4222
        %v4698 = vunpack.c.l.b16 %v4223
        %v4699 = vunpack.c.h.b16 %v4223
        %v4700 = vunpack.c.l.b16 %v4224
        %v4701 = vunpack.c.h.b16 %v4224
        %v4702 = vunpack.c.l.b16 %v4225
        %v4703 = vunpack.c.h.b16 %v4225
        %v4704 = vunpack.c.l.b16 %v4226
        %v4705 = vunpack.c.h.b16 %v4226
        %v4706 = vunpack.c.l.b16 %v4227
        %v4707 = vunpack.c.h.b16 %v4227
        %v4708 = vpack.c.b16 %v4678, %v4676
        %v4709 = vpack.c.b16 %v4679, %v4677
        %v4710 = vpack.c.b16 %v4682, %v4680
        %v4711 = vpack.c.b16 %v4683, %v4681
        %v4712 = vpack.c.b16 %v4686, %v4684
        %v4713 = vpack.c.b16 %v4687, %v4685
        %v4714 = vpack.c.b16 %v4690, %v4688
        %v4715 = vpack.c.b16 %v4691, %v4689
        %v4716 = vpack.c.b16 %v4694, %v4692
        %v4717 = vpack.c.b16 %v4695, %v4693
        %v4718 = vpack.c.b16 %v4698, %v4696
        %v4719 = vpack.c.b16 %v4699, %v4697
        %v4720 = vpack.c.b16 %v4702, %v4700
        %v4721 = vpack.c.b16 %v4703, %v4701
        %v4722 = vpack.c.b16 %v4706, %v4704
        %v4723 = vpack.c.b16 %v4707, %v4705
        %4740 = vmatpush.bf16.msra.mxu0 %v4722
        %4741 = vmatpush.bf16.msra.mxu0 %v4720
        %4742 = vmatpush.bf16.msra.mxu0 %v4718
        %4743 = vmatpush.bf16.msra.mxu0 %v4716
        %4744 = vmatpush.bf16.msra.mxu0 %v4714
        %4745 = vmatpush.bf16.msra.mxu0 %v4712
        %4746 = vmatpush.bf16.msra.mxu0 %v4710
        %4747 = vmatpush.bf16.msra.mxu0 %v4708
        %4748 = vmatmul.bf16.gmra.mxu0 %v4612
        %v4749 = vpop.f32.mrf.mxu0
        %v4750 = vadd.f32 %v4279, %v4749
        %v4751 = vpop.f32.mrf.mxu0
        %v4752 = vadd.f32 %v4284, %v4751
        %4753 = vmatmul.bf16.gmra.mxu0 %v4613
        %v4754 = vpop.f32.mrf.mxu0
        %v4755 = vadd.f32 %v4289, %v4754
        %v4756 = vpop.f32.mrf.mxu0
        %v4757 = vadd.f32 %v4294, %v4756
        %4758 = vmatmul.bf16.gmra.mxu0 %v4614
        %v4759 = vpop.f32.mrf.mxu0
        %v4760 = vadd.f32 %v4299, %v4759
        %v4761 = vpop.f32.mrf.mxu0
        %v4762 = vadd.f32 %v4304, %v4761
        %4763 = vmatmul.bf16.gmra.mxu0 %v4615
        %v4764 = vpop.f32.mrf.mxu0
        %v4765 = vadd.f32 %v4309, %v4764
        %v4766 = vpop.f32.mrf.mxu0
        %v4767 = vadd.f32 %v4314, %v4766
        %4768 = vmatmul.bf16.gmra.mxu0 %v4616
        %v4769 = vpop.f32.mrf.mxu0
        %v4770 = vadd.f32 %v4319, %v4769
        %v4771 = vpop.f32.mrf.mxu0
        %v4772 = vadd.f32 %v4324, %v4771
        %4773 = vmatmul.bf16.gmra.mxu0 %v4617
        %v4774 = vpop.f32.mrf.mxu0
        %v4775 = vadd.f32 %v4329, %v4774
        %v4776 = vpop.f32.mrf.mxu0
        %v4777 = vadd.f32 %v4334, %v4776
        %4778 = vmatmul.bf16.gmra.mxu0 %v4618
        %v4779 = vpop.f32.mrf.mxu0
        %v4780 = vadd.f32 %v4339, %v4779
        %v4781 = vpop.f32.mrf.mxu0
        %v4782 = vadd.f32 %v4344, %v4781
        %4783 = vmatmul.bf16.gmra.mxu0 %v4619
        %v4784 = vpop.f32.mrf.mxu0
        %v4785 = vadd.f32 %v4349, %v4784
        %v4786 = vpop.f32.mrf.mxu0
        %v4787 = vadd.f32 %v4354, %v4786
        %4788 = vmatmul.bf16.gmra.mxu0 %v4620
        %v4789 = vpop.f32.mrf.mxu0
        %v4790 = vadd.f32 %v4359, %v4789
        %v4791 = vpop.f32.mrf.mxu0
        %v4792 = vadd.f32 %v4364, %v4791
        %4793 = vmatmul.bf16.gmra.mxu0 %v4621
        %v4794 = vpop.f32.mrf.mxu0
        %v4795 = vadd.f32 %v4369, %v4794
        %v4796 = vpop.f32.mrf.mxu0
        %v4797 = vadd.f32 %v4374, %v4796
        %4798 = vmatmul.bf16.gmra.mxu0 %v4622
        %v4799 = vpop.f32.mrf.mxu0
        %v4800 = vadd.f32 %v4379, %v4799
        %v4801 = vpop.f32.mrf.mxu0
        %v4802 = vadd.f32 %v4384, %v4801
        %4803 = vmatmul.bf16.gmra.mxu0 %v4623
        %v4804 = vpop.f32.mrf.mxu0
        %v4805 = vadd.f32 %v4389, %v4804
        %v4806 = vpop.f32.mrf.mxu0
        %v4807 = vadd.f32 %v4394, %v4806
        %4808 = vmatmul.bf16.gmra.mxu0 %v4624
        %v4809 = vpop.f32.mrf.mxu0
        %v4810 = vadd.f32 %v4399, %v4809
        %v4811 = vpop.f32.mrf.mxu0
        %v4812 = vadd.f32 %v4404, %v4811
        %4813 = vmatmul.bf16.gmra.mxu0 %v4625
        %v4814 = vpop.f32.mrf.mxu0
        %v4815 = vadd.f32 %v4409, %v4814
        %v4816 = vpop.f32.mrf.mxu0
        %v4817 = vadd.f32 %v4414, %v4816
        %4818 = vmatmul.bf16.gmra.mxu0 %v4626
        %v4819 = vpop.f32.mrf.mxu0
        %v4820 = vadd.f32 %v4419, %v4819
        %v4821 = vpop.f32.mrf.mxu0
        %v4822 = vadd.f32 %v4424, %v4821
        %4823 = vmatmul.bf16.gmra.mxu0 %v4627
        %v4824 = vpop.f32.mrf.mxu0
        %v4825 = vadd.f32 %v4429, %v4824
        %v4826 = vpop.f32.mrf.mxu0
        %v4827 = vadd.f32 %v4434, %v4826
        %4828 = vmatmul.bf16.gmra.mxu0 %v4628
        %v4829 = vpop.f32.mrf.mxu0
        %v4830 = vadd.f32 %v4439, %v4829
        %v4831 = vpop.f32.mrf.mxu0
        %v4832 = vadd.f32 %v4444, %v4831
        %4833 = vmatmul.bf16.gmra.mxu0 %v4629
        %v4834 = vpop.f32.mrf.mxu0
        %v4835 = vadd.f32 %v4449, %v4834
        %v4836 = vpop.f32.mrf.mxu0
        %v4837 = vadd.f32 %v4454, %v4836
        %4838 = vmatmul.bf16.gmra.mxu0 %v4630
        %v4839 = vpop.f32.mrf.mxu0
        %v4840 = vadd.f32 %v4459, %v4839
        %v4841 = vpop.f32.mrf.mxu0
        %v4842 = vadd.f32 %v4464, %v4841
        %4843 = vmatmul.bf16.gmra.mxu0 %v4631
        %v4844 = vpop.f32.mrf.mxu0
        %v4845 = vadd.f32 %v4469, %v4844
        %v4846 = vpop.f32.mrf.mxu0
        %v4847 = vadd.f32 %v4474, %v4846
        %4848 = vmatmul.bf16.gmra.mxu0 %v4632
        %v4849 = vpop.f32.mrf.mxu0
        %v4850 = vadd.f32 %v4479, %v4849
        %v4851 = vpop.f32.mrf.mxu0
        %v4852 = vadd.f32 %v4484, %v4851
        %4853 = vmatmul.bf16.gmra.mxu0 %v4633
        %v4854 = vpop.f32.mrf.mxu0
        %v4855 = vadd.f32 %v4489, %v4854
        %v4856 = vpop.f32.mrf.mxu0
        %v4857 = vadd.f32 %v4494, %v4856
        %4858 = vmatmul.bf16.gmra.mxu0 %v4634
        %v4859 = vpop.f32.mrf.mxu0
        %v4860 = vadd.f32 %v4499, %v4859
        %v4861 = vpop.f32.mrf.mxu0
        %v4862 = vadd.f32 %v4504, %v4861
        %4863 = vmatmul.bf16.gmra.mxu0 %v4635
        %v4864 = vpop.f32.mrf.mxu0
        %v4865 = vadd.f32 %v4509, %v4864
        %v4866 = vpop.f32.mrf.mxu0
        %v4867 = vadd.f32 %v4514, %v4866
        %4868 = vdwg.mxu0
        %4869 = vmatpush.bf16.msra.mxu0 %v4723
        %4870 = vmatpush.bf16.msra.mxu0 %v4721
        %4871 = vmatpush.bf16.msra.mxu0 %v4719
        %4872 = vmatpush.bf16.msra.mxu0 %v4717
        %4873 = vmatpush.bf16.msra.mxu0 %v4715
        %4874 = vmatpush.bf16.msra.mxu0 %v4713
        %4875 = vmatpush.bf16.msra.mxu0 %v4711
        %4876 = vmatpush.bf16.msra.mxu0 %v4709
        %4877 = vmatmul.bf16.gmra.mxu0 %v4612
        %v4878 = vpop.f32.mrf.mxu0
        %v4879 = vadd.f32 %v4279, %v4878
        %v4880 = vpop.f32.mrf.mxu0
        %v4881 = vadd.f32 %v4284, %v4880
        %4882 = vmatmul.bf16.gmra.mxu0 %v4613
        %v4883 = vpop.f32.mrf.mxu0
        %v4884 = vadd.f32 %v4289, %v4883
        %v4885 = vpop.f32.mrf.mxu0
        %v4886 = vadd.f32 %v4294, %v4885
        %4887 = vmatmul.bf16.gmra.mxu0 %v4614
        %v4888 = vpop.f32.mrf.mxu0
        %v4889 = vadd.f32 %v4299, %v4888
        %v4890 = vpop.f32.mrf.mxu0
        %v4891 = vadd.f32 %v4304, %v4890
        %4892 = vmatmul.bf16.gmra.mxu0 %v4615
        %v4893 = vpop.f32.mrf.mxu0
        %v4894 = vadd.f32 %v4309, %v4893
        %v4895 = vpop.f32.mrf.mxu0
        %v4896 = vadd.f32 %v4314, %v4895
        %4897 = vmatmul.bf16.gmra.mxu0 %v4616
        %v4898 = vpop.f32.mrf.mxu0
        %v4899 = vadd.f32 %v4319, %v4898
        %v4900 = vpop.f32.mrf.mxu0
        %v4901 = vadd.f32 %v4324, %v4900
        %4902 = vmatmul.bf16.gmra.mxu0 %v4617
        %v4903 = vpop.f32.mrf.mxu0
        %v4904 = vadd.f32 %v4329, %v4903
        %v4905 = vpop.f32.mrf.mxu0
        %v4906 = vadd.f32 %v4334, %v4905
        %4907 = vmatmul.bf16.gmra.mxu0 %v4618
        %v4908 = vpop.f32.mrf.mxu0
        %v4909 = vadd.f32 %v4339, %v4908
        %v4910 = vpop.f32.mrf.mxu0
        %v4911 = vadd.f32 %v4344, %v4910
        %4912 = vmatmul.bf16.gmra.mxu0 %v4619
        %v4913 = vpop.f32.mrf.mxu0
        %v4914 = vadd.f32 %v4349, %v4913
        %v4915 = vpop.f32.mrf.mxu0
        %v4916 = vadd.f32 %v4354, %v4915
        %4917 = vmatmul.bf16.gmra.mxu0 %v4620
        %v4918 = vpop.f32.mrf.mxu0
        %v4919 = vadd.f32 %v4359, %v4918
        %v4920 = vpop.f32.mrf.mxu0
        %v4921 = vadd.f32 %v4364, %v4920
        %4922 = vmatmul.bf16.gmra.mxu0 %v4621
        %v4923 = vpop.f32.mrf.mxu0
        %v4924 = vadd.f32 %v4369, %v4923
        %v4925 = vpop.f32.mrf.mxu0
        %v4926 = vadd.f32 %v4374, %v4925
        %4927 = vmatmul.bf16.gmra.mxu0 %v4622
        %v4928 = vpop.f32.mrf.mxu0
        %v4929 = vadd.f32 %v4379, %v4928
        %v4930 = vpop.f32.mrf.mxu0
        %v4931 = vadd.f32 %v4384, %v4930
        %4932 = vmatmul.bf16.gmra.mxu0 %v4623
        %v4933 = vpop.f32.mrf.mxu0
        %v4934 = vadd.f32 %v4389, %v4933
        %v4935 = vpop.f32.mrf.mxu0
        %v4936 = vadd.f32 %v4394, %v4935
        %4937 = vmatmul.bf16.gmra.mxu0 %v4624
        %v4938 = vpop.f32.mrf.mxu0
        %v4939 = vadd.f32 %v4399, %v4938
        %v4940 = vpop.f32.mrf.mxu0
        %v4941 = vadd.f32 %v4404, %v4940
        %4942 = vmatmul.bf16.gmra.mxu0 %v4625
        %v4943 = vpop.f32.mrf.mxu0
        %v4944 = vadd.f32 %v4409, %v4943
        %v4945 = vpop.f32.mrf.mxu0
        %v4946 = vadd.f32 %v4414, %v4945
        %4947 = vmatmul.bf16.gmra.mxu0 %v4626
        %v4948 = vpop.f32.mrf.mxu0
        %v4949 = vadd.f32 %v4419, %v4948
        %v4950 = vpop.f32.mrf.mxu0
        %v4951 = vadd.f32 %v4424, %v4950
        %4952 = vmatmul.bf16.gmra.mxu0 %v4627
        %v4953 = vpop.f32.mrf.mxu0
        %v4954 = vadd.f32 %v4429, %v4953
        %v4955 = vpop.f32.mrf.mxu0
        %v4956 = vadd.f32 %v4434, %v4955
        %4957 = vmatmul.bf16.gmra.mxu0 %v4628
        %v4958 = vpop.f32.mrf.mxu0
        %v4959 = vadd.f32 %v4439, %v4958
        %v4960 = vpop.f32.mrf.mxu0
        %v4961 = vadd.f32 %v4444, %v4960
        %4962 = vmatmul.bf16.gmra.mxu0 %v4629
        %v4963 = vpop.f32.mrf.mxu0
        %v4964 = vadd.f32 %v4449, %v4963
        %v4965 = vpop.f32.mrf.mxu0
        %v4966 = vadd.f32 %v4454, %v4965
        %4967 = vmatmul.bf16.gmra.mxu0 %v4630
        %v4968 = vpop.f32.mrf.mxu0
        %v4969 = vadd.f32 %v4459, %v4968
        %v4970 = vpop.f32.mrf.mxu0
        %v4971 = vadd.f32 %v4464, %v4970
        %4972 = vmatmul.bf16.gmra.mxu0 %v4631
        %v4973 = vpop.f32.mrf.mxu0
        %v4974 = vadd.f32 %v4469, %v4973
        %v4975 = vpop.f32.mrf.mxu0
        %v4976 = vadd.f32 %v4474, %v4975
        %4977 = vmatmul.bf16.gmra.mxu0 %v4632
        %v4978 = vpop.f32.mrf.mxu0
        %v4979 = vadd.f32 %v4479, %v4978
        %v4980 = vpop.f32.mrf.mxu0
        %v4981 = vadd.f32 %v4484, %v4980
        %4982 = vmatmul.bf16.gmra.mxu0 %v4633
        %v4983 = vpop.f32.mrf.mxu0
        %v4984 = vadd.f32 %v4489, %v4983
        %v4985 = vpop.f32.mrf.mxu0
        %v4986 = vadd.f32 %v4494, %v4985
        %4987 = vmatmul.bf16.gmra.mxu0 %v4634
        %v4988 = vpop.f32.mrf.mxu0
        %v4989 = vadd.f32 %v4499, %v4988
        %v4990 = vpop.f32.mrf.mxu0
        %v4991 = vadd.f32 %v4504, %v4990
        %4992 = vmatmul.bf16.gmra.mxu0 %v4635
        %v4993 = vpop.f32.mrf.mxu0
        %v4994 = vadd.f32 %v4509, %v4993
        %v4995 = vpop.f32.mrf.mxu0
        %v4996 = vadd.f32 %v4514, %v4995
        %4997 = vdwg.mxu0
        %v4998 = vmax.f32 %v4750, 0.0
        %v4999 = vmax.f32 %v4879, 0.0
        %v5000 = vmax.f32 %v4752, 0.0
        %v5001 = vmax.f32 %v4881, 0.0
        %v5002 = vmax.f32 %v4755, 0.0
        %v5003 = vmax.f32 %v4884, 0.0
        %v5004 = vmax.f32 %v4757, 0.0
        %v5005 = vmax.f32 %v4886, 0.0
        %v5006 = vmax.f32 %v4760, 0.0
        %v5007 = vmax.f32 %v4889, 0.0
        %v5008 = vmax.f32 %v4762, 0.0
        %v5009 = vmax.f32 %v4891, 0.0
        %v5010 = vmax.f32 %v4765, 0.0
        %v5011 = vmax.f32 %v4894, 0.0
        %v5012 = vmax.f32 %v4767, 0.0
        %v5013 = vmax.f32 %v4896, 0.0
        %v5014 = vmax.f32 %v4770, 0.0
        %v5015 = vmax.f32 %v4899, 0.0
        %v5016 = vmax.f32 %v4772, 0.0
        %v5017 = vmax.f32 %v4901, 0.0
        %v5018 = vmax.f32 %v4775, 0.0
        %v5019 = vmax.f32 %v4904, 0.0
        %v5020 = vmax.f32 %v4777, 0.0
        %v5021 = vmax.f32 %v4906, 0.0
        %v5022 = vmax.f32 %v4780, 0.0
        %v5023 = vmax.f32 %v4909, 0.0
        %v5024 = vmax.f32 %v4782, 0.0
        %v5025 = vmax.f32 %v4911, 0.0
        %v5026 = vmax.f32 %v4785, 0.0
        %v5027 = vmax.f32 %v4914, 0.0
        %v5028 = vmax.f32 %v4787, 0.0
        %v5029 = vmax.f32 %v4916, 0.0
        %v5030 = vmax.f32 %v4790, 0.0
        %v5031 = vmax.f32 %v4919, 0.0
        %v5032 = vmax.f32 %v4792, 0.0
        %v5033 = vmax.f32 %v4921, 0.0
        %v5034 = vmax.f32 %v4795, 0.0
        %v5035 = vmax.f32 %v4924, 0.0
        %v5036 = vmax.f32 %v4797, 0.0
        %v5037 = vmax.f32 %v4926, 0.0
        %v5038 = vmax.f32 %v4800, 0.0
        %v5039 = vmax.f32 %v4929, 0.0
        %v5040 = vmax.f32 %v4802, 0.0
        %v5041 = vmax.f32 %v4931, 0.0
        %v5042 = vmax.f32 %v4805, 0.0
        %v5043 = vmax.f32 %v4934, 0.0
        %v5044 = vmax.f32 %v4807, 0.0
        %v5045 = vmax.f32 %v4936, 0.0
        %v5046 = vmax.f32 %v4810, 0.0
        %v5047 = vmax.f32 %v4939, 0.0
        %v5048 = vmax.f32 %v4812, 0.0
        %v5049 = vmax.f32 %v4941, 0.0
        %v5050 = vmax.f32 %v4815, 0.0
        %v5051 = vmax.f32 %v4944, 0.0
        %v5052 = vmax.f32 %v4817, 0.0
        %v5053 = vmax.f32 %v4946, 0.0
        %v5054 = vmax.f32 %v4820, 0.0
        %v5055 = vmax.f32 %v4949, 0.0
        %v5056 = vmax.f32 %v4822, 0.0
        %v5057 = vmax.f32 %v4951, 0.0
        %v5058 = vmax.f32 %v4825, 0.0
        %v5059 = vmax.f32 %v4954, 0.0
        %v5060 = vmax.f32 %v4827, 0.0
        %v5061 = vmax.f32 %v4956, 0.0
        %v5062 = vmax.f32 %v4830, 0.0
        %v5063 = vmax.f32 %v4959, 0.0
        %v5064 = vmax.f32 %v4832, 0.0
        %v5065 = vmax.f32 %v4961, 0.0
        %v5066 = vmax.f32 %v4835, 0.0
        %v5067 = vmax.f32 %v4964, 0.0
        %v5068 = vmax.f32 %v4837, 0.0
        %v5069 = vmax.f32 %v4966, 0.0
        %v5070 = vmax.f32 %v4840, 0.0
        %v5071 = vmax.f32 %v4969, 0.0
        %v5072 = vmax.f32 %v4842, 0.0
        %v5073 = vmax.f32 %v4971, 0.0
        %v5074 = vmax.f32 %v4845, 0.0
        %v5075 = vmax.f32 %v4974, 0.0
        %v5076 = vmax.f32 %v4847, 0.0
        %v5077 = vmax.f32 %v4976, 0.0
        %v5078 = vmax.f32 %v4850, 0.0
        %v5079 = vmax.f32 %v4979, 0.0
        %v5080 = vmax.f32 %v4852, 0.0
        %v5081 = vmax.f32 %v4981, 0.0
        %v5082 = vmax.f32 %v4855, 0.0
        %v5083 = vmax.f32 %v4984, 0.0
        %v5084 = vmax.f32 %v4857, 0.0
        %v5085 = vmax.f32 %v4986, 0.0
        %v5086 = vmax.f32 %v4860, 0.0
        %v5087 = vmax.f32 %v4989, 0.0
        %v5088 = vmax.f32 %v4862, 0.0
        %v5089 = vmax.f32 %v4991, 0.0
        %v5090 = vmax.f32 %v4865, 0.0
        %v5091 = vmax.f32 %v4994, 0.0
        %v5092 = vmax.f32 %v4867, 0.0
        %v5093 = vmax.f32 %v4996, 0.0
        %v5094 = vmul.f32 %v4998, 0.5
        %v5095 = vmul.f32 %v4999, 0.5
        %v5096 = vmul.f32 %v5000, 0.5
        %v5097 = vmul.f32 %v5001, 0.5
        %v5098 = vmul.f32 %v5002, 0.5
        %v5099 = vmul.f32 %v5003, 0.5
        %v5100 = vmul.f32 %v5004, 0.5
        %v5101 = vmul.f32 %v5005, 0.5
        %v5102 = vmul.f32 %v5006, 0.5
        %v5103 = vmul.f32 %v5007, 0.5
        %v5104 = vmul.f32 %v5008, 0.5
        %v5105 = vmul.f32 %v5009, 0.5
        %v5106 = vmul.f32 %v5010, 0.5
        %v5107 = vmul.f32 %v5011, 0.5
        %v5108 = vmul.f32 %v5012, 0.5
        %v5109 = vmul.f32 %v5013, 0.5
        %v5110 = vmul.f32 %v5014, 0.5
        %v5111 = vmul.f32 %v5015, 0.5
        %v5112 = vmul.f32 %v5016, 0.5
        %v5113 = vmul.f32 %v5017, 0.5
        %v5114 = vmul.f32 %v5018, 0.5
        %v5115 = vmul.f32 %v5019, 0.5
        %v5116 = vmul.f32 %v5020, 0.5
        %v5117 = vmul.f32 %v5021, 0.5
        %v5118 = vmul.f32 %v5022, 0.5
        %v5119 = vmul.f32 %v5023, 0.5
        %v5120 = vmul.f32 %v5024, 0.5
        %v5121 = vmul.f32 %v5025, 0.5
        %v5122 = vmul.f32 %v5026, 0.5
        %v5123 = vmul.f32 %v5027, 0.5
        %v5124 = vmul.f32 %v5028, 0.5
        %v5125 = vmul.f32 %v5029, 0.5
        %v5126 = vmul.f32 %v5030, 0.5
        %v5127 = vmul.f32 %v5031, 0.5
        %v5128 = vmul.f32 %v5032, 0.5
        %v5129 = vmul.f32 %v5033, 0.5
        %v5130 = vmul.f32 %v5034, 0.5
        %v5131 = vmul.f32 %v5035, 0.5
        %v5132 = vmul.f32 %v5036, 0.5
        %v5133 = vmul.f32 %v5037, 0.5
        %v5134 = vmul.f32 %v5038, 0.5
        %v5135 = vmul.f32 %v5039, 0.5
        %v5136 = vmul.f32 %v5040, 0.5
        %v5137 = vmul.f32 %v5041, 0.5
        %v5138 = vmul.f32 %v5042, 0.5
        %v5139 = vmul.f32 %v5043, 0.5
        %v5140 = vmul.f32 %v5044, 0.5
        %v5141 = vmul.f32 %v5045, 0.5
        %v5142 = vmul.f32 %v5046, 0.5
        %v5143 = vmul.f32 %v5047, 0.5
        %v5144 = vmul.f32 %v5048, 0.5
        %v5145 = vmul.f32 %v5049, 0.5
        %v5146 = vmul.f32 %v5050, 0.5
        %v5147 = vmul.f32 %v5051, 0.5
        %v5148 = vmul.f32 %v5052, 0.5
        %v5149 = vmul.f32 %v5053, 0.5
        %v5150 = vmul.f32 %v5054, 0.5
        %v5151 = vmul.f32 %v5055, 0.5
        %v5152 = vmul.f32 %v5056, 0.5
        %v5153 = vmul.f32 %v5057, 0.5
        %v5154 = vmul.f32 %v5058, 0.5
        %v5155 = vmul.f32 %v5059, 0.5
        %v5156 = vmul.f32 %v5060, 0.5
        %v5157 = vmul.f32 %v5061, 0.5
        %v5158 = vmul.f32 %v5062, 0.5
        %v5159 = vmul.f32 %v5063, 0.5
        %v5160 = vmul.f32 %v5064, 0.5
        %v5161 = vmul.f32 %v5065, 0.5
        %v5162 = vmul.f32 %v5066, 0.5
        %v5163 = vmul.f32 %v5067, 0.5
        %v5164 = vmul.f32 %v5068, 0.5
        %v5165 = vmul.f32 %v5069, 0.5
        %v5166 = vmul.f32 %v5070, 0.5
        %v5167 = vmul.f32 %v5071, 0.5
        %v5168 = vmul.f32 %v5072, 0.5
        %v5169 = vmul.f32 %v5073, 0.5
        %v5170 = vmul.f32 %v5074, 0.5
        %v5171 = vmul.f32 %v5075, 0.5
        %v5172 = vmul.f32 %v5076, 0.5
        %v5173 = vmul.f32 %v5077, 0.5
        %v5174 = vmul.f32 %v5078, 0.5
        %v5175 = vmul.f32 %v5079, 0.5
        %v5176 = vmul.f32 %v5080, 0.5
        %v5177 = vmul.f32 %v5081, 0.5
        %v5178 = vmul.f32 %v5082, 0.5
        %v5179 = vmul.f32 %v5083, 0.5
        %v5180 = vmul.f32 %v5084, 0.5
        %v5181 = vmul.f32 %v5085, 0.5
        %v5182 = vmul.f32 %v5086, 0.5
        %v5183 = vmul.f32 %v5087, 0.5
        %v5184 = vmul.f32 %v5088, 0.5
        %v5185 = vmul.f32 %v5089, 0.5
        %v5186 = vmul.f32 %v5090, 0.5
        %v5187 = vmul.f32 %v5091, 0.5
        %v5188 = vmul.f32 %v5092, 0.5
        %v5189 = vmul.f32 %v5093, 0.5
        %v5190 = vadd.f32 %v630, %v5094
        %v5191 = vadd.f32 %v631, %v5095
        %v5192 = vadd.f32 %v632, %v5096
        %v5193 = vadd.f32 %v633, %v5097
        %v5194 = vadd.f32 %v634, %v5098
        %v5195 = vadd.f32 %v635, %v5099
        %v5196 = vadd.f32 %v636, %v5100
        %v5197 = vadd.f32 %v637, %v5101
        %v5198 = vadd.f32 %v638, %v5102
        %v5199 = vadd.f32 %v639, %v5103
        %v5200 = vadd.f32 %v640, %v5104
        %v5201 = vadd.f32 %v641, %v5105
        %v5202 = vadd.f32 %v642, %v5106
        %v5203 = vadd.f32 %v643, %v5107
        %v5204 = vadd.f32 %v644, %v5108
        %v5205 = vadd.f32 %v645, %v5109
        %v5206 = vadd.f32 %v646, %v5110
        %v5207 = vadd.f32 %v647, %v5111
        %v5208 = vadd.f32 %v648, %v5112
        %v5209 = vadd.f32 %v649, %v5113
        %v5210 = vadd.f32 %v650, %v5114
        %v5211 = vadd.f32 %v651, %v5115
        %v5212 = vadd.f32 %v652, %v5116
        %v5213 = vadd.f32 %v653, %v5117
        %v5214 = vadd.f32 %v654, %v5118
        %v5215 = vadd.f32 %v655, %v5119
        %v5216 = vadd.f32 %v656, %v5120
        %v5217 = vadd.f32 %v657, %v5121
        %v5218 = vadd.f32 %v658, %v5122
        %v5219 = vadd.f32 %v659, %v5123
        %v5220 = vadd.f32 %v660, %v5124
        %v5221 = vadd.f32 %v661, %v5125
        %v5222 = vadd.f32 %v662, %v5126
        %v5223 = vadd.f32 %v663, %v5127
        %v5224 = vadd.f32 %v664, %v5128
        %v5225 = vadd.f32 %v665, %v5129
        %v5226 = vadd.f32 %v666, %v5130
        %v5227 = vadd.f32 %v667, %v5131
        %v5228 = vadd.f32 %v668, %v5132
        %v5229 = vadd.f32 %v669, %v5133
        %v5230 = vadd.f32 %v670, %v5134
        %v5231 = vadd.f32 %v671, %v5135
        %v5232 = vadd.f32 %v672, %v5136
        %v5233 = vadd.f32 %v673, %v5137
        %v5234 = vadd.f32 %v674, %v5138
        %v5235 = vadd.f32 %v675, %v5139
        %v5236 = vadd.f32 %v676, %v5140
        %v5237 = vadd.f32 %v677, %v5141
        %v5238 = vadd.f32 %v678, %v5142
        %v5239 = vadd.f32 %v679, %v5143
        %v5240 = vadd.f32 %v680, %v5144
        %v5241 = vadd.f32 %v681, %v5145
        %v5242 = vadd.f32 %v682, %v5146
        %v5243 = vadd.f32 %v683, %v5147
        %v5244 = vadd.f32 %v684, %v5148
        %v5245 = vadd.f32 %v685, %v5149
        %v5246 = vadd.f32 %v686, %v5150
        %v5247 = vadd.f32 %v687, %v5151
        %v5248 = vadd.f32 %v688, %v5152
        %v5249 = vadd.f32 %v689, %v5153
        %v5250 = vadd.f32 %v690, %v5154
        %v5251 = vadd.f32 %v691, %v5155
        %v5252 = vadd.f32 %v692, %v5156
        %v5253 = vadd.f32 %v693, %v5157
        %v5254 = vadd.f32 %v694, %v5158
        %v5255 = vadd.f32 %v695, %v5159
        %v5256 = vadd.f32 %v696, %v5160
        %v5257 = vadd.f32 %v697, %v5161
        %v5258 = vadd.f32 %v698, %v5162
        %v5259 = vadd.f32 %v699, %v5163
        %v5260 = vadd.f32 %v700, %v5164
        %v5261 = vadd.f32 %v701, %v5165
        %v5262 = vadd.f32 %v702, %v5166
        %v5263 = vadd.f32 %v703, %v5167
        %v5264 = vadd.f32 %v704, %v5168
        %v5265 = vadd.f32 %v705, %v5169
        %v5266 = vadd.f32 %v706, %v5170
        %v5267 = vadd.f32 %v707, %v5171
        %v5268 = vadd.f32 %v708, %v5172
        %v5269 = vadd.f32 %v709, %v5173
        %v5270 = vadd.f32 %v710, %v5174
        %v5271 = vadd.f32 %v711, %v5175
        %v5272 = vadd.f32 %v712, %v5176
        %v5273 = vadd.f32 %v713, %v5177
        %v5274 = vadd.f32 %v714, %v5178
        %v5275 = vadd.f32 %v715, %v5179
        %v5276 = vadd.f32 %v716, %v5180
        %v5277 = vadd.f32 %v717, %v5181
        %v5278 = vadd.f32 %v718, %v5182
        %v5279 = vadd.f32 %v719, %v5183
        %v5280 = vadd.f32 %v720, %v5184
        %v5281 = vadd.f32 %v721, %v5185
        %v5282 = vadd.f32 %v722, %v5186
        %v5283 = vadd.f32 %v723, %v5187
        %v5284 = vadd.f32 %v724, %v5188
        %v5285 = vadd.f32 %v725, %v5189
        %5286 = vst [vmem:[%s532] sm:$0xff] %v5190
        %5287 = vst [vmem:[%s532 + $0x8] sm:$0xff] %v5191
        %5288 = vst [vmem:[%s532 + $0x10] sm:$0xff] %v5192
        %5289 = vst [vmem:[%s532 + $0x18] sm:$0xff] %v5193
        %5290 = vst [vmem:[%s532 + $0x20] sm:$0xff] %v5194
        %5291 = vst [vmem:[%s532 + $0x28] sm:$0xff] %v5195
        %5292 = vst [vmem:[%s532 + $0x30] sm:$0xff] %v5196
        %5293 = vst [vmem:[%s532 + $0x38] sm:$0xff] %v5197
        %5294 = vst [vmem:[%s532 + $0x40] sm:$0xff] %v5198
        %5295 = vst [vmem:[%s532 + $0x48] sm:$0xff] %v5199
        %5296 = vst [vmem:[%s532 + $0x50] sm:$0xff] %v5200
        %5297 = vst [vmem:[%s532 + $0x58] sm:$0xff] %v5201
        %5298 = vst [vmem:[%s532 + $0x60] sm:$0xff] %v5202
        %5299 = vst [vmem:[%s532 + $0x68] sm:$0xff] %v5203
        %5300 = vst [vmem:[%s532 + $0x70] sm:$0xff] %v5204
        %5301 = vst [vmem:[%s532 + $0x78] sm:$0xff] %v5205
        %5302 = vst [vmem:[%s532 + $0x80] sm:$0xff] %v5206
        %5303 = vst [vmem:[%s532 + $0x88] sm:$0xff] %v5207
        %5304 = vst [vmem:[%s532 + $0x90] sm:$0xff] %v5208
        %5305 = vst [vmem:[%s532 + $0x98] sm:$0xff] %v5209
        %5306 = vst [vmem:[%s532 + $0xa0] sm:$0xff] %v5210
        %5307 = vst [vmem:[%s532 + $0xa8] sm:$0xff] %v5211
        %5308 = vst [vmem:[%s532 + $0xb0] sm:$0xff] %v5212
        %5309 = vst [vmem:[%s532 + $0xb8] sm:$0xff] %v5213
        %5310 = vst [vmem:[%s532 + $0xc0] sm:$0xff] %v5214
        %5311 = vst [vmem:[%s532 + $0xc8] sm:$0xff] %v5215
        %5312 = vst [vmem:[%s532 + $0xd0] sm:$0xff] %v5216
        %5313 = vst [vmem:[%s532 + $0xd8] sm:$0xff] %v5217
        %5314 = vst [vmem:[%s532 + $0xe0] sm:$0xff] %v5218
        %5315 = vst [vmem:[%s532 + $0xe8] sm:$0xff] %v5219
        %5316 = vst [vmem:[%s532 + $0xf0] sm:$0xff] %v5220
        %5317 = vst [vmem:[%s532 + $0xf8] sm:$0xff] %v5221
        %5318 = vst [vmem:[%s532 + $0x100] sm:$0xff] %v5222
        %5319 = vst [vmem:[%s532 + $0x108] sm:$0xff] %v5223
        %5320 = vst [vmem:[%s532 + $0x110] sm:$0xff] %v5224
        %5321 = vst [vmem:[%s532 + $0x118] sm:$0xff] %v5225
        %5322 = vst [vmem:[%s532 + $0x120] sm:$0xff] %v5226
        %5323 = vst [vmem:[%s532 + $0x128] sm:$0xff] %v5227
        %5324 = vst [vmem:[%s532 + $0x130] sm:$0xff] %v5228
        %5325 = vst [vmem:[%s532 + $0x138] sm:$0xff] %v5229
        %5326 = vst [vmem:[%s532 + $0x140] sm:$0xff] %v5230
        %5327 = vst [vmem:[%s532 + $0x148] sm:$0xff] %v5231
        %5328 = vst [vmem:[%s532 + $0x150] sm:$0xff] %v5232
        %5329 = vst [vmem:[%s532 + $0x158] sm:$0xff] %v5233
        %5330 = vst [vmem:[%s532 + $0x160] sm:$0xff] %v5234
        %5331 = vst [vmem:[%s532 + $0x168] sm:$0xff] %v5235
        %5332 = vst [vmem:[%s532 + $0x170] sm:$0xff] %v5236
        %5333 = vst [vmem:[%s532 + $0x178] sm:$0xff] %v5237
        %5334 = vst [vmem:[%s532 + $0x180] sm:$0xff] %v5238
        %5335 = vst [vmem:[%s532 + $0x188] sm:$0xff] %v5239
        %5336 = vst [vmem:[%s532 + $0x190] sm:$0xff] %v5240
        %5337 = vst [vmem:[%s532 + $0x198] sm:$0xff] %v5241
        %5338 = vst [vmem:[%s532 + $0x1a0] sm:$0xff] %v5242
        %5339 = vst [vmem:[%s532 + $0x1a8] sm:$0xff] %v5243
        %5340 = vst [vmem:[%s532 + $0x1b0] sm:$0xff] %v5244
        %5341 = vst [vmem:[%s532 + $0x1b8] sm:$0xff] %v5245
        %5342 = vst [vmem:[%s532 + $0x1c0] sm:$0xff] %v5246
        %5343 = vst [vmem:[%s532 + $0x1c8] sm:$0xff] %v5247
        %5344 = vst [vmem:[%s532 + $0x1d0] sm:$0xff] %v5248
        %5345 = vst [vmem:[%s532 + $0x1d8] sm:$0xff] %v5249
        %5346 = vst [vmem:[%s532 + $0x1e0] sm:$0xff] %v5250
        %5347 = vst [vmem:[%s532 + $0x1e8] sm:$0xff] %v5251
        %5348 = vst [vmem:[%s532 + $0x1f0] sm:$0xff] %v5252
        %5349 = vst [vmem:[%s532 + $0x1f8] sm:$0xff] %v5253
        %5350 = vst [vmem:[%s532 + $0x200] sm:$0xff] %v5254
        %5351 = vst [vmem:[%s532 + $0x208] sm:$0xff] %v5255
        %5352 = vst [vmem:[%s532 + $0x210] sm:$0xff] %v5256
        %5353 = vst [vmem:[%s532 + $0x218] sm:$0xff] %v5257
        %5354 = vst [vmem:[%s532 + $0x220] sm:$0xff] %v5258
        %5355 = vst [vmem:[%s532 + $0x228] sm:$0xff] %v5259
        %5356 = vst [vmem:[%s532 + $0x230] sm:$0xff] %v5260
        %5357 = vst [vmem:[%s532 + $0x238] sm:$0xff] %v5261
        %5358 = vst [vmem:[%s532 + $0x240] sm:$0xff] %v5262
        %5359 = vst [vmem:[%s532 + $0x248] sm:$0xff] %v5263
        %5360 = vst [vmem:[%s532 + $0x250] sm:$0xff] %v5264
        %5361 = vst [vmem:[%s532 + $0x258] sm:$0xff] %v5265
        %5362 = vst [vmem:[%s532 + $0x260] sm:$0xff] %v5266
        %5363 = vst [vmem:[%s532 + $0x268] sm:$0xff] %v5267
        %5364 = vst [vmem:[%s532 + $0x270] sm:$0xff] %v5268
        %5365 = vst [vmem:[%s532 + $0x278] sm:$0xff] %v5269
        %5366 = vst [vmem:[%s532 + $0x280] sm:$0xff] %v5270
        %5367 = vst [vmem:[%s532 + $0x288] sm:$0xff] %v5271
        %5368 = vst [vmem:[%s532 + $0x290] sm:$0xff] %v5272
        %5369 = vst [vmem:[%s532 + $0x298] sm:$0xff] %v5273
        %5370 = vst [vmem:[%s532 + $0x2a0] sm:$0xff] %v5274
        %5371 = vst [vmem:[%s532 + $0x2a8] sm:$0xff] %v5275
        %5372 = vst [vmem:[%s532 + $0x2b0] sm:$0xff] %v5276
        %5373 = vst [vmem:[%s532 + $0x2b8] sm:$0xff] %v5277
        %5374 = vst [vmem:[%s532 + $0x2c0] sm:$0xff] %v5278
        %5375 = vst [vmem:[%s532 + $0x2c8] sm:$0xff] %v5279
        %5376 = vst [vmem:[%s532 + $0x2d0] sm:$0xff] %v5280
        %5377 = vst [vmem:[%s532 + $0x2d8] sm:$0xff] %v5281
        %5378 = vst [vmem:[%s532 + $0x2e0] sm:$0xff] %v5282
        %5379 = vst [vmem:[%s532 + $0x2e8] sm:$0xff] %v5283
        %5380 = vst [vmem:[%s532 + $0x2f0] sm:$0xff] %v5284
        %5381 = vst [vmem:[%s532 + $0x2f8] sm:$0xff] %v5285
        %s5382 = sand.u32 %s297, 1
        %s5383 = scalar_lea.sflag [#allocation8], %s5382
        %s5384 = sand.u32 %s297, 1
        %s5385 = smul.addr %s5384, 768
        %s5386 = scalar_lea.vmem [#allocation18], %s5385
        // Predicated region
        $region97: #{tpu_custom_call.1} parent=67 // pred_check
          %p5387 = pneg %p307
        $region98: #{tpu_custom_call.1} parent=67 // pred_check_branch
          %5389 = sbr.rel (%p5387) target = $region100
        $region99: #{tpu_custom_call.1} parent=67 // pred_region
          %5391 = vsyncadd %s5383, 0
          %s5392 = smul.addr %s32, 96
          %s5393 = smul.addr %s5392, 8
          %s5394 = scalar_lea.hbm %s12, %s5393
          %s5395 = sshll.u32 %s5386, 4
          %s5396 = int_to_ptr.vmem [resolvable:$true] %s5395
          %s5397 = sshll.u32 %s5394, 4
          %s5398 = int_to_ptr.hbm [resolvable:$true] %s5397
          %5403 = dma.vmem_to_hbm [thread:$0]  %s5396, 12288, %s5398, %s5383, 256, 256, 16
        $region100: #{tpu_custom_call.1} parent=67 // pred_fallthru
          _
      $region68: #{tpu_custom_call.1} parent=5 // pred_fallthru
        _
      %p5404 = scmp.le.s32.totalorder 2, %s27
      // Predicated region
      $region101: #{tpu_custom_call.1} parent=5 // pred_check
        %p5405 = pneg %p5404
      $region102: #{tpu_custom_call.1} parent=5 // pred_check_branch
        %5407 = sbr.rel (%p5405) target = $region104
      $region103: #{tpu_custom_call.1} parent=5 // pred_region
        %s5408 = ssub.s32 %s27, 2
        // Predicated region
        $region105: #{tpu_custom_call.1} parent=103 // pred_check
          %p5409 = pneg %p313
        $region106: #{tpu_custom_call.1} parent=103 // pred_check_branch
          %5411 = sbr.rel (%p5409) target = $region108
        $region107: #{tpu_custom_call.1} parent=103 // pred_region
          %s5412 = sand.u32 %s298, 1
          %s5413 = scalar_lea.sflag [#allocation8], %s5412
          %s5414 = sand.u32 %s298, 1
          %s5415 = smul.addr %s5414, 768
          %s5416 = scalar_lea.vmem [#allocation18], %s5415
          %5418 = dma.done %s5413, 12288
        $region108: #{tpu_custom_call.1} parent=103 // pred_fallthru
          _
      $region104: #{tpu_custom_call.1} parent=5 // pred_fallthru
        _
    $region6: #{tpu_custom_call.1} parent=1 // loop_footer
      %s31 = sadd.s32 1, %s27
    $region7: #{tpu_custom_call.1} parent=1 // loop_footer_branch
      %26 = sbr.rel target = $region3
    $region8: #{tpu_custom_call.1} parent=1 // loop_exit
      _
    %5419 = vsyncpa [#allocation7], 1
    %s5420 = scalar_lea.sflag [#allocation7], 1
    %5421 = vsyncpa %s5420, 1
    %5422 = vsyncpa [#allocation10], 1
    %5423 = vsyncpa [#allocation13], 1
    %5424 = vsyncpa [#allocation16], 1
    %5425 = vsyncpa [#allocation8], 1
    %s5426 = scalar_lea.sflag [#allocation8], 1
    %5427 = vsyncpa %s5426, 1

</llo_original>
